<compile_context>
chip_gen: v7x
topology: tpu7x:2x2x1
jax: 0.10.0
libtpu: 0.0.40
codegen_flags: <defaults>
</compile_context>

<pallas_src>
import functools
import math

import jax
import jax.numpy as jnp
from jax.experimental import pallas as pl
from jax.experimental.pallas import tpu as pltpu

# Scaled-down "bert-base-uncased" config (real model: vocab=30522, H=768,
# 12 heads, intermediate=3072, 12 layers). HIDDEN/INTER kept lane-dense.
VOCAB = 100
TYPE_VOCAB = 2
MAX_POS = 64
HIDDEN = 128
HEADS = 4
HEAD_DIM = HIDDEN // HEADS
INTER = 256
LAYERS = 2
LN_EPS = 1e-12


def _layernorm(x, g, b):
    mu = jnp.mean(x, axis=-1, keepdims=True)
    var = jnp.mean((x - mu) ** 2, axis=-1, keepdims=True)
    return (x - mu) * jax.lax.rsqrt(var + LN_EPS) * g + b


# ----------------------------- Pallas kernel ------------------------------- #

def encoder_kernel(x_ref, mb_ref, embln_ref,
                   wqkv_ref, bqkv_ref, wo_ref, slab_ref,
                   wi_ref, bi_ref, wo2_ref, out_ref,
                   *, num_heads, num_layers, batch, seq):
    """Whole encoder in one grid step; all weights co-resident in VMEM."""
    H = out_ref.shape[1]
    hd = H // num_heads
    scale = 1.0 / math.sqrt(hd)
    n_bh = num_heads * batch

    # Embedding LayerNorm initializes the in-register activation slab.
    x = _layernorm(x_ref[...], embln_ref[0:1, :], embln_ref[1:2, :])   # (B*S, H)

    # Additive attention-mask bias, hoisted once for all layers / heads.
    # Ordered n = h*B + b to match the head-major q/k/v stacking below.
    mb = mb_ref[...]                                                   # (B, 1, S)
    mask = jnp.broadcast_to(mb[None, :, :, :],
                            (num_heads, batch, 1, seq)).reshape(n_bh, 1, seq)

    for layer in range(num_layers):        # static unroll (LAYERS is tiny)
        wqkv = wqkv_ref[layer]             # (H, 3H)    bf16
        bqkv = bqkv_ref[layer]             # (1, 3H)    f32
        wo = wo_ref[layer]                 # (H, H)     bf16
        slab = slab_ref[layer]             # (6, H)     f32
        bo, ln1g, ln1b = slab[0:1], slab[1:2], slab[2:3]
        bo2, ln2g, ln2b = slab[3:4], slab[4:5], slab[5:6]
        wi = wi_ref[layer]                 # (H, INTER) bf16
        bi = bi_ref[layer]                 # (1, INTER) f32
        wo2 = wo2_ref[layer]               # (INTER, H) bf16

        # ---- fused QKV: ONE (B*S, H) @ (H, 3H) matmul, bf16 in / f32 acc ----
        qkv = jnp.dot(x.astype(jnp.bfloat16), wqkv,
                      preferred_element_type=jnp.float32) + bqkv       # (B*S, 3H)

        # Head split: static lane slices stacked on a leading axis; the final
        # reshape (heads, B*S, hd) -> (heads*B, S, hd) preserves element order
        # (free regroup). All MXU work below stays fully batched.
        def split_heads(base):
            parts = [qkv[:, base + h * hd: base + (h + 1) * hd]
                     for h in range(num_heads)]                        # (B*S, hd)
            return jnp.stack(parts, axis=0).reshape(n_bh, seq, hd)

        q = split_heads(0)
        k = split_heads(H)
        v = split_heads(2 * H)

        # ---- attention: batched over (heads*B); no Python loop over batch ----
        s = jnp.einsum("nqd,nkd->nqk", q, k,
                       preferred_element_type=jnp.float32) * scale     # (hB, S, S)
        s = s + mask
        s = s - jnp.max(s, axis=-1, keepdims=True)
        e = jnp.exp(s)
        p = e / jnp.sum(e, axis=-1, keepdims=True)      # exact softmax
        ctx = jnp.einsum("nqk,nkd->nqd", p, v,
                         preferred_element_type=jnp.float32)           # (hB, S, hd)

        # Reassemble (B*S, H) and do ONE full-K projection against (H, H) W_o.
        ctx2 = ctx.reshape(num_heads, batch * seq, hd)                 # free regroup
        ctx_cat = jnp.concatenate([ctx2[h] for h in range(num_heads)], axis=1)
        attn = jnp.dot(ctx_cat.astype(jnp.bfloat16), wo,
                       preferred_element_type=jnp.float32) + bo        # (B*S, H)

        x1 = _layernorm(x + attn, ln1g, ln1b)

        # ---- FFN: two lane-dense slab matmuls ----
        hmid = jnp.dot(x1.astype(jnp.bfloat16), wi,
                       preferred_element_type=jnp.float32) + bi
        # TODO(synk): HF BERT uses exact erf-based GELU; tanh-approx GELU here.
        hmid = jax.nn.gelu(hmid, approximate=True)
        ffn = jnp.dot(hmid.astype(jnp.bfloat16), wo2,
                      preferred_element_type=jnp.float32) + bo2

        x = _layernorm(x1 + ffn, ln2g, ln2b)

    out_ref[...] = x


def _full_spec(arr):
    nd = arr.ndim
    return pl.BlockSpec(arr.shape, lambda i, nd=nd: (0,) * nd)


def encoder_pallas(x_emb2d, mask_bias, packed, *, batch, seq):
    """x_emb2d: (B*S, H) pre-LN embeddings; mask_bias: (B, 1, S) additive bias."""
    BS, H = x_emb2d.shape
    args = (x_emb2d, mask_bias, packed["embln"],
            packed["wqkv"], packed["bqkv"], packed["wo"], packed["slab"],
            packed["wi"], packed["bi"], packed["wo2"])
    kernel = functools.partial(encoder_kernel, num_heads=HEADS,
                               num_layers=LAYERS, batch=batch, seq=seq)
    return pl.pallas_call(
        kernel,
        out_shape=jax.ShapeDtypeStruct((BS, H), jnp.float32),
        grid=(1,),
        in_specs=[_full_spec(a) for a in args],
        out_specs=pl.BlockSpec((BS, H), lambda i: (0, 0)),
        compiler_params=pltpu.CompilerParams(
            dimension_semantics=("arbitrary",),
            vmem_limit_bytes=32 * 1024 * 1024,
        ),
    )(*args)


# ------------------------------- model glue -------------------------------- #

def init_params(key):
    keys = iter(jax.random.split(key, 8 * LAYERS + 8))

    def nrm(shape, std=0.02):
        return (std * jax.random.normal(next(keys), shape)).astype(jnp.float32)

    params = {
        "word_emb": nrm((VOCAB, HIDDEN)),
        "pos_emb": nrm((MAX_POS, HIDDEN)),
        "type_emb": nrm((TYPE_VOCAB, HIDDEN)),
        "emb_ln_g": jnp.ones((1, HIDDEN), jnp.float32),
        "emb_ln_b": jnp.zeros((1, HIDDEN), jnp.float32),
        "layers": [],
    }
    for _ in range(LAYERS):
        params["layers"].append({
            "wq": nrm((HIDDEN, HIDDEN)), "bq": jnp.zeros((1, HIDDEN), jnp.float32),
            "wk": nrm((HIDDEN, HIDDEN)), "bk": jnp.zeros((1, HIDDEN), jnp.float32),
            "wv": nrm((HIDDEN, HIDDEN)), "bv": jnp.zeros((1, HIDDEN), jnp.float32),
            "wo": nrm((HIDDEN, HIDDEN)), "bo": jnp.zeros((1, HIDDEN), jnp.float32),
            "ln1_g": jnp.ones((1, HIDDEN), jnp.float32),
            "ln1_b": jnp.zeros((1, HIDDEN), jnp.float32),
            "wi": nrm((HIDDEN, INTER)), "bi": jnp.zeros((1, INTER), jnp.float32),
            "wo2": nrm((INTER, HIDDEN)), "bo2": jnp.zeros((1, HIDDEN), jnp.float32),
            "ln2_g": jnp.ones((1, HIDDEN), jnp.float32),
            "ln2_b": jnp.zeros((1, HIDDEN), jnp.float32),
        })
    return params


def pack_params(params):
    """Stack per-layer weights along a LAYERS axis; big matmul weights in bf16."""
    wqkv_l, bqkv_l, wo_l, slab_l, wi_l, bi_l, wo2_l = ([] for _ in range(7))
    for lp in params["layers"]:
        wqkv_l.append(jnp.concatenate([lp["wq"], lp["wk"], lp["wv"]], axis=1))
        bqkv_l.append(jnp.concatenate([lp["bq"], lp["bk"], lp["bv"]], axis=1))
        wo_l.append(lp["wo"])
        slab_l.append(jnp.concatenate(
            [lp["bo"], lp["ln1_g"], lp["ln1_b"],
             lp["bo2"], lp["ln2_g"], lp["ln2_b"]], axis=0))
        wi_l.append(lp["wi"])
        bi_l.append(lp["bi"])
        wo2_l.append(lp["wo2"])
    bf16 = jnp.bfloat16
    return {
        "embln": jnp.concatenate([params["emb_ln_g"], params["emb_ln_b"]], axis=0),
        "wqkv": jnp.stack(wqkv_l).astype(bf16),   # (L, H, 3H)
        "bqkv": jnp.stack(bqkv_l),                # (L, 1, 3H)   f32
        "wo":   jnp.stack(wo_l).astype(bf16),     # (L, H, H)
        "slab": jnp.stack(slab_l),                # (L, 6, H)    f32
        "wi":   jnp.stack(wi_l).astype(bf16),     # (L, H, INTER)
        "bi":   jnp.stack(bi_l),                  # (L, 1, INTER) f32
        "wo2":  jnp.stack(wo2_l).astype(bf16),    # (L, INTER, H)
    }


@jax.jit
def encoder_bert_forward(input_ids, attention_mask, params):
    """Pallas-backed forward: returns last_hidden_state of shape (B, S, HIDDEN)."""
    B, S = input_ids.shape
    emb = (params["word_emb"][input_ids]
           + params["pos_emb"][:S][None, :, :]
           + params["type_emb"][0][None, None, :]).astype(jnp.float32)
    mask_bias = ((1.0 - attention_mask.astype(jnp.float32))
                 [:, None, :] * -10000.0)                              # (B, 1, S)
    packed = pack_params(params)
    out2d = encoder_pallas(emb.reshape(B * S, HIDDEN), mask_bias, packed,
                           batch=B, seq=S)
    return out2d.reshape(B, S, HIDDEN)


def reference_forward(input_ids, attention_mask, params):
    """Pure-JAX f32 reference (original-module math) for the correctness check."""
    hi = jax.lax.Precision.HIGHEST
    B, S = input_ids.shape
    hd = HIDDEN // HEADS
    scale = 1.0 / math.sqrt(hd)
    emb = (params["word_emb"][input_ids]
           + params["pos_emb"][:S][None, :, :]
           + params["type_emb"][0][None, None, :]).astype(jnp.float32)
    x = _layernorm(emb, params["emb_ln_g"], params["emb_ln_b"])
    mb = (1.0 - attention_mask.astype(jnp.float32))[:, None, :] * -10000.0
    for lp in params["layers"]:
        q = (jnp.dot(x, lp["wq"], precision=hi) + lp["bq"]).reshape(B, S, HEADS, hd)
        k = (jnp.dot(x, lp["wk"], precision=hi) + lp["bk"]).reshape(B, S, HEADS, hd)
        v = (jnp.dot(x, lp["wv"], precision=hi) + lp["bv"]).reshape(B, S, HEADS, hd)
        q, k, v = (t.transpose(0, 2, 1, 3) for t in (q, k, v))         # (B, h, S, hd)
        s = jnp.einsum("bhqd,bhkd->bhqk", q, k, precision=hi) * scale
        s = s + mb[:, None, :, :]
        p = jax.nn.softmax(s, axis=-1)
        ctx = jnp.einsum("bhqk,bhkd->bhqd", p, v, precision=hi)
        ctx = ctx.transpose(0, 2, 1, 3).reshape(B, S, HIDDEN)
        attn = jnp.dot(ctx, lp["wo"], precision=hi) + lp["bo"]
        x1 = _layernorm(x + attn, lp["ln1_g"], lp["ln1_b"])
        h = jax.nn.gelu(jnp.dot(x1, lp["wi"], precision=hi) + lp["bi"],
                        approximate=True)
        ffn = jnp.dot(h, lp["wo2"], precision=hi) + lp["bo2"]
        x = _layernorm(x1 + ffn, lp["ln2_g"], lp["ln2_b"])
    return x


if __name__ == "__main__":
    B, S = 2, 16
    root = jax.random.PRNGKey(0)
    pkey, ikey = jax.random.split(root)
    params = init_params(pkey)

    input_ids = jax.random.randint(ikey, (B, S), 0, VOCAB, dtype=jnp.int32)
    attention_mask = jnp.ones((B, S), dtype=jnp.int32).at[1, 12:].set(0)

    out = encoder_bert_forward(input_ids, attention_mask, params)
    out = jax.block_until_ready(out)

    ref = reference_forward(input_ids, attention_mask, params)
    assert out.shape == (B, S, HIDDEN), out.shape
    assert bool(jnp.all(jnp.isfinite(out)))
    # Tolerance budget: bf16 weight storage + bf16 MXU inputs (f32 accumulation)
    # vs. the pure-f32 reference; observed diffs are O(1e-3) on unit-scale
    # LayerNorm outputs.
    assert bool(jnp.allclose(out, ref, atol=1e-2, rtol=1e-2)), (
        float(jnp.max(jnp.abs(out - ref))))

    print("KERNEL_OK")
</pallas_src>

<mosaic_0001>
module attributes {stable_mosaic.version = 11 : i64} {
  func.func @encoder_kernel(%arg0: i32, %arg1: memref<32x128xf32, #tpu.memory_space<vmem>>, %arg2: memref<2x1x16xf32, #tpu.memory_space<vmem>>, %arg3: memref<2x128xf32, #tpu.memory_space<vmem>>, %arg4: memref<2x128x384xbf16, #tpu.memory_space<vmem>>, %arg5: memref<2x1x384xf32, #tpu.memory_space<vmem>>, %arg6: memref<2x128x128xbf16, #tpu.memory_space<vmem>>, %arg7: memref<2x6x128xf32, #tpu.memory_space<vmem>>, %arg8: memref<2x128x256xbf16, #tpu.memory_space<vmem>>, %arg9: memref<2x1x256xf32, #tpu.memory_space<vmem>>, %arg10: memref<2x256x128xbf16, #tpu.memory_space<vmem>>, %arg11: memref<32x128xf32, #tpu.memory_space<vmem>>) attributes {dimension_semantics = [#tpu.dimension_semantics<arbitrary>], iteration_bounds = array<i64: 1>, scalar_prefetch = 0 : i64, scratch_operands = 0 : i64, tpu.core_type = #tpu.core_type<tc>, window_params = [{pipeline_mode = #tpu.pipeline_mode<synchronous>, transform_indices = @transform_0, window_bounds = array<i64: 32, 128>}, {pipeline_mode = #tpu.pipeline_mode<synchronous>, transform_indices = @transform_1, window_bounds = array<i64: 2, 1, 16>}, {pipeline_mode = #tpu.pipeline_mode<synchronous>, transform_indices = @transform_2, window_bounds = array<i64: 2, 128>}, {pipeline_mode = #tpu.pipeline_mode<synchronous>, transform_indices = @transform_3, window_bounds = array<i64: 2, 128, 384>}, {pipeline_mode = #tpu.pipeline_mode<synchronous>, transform_indices = @transform_4, window_bounds = array<i64: 2, 1, 384>}, {pipeline_mode = #tpu.pipeline_mode<synchronous>, transform_indices = @transform_5, window_bounds = array<i64: 2, 128, 128>}, {pipeline_mode = #tpu.pipeline_mode<synchronous>, transform_indices = @transform_6, window_bounds = array<i64: 2, 6, 128>}, {pipeline_mode = #tpu.pipeline_mode<synchronous>, transform_indices = @transform_7, window_bounds = array<i64: 2, 128, 256>}, {pipeline_mode = #tpu.pipeline_mode<synchronous>, transform_indices = @transform_8, window_bounds = array<i64: 2, 1, 256>}, {pipeline_mode = #tpu.pipeline_mode<synchronous>, transform_indices = @transform_9, window_bounds = array<i64: 2, 256, 128>}, {pipeline_mode = #tpu.pipeline_mode<synchronous>, transform_indices = @transform_10, window_bounds = array<i64: 32, 128>}]} {
    %c0 = arith.constant 0 : index
    %c0_0 = arith.constant 0 : index
    %0 = vector.load %arg1[%c0, %c0_0] : memref<32x128xf32, #tpu.memory_space<vmem>>, vector<32x128xf32>
    %c0_1 = arith.constant 0 : index
    %c0_2 = arith.constant 0 : index
    %1 = vector.load %arg3[%c0_1, %c0_2] : memref<2x128xf32, #tpu.memory_space<vmem>>, vector<1x128xf32>
    %c1 = arith.constant 1 : index
    %c0_3 = arith.constant 0 : index
    %2 = vector.load %arg3[%c1, %c0_3] : memref<2x128xf32, #tpu.memory_space<vmem>>, vector<1x128xf32>
    %cst = arith.constant dense<0.000000e+00> : vector<32xf32>
    %3 = vector.multi_reduction <add>, %0, %cst [1] : vector<32x128xf32> to vector<32xf32>
    %4 = vector.shape_cast %3 : vector<32xf32> to vector<32x1xf32>
    %cst_4 = arith.constant 1.280000e+02 : f32
    %5 = vector.broadcast %cst_4 : f32 to vector<32x1xf32>
    %6 = arith.divf %4, %5 : vector<32x1xf32>
    %7 = vector.broadcast %6 : vector<32x1xf32> to vector<32x128xf32>
    %8 = arith.subf %0, %7 : vector<32x128xf32>
    %9 = arith.mulf %8, %8 : vector<32x128xf32>
    %cst_5 = arith.constant dense<0.000000e+00> : vector<32xf32>
    %10 = vector.multi_reduction <add>, %9, %cst_5 [1] : vector<32x128xf32> to vector<32xf32>
    %11 = vector.shape_cast %10 : vector<32xf32> to vector<32x1xf32>
    %cst_6 = arith.constant 1.280000e+02 : f32
    %12 = vector.broadcast %cst_6 : f32 to vector<32x1xf32>
    %13 = arith.divf %11, %12 : vector<32x1xf32>
    %14 = vector.broadcast %6 : vector<32x1xf32> to vector<32x128xf32>
    %15 = arith.subf %0, %14 : vector<32x128xf32>
    %cst_7 = arith.constant 9.99999996E-13 : f32
    %16 = vector.broadcast %cst_7 : f32 to vector<32x1xf32>
    %17 = arith.addf %13, %16 : vector<32x1xf32>
    %18 = math.rsqrt %17 : vector<32x1xf32>
    %19 = vector.broadcast %18 : vector<32x1xf32> to vector<32x128xf32>
    %20 = arith.mulf %15, %19 : vector<32x128xf32>
    %21 = vector.broadcast %1 : vector<1x128xf32> to vector<32x128xf32>
    %22 = arith.mulf %20, %21 : vector<32x128xf32>
    %23 = vector.broadcast %2 : vector<1x128xf32> to vector<32x128xf32>
    %24 = arith.addf %22, %23 : vector<32x128xf32>
    %c0_8 = arith.constant 0 : index
    %c0_9 = arith.constant 0 : index
    %c0_10 = arith.constant 0 : index
    %25 = vector.load %arg2[%c0_8, %c0_9, %c0_10] : memref<2x1x16xf32, #tpu.memory_space<vmem>>, vector<2x1x16xf32>
    %26 = vector.shape_cast %25 : vector<2x1x16xf32> to vector<1x2x1x16xf32>
    %27 = vector.shape_cast %26 : vector<1x2x1x16xf32> to vector<1x2x1x16xf32>
    %28 = vector.broadcast %27 : vector<1x2x1x16xf32> to vector<4x2x1x16xf32>
    %29 = vector.shape_cast %28 : vector<4x2x1x16xf32> to vector<8x1x16xf32>
    %c0_11 = arith.constant 0 : index
    %c0_12 = arith.constant 0 : index
    %c0_13 = arith.constant 0 : index
    %30 = vector.load %arg4[%c0_11, %c0_12, %c0_13] : memref<2x128x384xbf16, #tpu.memory_space<vmem>>, vector<1x128x384xbf16>
    %31 = vector.shape_cast %30 : vector<1x128x384xbf16> to vector<128x384xbf16>
    %c0_14 = arith.constant 0 : index
    %c0_15 = arith.constant 0 : index
    %c0_16 = arith.constant 0 : index
    %32 = vector.load %arg5[%c0_14, %c0_15, %c0_16] : memref<2x1x384xf32, #tpu.memory_space<vmem>>, vector<1x1x384xf32>
    %33 = vector.shape_cast %32 : vector<1x1x384xf32> to vector<1x384xf32>
    %c0_17 = arith.constant 0 : index
    %c0_18 = arith.constant 0 : index
    %c0_19 = arith.constant 0 : index
    %34 = vector.load %arg6[%c0_17, %c0_18, %c0_19] : memref<2x128x128xbf16, #tpu.memory_space<vmem>>, vector<1x128x128xbf16>
    %35 = vector.shape_cast %34 : vector<1x128x128xbf16> to vector<128x128xbf16>
    %c0_20 = arith.constant 0 : index
    %c0_21 = arith.constant 0 : index
    %c0_22 = arith.constant 0 : index
    %36 = vector.load %arg7[%c0_20, %c0_21, %c0_22] : memref<2x6x128xf32, #tpu.memory_space<vmem>>, vector<1x6x128xf32>
    %37 = vector.shape_cast %36 : vector<1x6x128xf32> to vector<6x128xf32>
    %38 = vector.extract_strided_slice %37 {offsets = [0, 0], sizes = [1, 128], strides = [1, 1]} : vector<6x128xf32> to vector<1x128xf32>
    %39 = vector.extract_strided_slice %37 {offsets = [1, 0], sizes = [1, 128], strides = [1, 1]} : vector<6x128xf32> to vector<1x128xf32>
    %40 = vector.extract_strided_slice %37 {offsets = [2, 0], sizes = [1, 128], strides = [1, 1]} : vector<6x128xf32> to vector<1x128xf32>
    %41 = vector.extract_strided_slice %37 {offsets = [3, 0], sizes = [1, 128], strides = [1, 1]} : vector<6x128xf32> to vector<1x128xf32>
    %42 = vector.extract_strided_slice %37 {offsets = [4, 0], sizes = [1, 128], strides = [1, 1]} : vector<6x128xf32> to vector<1x128xf32>
    %43 = vector.extract_strided_slice %37 {offsets = [5, 0], sizes = [1, 128], strides = [1, 1]} : vector<6x128xf32> to vector<1x128xf32>
    %c0_23 = arith.constant 0 : index
    %c0_24 = arith.constant 0 : index
    %c0_25 = arith.constant 0 : index
    %44 = vector.load %arg8[%c0_23, %c0_24, %c0_25] : memref<2x128x256xbf16, #tpu.memory_space<vmem>>, vector<1x128x256xbf16>
    %45 = vector.shape_cast %44 : vector<1x128x256xbf16> to vector<128x256xbf16>
    %c0_26 = arith.constant 0 : index
    %c0_27 = arith.constant 0 : index
    %c0_28 = arith.constant 0 : index
    %46 = vector.load %arg9[%c0_26, %c0_27, %c0_28] : memref<2x1x256xf32, #tpu.memory_space<vmem>>, vector<1x1x256xf32>
    %47 = vector.shape_cast %46 : vector<1x1x256xf32> to vector<1x256xf32>
    %c0_29 = arith.constant 0 : index
    %c0_30 = arith.constant 0 : index
    %c0_31 = arith.constant 0 : index
    %48 = vector.load %arg10[%c0_29, %c0_30, %c0_31] : memref<2x256x128xbf16, #tpu.memory_space<vmem>>, vector<1x256x128xbf16>
    %49 = vector.shape_cast %48 : vector<1x256x128xbf16> to vector<256x128xbf16>
    %50 = arith.truncf %24 : vector<32x128xf32> to vector<32x128xbf16>
    %cst_32 = arith.constant dense<0.000000e+00> : vector<32x384xf32>
    %51 = tpu.matmul %50, %31, %cst_32 {dimension_numbers = #tpu.dot_dimension_numbers<[1], [0], [0], [1], [0, 0, 1, 1], [], []>} : vector<32x128xbf16>, vector<128x384xbf16>, vector<32x384xf32> -> vector<32x384xf32>
    %52 = vector.broadcast %33 : vector<1x384xf32> to vector<32x384xf32>
    %53 = arith.addf %51, %52 : vector<32x384xf32>
    %54 = vector.extract_strided_slice %53 {offsets = [0, 0], sizes = [32, 32], strides = [1, 1]} : vector<32x384xf32> to vector<32x32xf32>
    %55 = vector.extract_strided_slice %53 {offsets = [0, 32], sizes = [32, 32], strides = [1, 1]} : vector<32x384xf32> to vector<32x32xf32>
    %56 = vector.extract_strided_slice %53 {offsets = [0, 64], sizes = [32, 32], strides = [1, 1]} : vector<32x384xf32> to vector<32x32xf32>
    %57 = vector.extract_strided_slice %53 {offsets = [0, 96], sizes = [32, 32], strides = [1, 1]} : vector<32x384xf32> to vector<32x32xf32>
    %58 = vector.shape_cast %54 : vector<32x32xf32> to vector<1x32x32xf32>
    %59 = vector.shape_cast %55 : vector<32x32xf32> to vector<1x32x32xf32>
    %60 = vector.shape_cast %56 : vector<32x32xf32> to vector<1x32x32xf32>
    %61 = vector.shape_cast %57 : vector<32x32xf32> to vector<1x32x32xf32>
    %62 = tpu.concatenate %58, %59, %60, %61 in 0 : vector<1x32x32xf32>, vector<1x32x32xf32>, vector<1x32x32xf32>, vector<1x32x32xf32> -> vector<4x32x32xf32>
    %63 = vector.shape_cast %62 : vector<4x32x32xf32> to vector<8x16x32xf32>
    %64 = vector.extract_strided_slice %53 {offsets = [0, 128], sizes = [32, 32], strides = [1, 1]} : vector<32x384xf32> to vector<32x32xf32>
    %65 = vector.extract_strided_slice %53 {offsets = [0, 160], sizes = [32, 32], strides = [1, 1]} : vector<32x384xf32> to vector<32x32xf32>
    %66 = vector.extract_strided_slice %53 {offsets = [0, 192], sizes = [32, 32], strides = [1, 1]} : vector<32x384xf32> to vector<32x32xf32>
    %67 = vector.extract_strided_slice %53 {offsets = [0, 224], sizes = [32, 32], strides = [1, 1]} : vector<32x384xf32> to vector<32x32xf32>
    %68 = vector.shape_cast %64 : vector<32x32xf32> to vector<1x32x32xf32>
    %69 = vector.shape_cast %65 : vector<32x32xf32> to vector<1x32x32xf32>
    %70 = vector.shape_cast %66 : vector<32x32xf32> to vector<1x32x32xf32>
    %71 = vector.shape_cast %67 : vector<32x32xf32> to vector<1x32x32xf32>
    %72 = tpu.concatenate %68, %69, %70, %71 in 0 : vector<1x32x32xf32>, vector<1x32x32xf32>, vector<1x32x32xf32>, vector<1x32x32xf32> -> vector<4x32x32xf32>
    %73 = vector.shape_cast %72 : vector<4x32x32xf32> to vector<8x16x32xf32>
    %74 = vector.extract_strided_slice %53 {offsets = [0, 256], sizes = [32, 32], strides = [1, 1]} : vector<32x384xf32> to vector<32x32xf32>
    %75 = vector.extract_strided_slice %53 {offsets = [0, 288], sizes = [32, 32], strides = [1, 1]} : vector<32x384xf32> to vector<32x32xf32>
    %76 = vector.extract_strided_slice %53 {offsets = [0, 320], sizes = [32, 32], strides = [1, 1]} : vector<32x384xf32> to vector<32x32xf32>
    %77 = vector.extract_strided_slice %53 {offsets = [0, 352], sizes = [32, 32], strides = [1, 1]} : vector<32x384xf32> to vector<32x32xf32>
    %78 = vector.shape_cast %74 : vector<32x32xf32> to vector<1x32x32xf32>
    %79 = vector.shape_cast %75 : vector<32x32xf32> to vector<1x32x32xf32>
    %80 = vector.shape_cast %76 : vector<32x32xf32> to vector<1x32x32xf32>
    %81 = vector.shape_cast %77 : vector<32x32xf32> to vector<1x32x32xf32>
    %82 = tpu.concatenate %78, %79, %80, %81 in 0 : vector<1x32x32xf32>, vector<1x32x32xf32>, vector<1x32x32xf32>, vector<1x32x32xf32> -> vector<4x32x32xf32>
    %83 = vector.shape_cast %82 : vector<4x32x32xf32> to vector<8x16x32xf32>
    "tpu.trace_start"() <{level = 10 : i32, message = "nqd,nkd->nqk"}> : () -> ()
    %cst_33 = arith.constant dense<0.000000e+00> : vector<8x16x16xf32>
    %84 = tpu.matmul %63, %73, %cst_33 {dimension_numbers = #tpu.dot_dimension_numbers<[2], [2], [1], [1], [0, 0, 0, 1, 1, 1], [0], [0]>} : vector<8x16x32xf32>, vector<8x16x32xf32>, vector<8x16x16xf32> -> vector<8x16x16xf32>
    "tpu.trace_stop"() : () -> ()
    %cst_34 = arith.constant 0.176776692 : f32
    %85 = vector.broadcast %cst_34 : f32 to vector<8x16x16xf32>
    %86 = arith.mulf %84, %85 : vector<8x16x16xf32>
    %87 = vector.broadcast %29 : vector<8x1x16xf32> to vector<8x16x16xf32>
    %88 = arith.addf %86, %87 : vector<8x16x16xf32>
    %cst_35 = arith.constant dense<0xFF800000> : vector<8x16xf32>
    %89 = vector.multi_reduction <maximumf>, %88, %cst_35 [2] : vector<8x16x16xf32> to vector<8x16xf32>
    %90 = vector.shape_cast %89 : vector<8x16xf32> to vector<8x16x1xf32>
    %91 = vector.broadcast %90 : vector<8x16x1xf32> to vector<8x16x16xf32>
    %92 = arith.subf %88, %91 : vector<8x16x16xf32>
    %93 = math.exp %92 : vector<8x16x16xf32>
    %cst_36 = arith.constant dense<0.000000e+00> : vector<8x16xf32>
    %94 = vector.multi_reduction <add>, %93, %cst_36 [2] : vector<8x16x16xf32> to vector<8x16xf32>
    %95 = vector.shape_cast %94 : vector<8x16xf32> to vector<8x16x1xf32>
    %96 = vector.broadcast %95 : vector<8x16x1xf32> to vector<8x16x16xf32>
    %97 = arith.divf %93, %96 : vector<8x16x16xf32>
    "tpu.trace_start"() <{level = 10 : i32, message = "nqk,nkd->nqd"}> : () -> ()
    %cst_37 = arith.constant dense<0.000000e+00> : vector<8x16x32xf32>
    %98 = tpu.matmul %97, %83, %cst_37 {dimension_numbers = #tpu.dot_dimension_numbers<[2], [1], [1], [2], [0, 0, 0, 1, 1, 2], [0], [0]>} : vector<8x16x16xf32>, vector<8x16x32xf32>, vector<8x16x32xf32> -> vector<8x16x32xf32>
    "tpu.trace_stop"() : () -> ()
    %99 = vector.shape_cast %98 : vector<8x16x32xf32> to vector<4x32x32xf32>
    %100 = vector.extract_strided_slice %99 {offsets = [0, 0, 0], sizes = [1, 32, 32], strides = [1, 1, 1]} : vector<4x32x32xf32> to vector<1x32x32xf32>
    %101 = vector.shape_cast %100 : vector<1x32x32xf32> to vector<32x32xf32>
    %102 = vector.extract_strided_slice %99 {offsets = [1, 0, 0], sizes = [1, 32, 32], strides = [1, 1, 1]} : vector<4x32x32xf32> to vector<1x32x32xf32>
    %103 = vector.shape_cast %102 : vector<1x32x32xf32> to vector<32x32xf32>
    %104 = vector.extract_strided_slice %99 {offsets = [2, 0, 0], sizes = [1, 32, 32], strides = [1, 1, 1]} : vector<4x32x32xf32> to vector<1x32x32xf32>
    %105 = vector.shape_cast %104 : vector<1x32x32xf32> to vector<32x32xf32>
    %106 = vector.extract_strided_slice %99 {offsets = [3, 0, 0], sizes = [1, 32, 32], strides = [1, 1, 1]} : vector<4x32x32xf32> to vector<1x32x32xf32>
    %107 = vector.shape_cast %106 : vector<1x32x32xf32> to vector<32x32xf32>
    %108 = tpu.concatenate %101, %103, %105, %107 in 1 : vector<32x32xf32>, vector<32x32xf32>, vector<32x32xf32>, vector<32x32xf32> -> vector<32x128xf32>
    %109 = arith.truncf %108 : vector<32x128xf32> to vector<32x128xbf16>
    %cst_38 = arith.constant dense<0.000000e+00> : vector<32x128xf32>
    %110 = tpu.matmul %109, %35, %cst_38 {dimension_numbers = #tpu.dot_dimension_numbers<[1], [0], [0], [1], [0, 0, 1, 1], [], []>} : vector<32x128xbf16>, vector<128x128xbf16>, vector<32x128xf32> -> vector<32x128xf32>
    %111 = vector.broadcast %38 : vector<1x128xf32> to vector<32x128xf32>
    %112 = arith.addf %110, %111 : vector<32x128xf32>
    %113 = arith.addf %24, %112 : vector<32x128xf32>
    %cst_39 = arith.constant dense<0.000000e+00> : vector<32xf32>
    %114 = vector.multi_reduction <add>, %113, %cst_39 [1] : vector<32x128xf32> to vector<32xf32>
    %115 = vector.shape_cast %114 : vector<32xf32> to vector<32x1xf32>
    %cst_40 = arith.constant 1.280000e+02 : f32
    %116 = vector.broadcast %cst_40 : f32 to vector<32x1xf32>
    %117 = arith.divf %115, %116 : vector<32x1xf32>
    %118 = vector.broadcast %117 : vector<32x1xf32> to vector<32x128xf32>
    %119 = arith.subf %113, %118 : vector<32x128xf32>
    %120 = arith.mulf %119, %119 : vector<32x128xf32>
    %cst_41 = arith.constant dense<0.000000e+00> : vector<32xf32>
    %121 = vector.multi_reduction <add>, %120, %cst_41 [1] : vector<32x128xf32> to vector<32xf32>
    %122 = vector.shape_cast %121 : vector<32xf32> to vector<32x1xf32>
    %cst_42 = arith.constant 1.280000e+02 : f32
    %123 = vector.broadcast %cst_42 : f32 to vector<32x1xf32>
    %124 = arith.divf %122, %123 : vector<32x1xf32>
    %125 = vector.broadcast %117 : vector<32x1xf32> to vector<32x128xf32>
    %126 = arith.subf %113, %125 : vector<32x128xf32>
    %cst_43 = arith.constant 9.99999996E-13 : f32
    %127 = vector.broadcast %cst_43 : f32 to vector<32x1xf32>
    %128 = arith.addf %124, %127 : vector<32x1xf32>
    %129 = math.rsqrt %128 : vector<32x1xf32>
    %130 = vector.broadcast %129 : vector<32x1xf32> to vector<32x128xf32>
    %131 = arith.mulf %126, %130 : vector<32x128xf32>
    %132 = vector.broadcast %39 : vector<1x128xf32> to vector<32x128xf32>
    %133 = arith.mulf %131, %132 : vector<32x128xf32>
    %134 = vector.broadcast %40 : vector<1x128xf32> to vector<32x128xf32>
    %135 = arith.addf %133, %134 : vector<32x128xf32>
    %136 = arith.truncf %135 : vector<32x128xf32> to vector<32x128xbf16>
    %cst_44 = arith.constant dense<0.000000e+00> : vector<32x256xf32>
    %137 = tpu.matmul %136, %45, %cst_44 {dimension_numbers = #tpu.dot_dimension_numbers<[1], [0], [0], [1], [0, 0, 1, 1], [], []>} : vector<32x128xbf16>, vector<128x256xbf16>, vector<32x256xf32> -> vector<32x256xf32>
    %138 = vector.broadcast %47 : vector<1x256xf32> to vector<32x256xf32>
    %139 = arith.addf %137, %138 : vector<32x256xf32>
    %140 = arith.mulf %139, %139 : vector<32x256xf32>
    %141 = arith.mulf %139, %140 : vector<32x256xf32>
    %cst_45 = arith.constant 4.471500e-02 : f32
    %142 = vector.broadcast %cst_45 : f32 to vector<32x256xf32>
    %143 = arith.mulf %142, %141 : vector<32x256xf32>
    %144 = arith.addf %139, %143 : vector<32x256xf32>
    %cst_46 = arith.constant 0.797884583 : f32
    %145 = vector.broadcast %cst_46 : f32 to vector<32x256xf32>
    %146 = arith.mulf %145, %144 : vector<32x256xf32>
    %147 = math.tanh %146 : vector<32x256xf32>
    %cst_47 = arith.constant 1.000000e+00 : f32
    %148 = vector.broadcast %cst_47 : f32 to vector<32x256xf32>
    %149 = arith.addf %148, %147 : vector<32x256xf32>
    %cst_48 = arith.constant 5.000000e-01 : f32
    %150 = vector.broadcast %cst_48 : f32 to vector<32x256xf32>
    %151 = arith.mulf %150, %149 : vector<32x256xf32>
    %152 = arith.mulf %139, %151 : vector<32x256xf32>
    %153 = arith.truncf %152 : vector<32x256xf32> to vector<32x256xbf16>
    %cst_49 = arith.constant dense<0.000000e+00> : vector<32x128xf32>
    %154 = tpu.matmul %153, %49, %cst_49 {dimension_numbers = #tpu.dot_dimension_numbers<[1], [0], [0], [1], [0, 0, 1, 1], [], []>} : vector<32x256xbf16>, vector<256x128xbf16>, vector<32x128xf32> -> vector<32x128xf32>
    %155 = vector.broadcast %41 : vector<1x128xf32> to vector<32x128xf32>
    %156 = arith.addf %154, %155 : vector<32x128xf32>
    %157 = arith.addf %135, %156 : vector<32x128xf32>
    %cst_50 = arith.constant dense<0.000000e+00> : vector<32xf32>
    %158 = vector.multi_reduction <add>, %157, %cst_50 [1] : vector<32x128xf32> to vector<32xf32>
    %159 = vector.shape_cast %158 : vector<32xf32> to vector<32x1xf32>
    %cst_51 = arith.constant 1.280000e+02 : f32
    %160 = vector.broadcast %cst_51 : f32 to vector<32x1xf32>
    %161 = arith.divf %159, %160 : vector<32x1xf32>
    %162 = vector.broadcast %161 : vector<32x1xf32> to vector<32x128xf32>
    %163 = arith.subf %157, %162 : vector<32x128xf32>
    %164 = arith.mulf %163, %163 : vector<32x128xf32>
    %cst_52 = arith.constant dense<0.000000e+00> : vector<32xf32>
    %165 = vector.multi_reduction <add>, %164, %cst_52 [1] : vector<32x128xf32> to vector<32xf32>
    %166 = vector.shape_cast %165 : vector<32xf32> to vector<32x1xf32>
    %cst_53 = arith.constant 1.280000e+02 : f32
    %167 = vector.broadcast %cst_53 : f32 to vector<32x1xf32>
    %168 = arith.divf %166, %167 : vector<32x1xf32>
    %169 = vector.broadcast %161 : vector<32x1xf32> to vector<32x128xf32>
    %170 = arith.subf %157, %169 : vector<32x128xf32>
    %cst_54 = arith.constant 9.99999996E-13 : f32
    %171 = vector.broadcast %cst_54 : f32 to vector<32x1xf32>
    %172 = arith.addf %168, %171 : vector<32x1xf32>
    %173 = math.rsqrt %172 : vector<32x1xf32>
    %174 = vector.broadcast %173 : vector<32x1xf32> to vector<32x128xf32>
    %175 = arith.mulf %170, %174 : vector<32x128xf32>
    %176 = vector.broadcast %42 : vector<1x128xf32> to vector<32x128xf32>
    %177 = arith.mulf %175, %176 : vector<32x128xf32>
    %178 = vector.broadcast %43 : vector<1x128xf32> to vector<32x128xf32>
    %179 = arith.addf %177, %178 : vector<32x128xf32>
    %c1_55 = arith.constant 1 : index
    %c0_56 = arith.constant 0 : index
    %c0_57 = arith.constant 0 : index
    %180 = vector.load %arg4[%c1_55, %c0_56, %c0_57] : memref<2x128x384xbf16, #tpu.memory_space<vmem>>, vector<1x128x384xbf16>
    %181 = vector.shape_cast %180 : vector<1x128x384xbf16> to vector<128x384xbf16>
    %c1_58 = arith.constant 1 : index
    %c0_59 = arith.constant 0 : index
    %c0_60 = arith.constant 0 : index
    %182 = vector.load %arg5[%c1_58, %c0_59, %c0_60] : memref<2x1x384xf32, #tpu.memory_space<vmem>>, vector<1x1x384xf32>
    %183 = vector.shape_cast %182 : vector<1x1x384xf32> to vector<1x384xf32>
    %c1_61 = arith.constant 1 : index
    %c0_62 = arith.constant 0 : index
    %c0_63 = arith.constant 0 : index
    %184 = vector.load %arg6[%c1_61, %c0_62, %c0_63] : memref<2x128x128xbf16, #tpu.memory_space<vmem>>, vector<1x128x128xbf16>
    %185 = vector.shape_cast %184 : vector<1x128x128xbf16> to vector<128x128xbf16>
    %c1_64 = arith.constant 1 : index
    %c0_65 = arith.constant 0 : index
    %c0_66 = arith.constant 0 : index
    %186 = vector.load %arg7[%c1_64, %c0_65, %c0_66] : memref<2x6x128xf32, #tpu.memory_space<vmem>>, vector<1x6x128xf32>
    %187 = vector.shape_cast %186 : vector<1x6x128xf32> to vector<6x128xf32>
    %188 = vector.extract_strided_slice %187 {offsets = [0, 0], sizes = [1, 128], strides = [1, 1]} : vector<6x128xf32> to vector<1x128xf32>
    %189 = vector.extract_strided_slice %187 {offsets = [1, 0], sizes = [1, 128], strides = [1, 1]} : vector<6x128xf32> to vector<1x128xf32>
    %190 = vector.extract_strided_slice %187 {offsets = [2, 0], sizes = [1, 128], strides = [1, 1]} : vector<6x128xf32> to vector<1x128xf32>
    %191 = vector.extract_strided_slice %187 {offsets = [3, 0], sizes = [1, 128], strides = [1, 1]} : vector<6x128xf32> to vector<1x128xf32>
    %192 = vector.extract_strided_slice %187 {offsets = [4, 0], sizes = [1, 128], strides = [1, 1]} : vector<6x128xf32> to vector<1x128xf32>
    %193 = vector.extract_strided_slice %187 {offsets = [5, 0], sizes = [1, 128], strides = [1, 1]} : vector<6x128xf32> to vector<1x128xf32>
    %c1_67 = arith.constant 1 : index
    %c0_68 = arith.constant 0 : index
    %c0_69 = arith.constant 0 : index
    %194 = vector.load %arg8[%c1_67, %c0_68, %c0_69] : memref<2x128x256xbf16, #tpu.memory_space<vmem>>, vector<1x128x256xbf16>
    %195 = vector.shape_cast %194 : vector<1x128x256xbf16> to vector<128x256xbf16>
    %c1_70 = arith.constant 1 : index
    %c0_71 = arith.constant 0 : index
    %c0_72 = arith.constant 0 : index
    %196 = vector.load %arg9[%c1_70, %c0_71, %c0_72] : memref<2x1x256xf32, #tpu.memory_space<vmem>>, vector<1x1x256xf32>
    %197 = vector.shape_cast %196 : vector<1x1x256xf32> to vector<1x256xf32>
    %c1_73 = arith.constant 1 : index
    %c0_74 = arith.constant 0 : index
    %c0_75 = arith.constant 0 : index
    %198 = vector.load %arg10[%c1_73, %c0_74, %c0_75] : memref<2x256x128xbf16, #tpu.memory_space<vmem>>, vector<1x256x128xbf16>
    %199 = vector.shape_cast %198 : vector<1x256x128xbf16> to vector<256x128xbf16>
    %200 = arith.truncf %179 : vector<32x128xf32> to vector<32x128xbf16>
    %cst_76 = arith.constant dense<0.000000e+00> : vector<32x384xf32>
    %201 = tpu.matmul %200, %181, %cst_76 {dimension_numbers = #tpu.dot_dimension_numbers<[1], [0], [0], [1], [0, 0, 1, 1], [], []>} : vector<32x128xbf16>, vector<128x384xbf16>, vector<32x384xf32> -> vector<32x384xf32>
    %202 = vector.broadcast %183 : vector<1x384xf32> to vector<32x384xf32>
    %203 = arith.addf %201, %202 : vector<32x384xf32>
    %204 = vector.extract_strided_slice %203 {offsets = [0, 0], sizes = [32, 32], strides = [1, 1]} : vector<32x384xf32> to vector<32x32xf32>
    %205 = vector.extract_strided_slice %203 {offsets = [0, 32], sizes = [32, 32], strides = [1, 1]} : vector<32x384xf32> to vector<32x32xf32>
    %206 = vector.extract_strided_slice %203 {offsets = [0, 64], sizes = [32, 32], strides = [1, 1]} : vector<32x384xf32> to vector<32x32xf32>
    %207 = vector.extract_strided_slice %203 {offsets = [0, 96], sizes = [32, 32], strides = [1, 1]} : vector<32x384xf32> to vector<32x32xf32>
    %208 = vector.shape_cast %204 : vector<32x32xf32> to vector<1x32x32xf32>
    %209 = vector.shape_cast %205 : vector<32x32xf32> to vector<1x32x32xf32>
    %210 = vector.shape_cast %206 : vector<32x32xf32> to vector<1x32x32xf32>
    %211 = vector.shape_cast %207 : vector<32x32xf32> to vector<1x32x32xf32>
    %212 = tpu.concatenate %208, %209, %210, %211 in 0 : vector<1x32x32xf32>, vector<1x32x32xf32>, vector<1x32x32xf32>, vector<1x32x32xf32> -> vector<4x32x32xf32>
    %213 = vector.shape_cast %212 : vector<4x32x32xf32> to vector<8x16x32xf32>
    %214 = vector.extract_strided_slice %203 {offsets = [0, 128], sizes = [32, 32], strides = [1, 1]} : vector<32x384xf32> to vector<32x32xf32>
    %215 = vector.extract_strided_slice %203 {offsets = [0, 160], sizes = [32, 32], strides = [1, 1]} : vector<32x384xf32> to vector<32x32xf32>
    %216 = vector.extract_strided_slice %203 {offsets = [0, 192], sizes = [32, 32], strides = [1, 1]} : vector<32x384xf32> to vector<32x32xf32>
    %217 = vector.extract_strided_slice %203 {offsets = [0, 224], sizes = [32, 32], strides = [1, 1]} : vector<32x384xf32> to vector<32x32xf32>
    %218 = vector.shape_cast %214 : vector<32x32xf32> to vector<1x32x32xf32>
    %219 = vector.shape_cast %215 : vector<32x32xf32> to vector<1x32x32xf32>
    %220 = vector.shape_cast %216 : vector<32x32xf32> to vector<1x32x32xf32>
    %221 = vector.shape_cast %217 : vector<32x32xf32> to vector<1x32x32xf32>
    %222 = tpu.concatenate %218, %219, %220, %221 in 0 : vector<1x32x32xf32>, vector<1x32x32xf32>, vector<1x32x32xf32>, vector<1x32x32xf32> -> vector<4x32x32xf32>
    %223 = vector.shape_cast %222 : vector<4x32x32xf32> to vector<8x16x32xf32>
    %224 = vector.extract_strided_slice %203 {offsets = [0, 256], sizes = [32, 32], strides = [1, 1]} : vector<32x384xf32> to vector<32x32xf32>
    %225 = vector.extract_strided_slice %203 {offsets = [0, 288], sizes = [32, 32], strides = [1, 1]} : vector<32x384xf32> to vector<32x32xf32>
    %226 = vector.extract_strided_slice %203 {offsets = [0, 320], sizes = [32, 32], strides = [1, 1]} : vector<32x384xf32> to vector<32x32xf32>
    %227 = vector.extract_strided_slice %203 {offsets = [0, 352], sizes = [32, 32], strides = [1, 1]} : vector<32x384xf32> to vector<32x32xf32>
    %228 = vector.shape_cast %224 : vector<32x32xf32> to vector<1x32x32xf32>
    %229 = vector.shape_cast %225 : vector<32x32xf32> to vector<1x32x32xf32>
    %230 = vector.shape_cast %226 : vector<32x32xf32> to vector<1x32x32xf32>
    %231 = vector.shape_cast %227 : vector<32x32xf32> to vector<1x32x32xf32>
    %232 = tpu.concatenate %228, %229, %230, %231 in 0 : vector<1x32x32xf32>, vector<1x32x32xf32>, vector<1x32x32xf32>, vector<1x32x32xf32> -> vector<4x32x32xf32>
    %233 = vector.shape_cast %232 : vector<4x32x32xf32> to vector<8x16x32xf32>
    "tpu.trace_start"() <{level = 10 : i32, message = "nqd,nkd->nqk"}> : () -> ()
    %cst_77 = arith.constant dense<0.000000e+00> : vector<8x16x16xf32>
    %234 = tpu.matmul %213, %223, %cst_77 {dimension_numbers = #tpu.dot_dimension_numbers<[2], [2], [1], [1], [0, 0, 0, 1, 1, 1], [0], [0]>} : vector<8x16x32xf32>, vector<8x16x32xf32>, vector<8x16x16xf32> -> vector<8x16x16xf32>
    "tpu.trace_stop"() : () -> ()
    %cst_78 = arith.constant 0.176776692 : f32
    %235 = vector.broadcast %cst_78 : f32 to vector<8x16x16xf32>
    %236 = arith.mulf %234, %235 : vector<8x16x16xf32>
    %237 = vector.broadcast %29 : vector<8x1x16xf32> to vector<8x16x16xf32>
    %238 = arith.addf %236, %237 : vector<8x16x16xf32>
    %cst_79 = arith.constant dense<0xFF800000> : vector<8x16xf32>
    %239 = vector.multi_reduction <maximumf>, %238, %cst_79 [2] : vector<8x16x16xf32> to vector<8x16xf32>
    %240 = vector.shape_cast %239 : vector<8x16xf32> to vector<8x16x1xf32>
    %241 = vector.broadcast %240 : vector<8x16x1xf32> to vector<8x16x16xf32>
    %242 = arith.subf %238, %241 : vector<8x16x16xf32>
    %243 = math.exp %242 : vector<8x16x16xf32>
    %cst_80 = arith.constant dense<0.000000e+00> : vector<8x16xf32>
    %244 = vector.multi_reduction <add>, %243, %cst_80 [2] : vector<8x16x16xf32> to vector<8x16xf32>
    %245 = vector.shape_cast %244 : vector<8x16xf32> to vector<8x16x1xf32>
    %246 = vector.broadcast %245 : vector<8x16x1xf32> to vector<8x16x16xf32>
    %247 = arith.divf %243, %246 : vector<8x16x16xf32>
    "tpu.trace_start"() <{level = 10 : i32, message = "nqk,nkd->nqd"}> : () -> ()
    %cst_81 = arith.constant dense<0.000000e+00> : vector<8x16x32xf32>
    %248 = tpu.matmul %247, %233, %cst_81 {dimension_numbers = #tpu.dot_dimension_numbers<[2], [1], [1], [2], [0, 0, 0, 1, 1, 2], [0], [0]>} : vector<8x16x16xf32>, vector<8x16x32xf32>, vector<8x16x32xf32> -> vector<8x16x32xf32>
    "tpu.trace_stop"() : () -> ()
    %249 = vector.shape_cast %248 : vector<8x16x32xf32> to vector<4x32x32xf32>
    %250 = vector.extract_strided_slice %249 {offsets = [0, 0, 0], sizes = [1, 32, 32], strides = [1, 1, 1]} : vector<4x32x32xf32> to vector<1x32x32xf32>
    %251 = vector.shape_cast %250 : vector<1x32x32xf32> to vector<32x32xf32>
    %252 = vector.extract_strided_slice %249 {offsets = [1, 0, 0], sizes = [1, 32, 32], strides = [1, 1, 1]} : vector<4x32x32xf32> to vector<1x32x32xf32>
    %253 = vector.shape_cast %252 : vector<1x32x32xf32> to vector<32x32xf32>
    %254 = vector.extract_strided_slice %249 {offsets = [2, 0, 0], sizes = [1, 32, 32], strides = [1, 1, 1]} : vector<4x32x32xf32> to vector<1x32x32xf32>
    %255 = vector.shape_cast %254 : vector<1x32x32xf32> to vector<32x32xf32>
    %256 = vector.extract_strided_slice %249 {offsets = [3, 0, 0], sizes = [1, 32, 32], strides = [1, 1, 1]} : vector<4x32x32xf32> to vector<1x32x32xf32>
    %257 = vector.shape_cast %256 : vector<1x32x32xf32> to vector<32x32xf32>
    %258 = tpu.concatenate %251, %253, %255, %257 in 1 : vector<32x32xf32>, vector<32x32xf32>, vector<32x32xf32>, vector<32x32xf32> -> vector<32x128xf32>
    %259 = arith.truncf %258 : vector<32x128xf32> to vector<32x128xbf16>
    %cst_82 = arith.constant dense<0.000000e+00> : vector<32x128xf32>
    %260 = tpu.matmul %259, %185, %cst_82 {dimension_numbers = #tpu.dot_dimension_numbers<[1], [0], [0], [1], [0, 0, 1, 1], [], []>} : vector<32x128xbf16>, vector<128x128xbf16>, vector<32x128xf32> -> vector<32x128xf32>
    %261 = vector.broadcast %188 : vector<1x128xf32> to vector<32x128xf32>
    %262 = arith.addf %260, %261 : vector<32x128xf32>
    %263 = arith.addf %179, %262 : vector<32x128xf32>
    %cst_83 = arith.constant dense<0.000000e+00> : vector<32xf32>
    %264 = vector.multi_reduction <add>, %263, %cst_83 [1] : vector<32x128xf32> to vector<32xf32>
    %265 = vector.shape_cast %264 : vector<32xf32> to vector<32x1xf32>
    %cst_84 = arith.constant 1.280000e+02 : f32
    %266 = vector.broadcast %cst_84 : f32 to vector<32x1xf32>
    %267 = arith.divf %265, %266 : vector<32x1xf32>
    %268 = vector.broadcast %267 : vector<32x1xf32> to vector<32x128xf32>
    %269 = arith.subf %263, %268 : vector<32x128xf32>
    %270 = arith.mulf %269, %269 : vector<32x128xf32>
    %cst_85 = arith.constant dense<0.000000e+00> : vector<32xf32>
    %271 = vector.multi_reduction <add>, %270, %cst_85 [1] : vector<32x128xf32> to vector<32xf32>
    %272 = vector.shape_cast %271 : vector<32xf32> to vector<32x1xf32>
    %cst_86 = arith.constant 1.280000e+02 : f32
    %273 = vector.broadcast %cst_86 : f32 to vector<32x1xf32>
    %274 = arith.divf %272, %273 : vector<32x1xf32>
    %275 = vector.broadcast %267 : vector<32x1xf32> to vector<32x128xf32>
    %276 = arith.subf %263, %275 : vector<32x128xf32>
    %cst_87 = arith.constant 9.99999996E-13 : f32
    %277 = vector.broadcast %cst_87 : f32 to vector<32x1xf32>
    %278 = arith.addf %274, %277 : vector<32x1xf32>
    %279 = math.rsqrt %278 : vector<32x1xf32>
    %280 = vector.broadcast %279 : vector<32x1xf32> to vector<32x128xf32>
    %281 = arith.mulf %276, %280 : vector<32x128xf32>
    %282 = vector.broadcast %189 : vector<1x128xf32> to vector<32x128xf32>
    %283 = arith.mulf %281, %282 : vector<32x128xf32>
    %284 = vector.broadcast %190 : vector<1x128xf32> to vector<32x128xf32>
    %285 = arith.addf %283, %284 : vector<32x128xf32>
    %286 = arith.truncf %285 : vector<32x128xf32> to vector<32x128xbf16>
    %cst_88 = arith.constant dense<0.000000e+00> : vector<32x256xf32>
    %287 = tpu.matmul %286, %195, %cst_88 {dimension_numbers = #tpu.dot_dimension_numbers<[1], [0], [0], [1], [0, 0, 1, 1], [], []>} : vector<32x128xbf16>, vector<128x256xbf16>, vector<32x256xf32> -> vector<32x256xf32>
    %288 = vector.broadcast %197 : vector<1x256xf32> to vector<32x256xf32>
    %289 = arith.addf %287, %288 : vector<32x256xf32>
    %290 = arith.mulf %289, %289 : vector<32x256xf32>
    %291 = arith.mulf %289, %290 : vector<32x256xf32>
    %cst_89 = arith.constant 4.471500e-02 : f32
    %292 = vector.broadcast %cst_89 : f32 to vector<32x256xf32>
    %293 = arith.mulf %292, %291 : vector<32x256xf32>
    %294 = arith.addf %289, %293 : vector<32x256xf32>
    %cst_90 = arith.constant 0.797884583 : f32
    %295 = vector.broadcast %cst_90 : f32 to vector<32x256xf32>
    %296 = arith.mulf %295, %294 : vector<32x256xf32>
    %297 = math.tanh %296 : vector<32x256xf32>
    %cst_91 = arith.constant 1.000000e+00 : f32
    %298 = vector.broadcast %cst_91 : f32 to vector<32x256xf32>
    %299 = arith.addf %298, %297 : vector<32x256xf32>
    %cst_92 = arith.constant 5.000000e-01 : f32
    %300 = vector.broadcast %cst_92 : f32 to vector<32x256xf32>
    %301 = arith.mulf %300, %299 : vector<32x256xf32>
    %302 = arith.mulf %289, %301 : vector<32x256xf32>
    %303 = arith.truncf %302 : vector<32x256xf32> to vector<32x256xbf16>
    %cst_93 = arith.constant dense<0.000000e+00> : vector<32x128xf32>
    %304 = tpu.matmul %303, %199, %cst_93 {dimension_numbers = #tpu.dot_dimension_numbers<[1], [0], [0], [1], [0, 0, 1, 1], [], []>} : vector<32x256xbf16>, vector<256x128xbf16>, vector<32x128xf32> -> vector<32x128xf32>
    %305 = vector.broadcast %191 : vector<1x128xf32> to vector<32x128xf32>
    %306 = arith.addf %304, %305 : vector<32x128xf32>
    %307 = arith.addf %285, %306 : vector<32x128xf32>
    %cst_94 = arith.constant dense<0.000000e+00> : vector<32xf32>
    %308 = vector.multi_reduction <add>, %307, %cst_94 [1] : vector<32x128xf32> to vector<32xf32>
    %309 = vector.shape_cast %308 : vector<32xf32> to vector<32x1xf32>
    %cst_95 = arith.constant 1.280000e+02 : f32
    %310 = vector.broadcast %cst_95 : f32 to vector<32x1xf32>
    %311 = arith.divf %309, %310 : vector<32x1xf32>
    %312 = vector.broadcast %311 : vector<32x1xf32> to vector<32x128xf32>
    %313 = arith.subf %307, %312 : vector<32x128xf32>
    %314 = arith.mulf %313, %313 : vector<32x128xf32>
    %cst_96 = arith.constant dense<0.000000e+00> : vector<32xf32>
    %315 = vector.multi_reduction <add>, %314, %cst_96 [1] : vector<32x128xf32> to vector<32xf32>
    %316 = vector.shape_cast %315 : vector<32xf32> to vector<32x1xf32>
    %cst_97 = arith.constant 1.280000e+02 : f32
    %317 = vector.broadcast %cst_97 : f32 to vector<32x1xf32>
    %318 = arith.divf %316, %317 : vector<32x1xf32>
    %319 = vector.broadcast %311 : vector<32x1xf32> to vector<32x128xf32>
    %320 = arith.subf %307, %319 : vector<32x128xf32>
    %cst_98 = arith.constant 9.99999996E-13 : f32
    %321 = vector.broadcast %cst_98 : f32 to vector<32x1xf32>
    %322 = arith.addf %318, %321 : vector<32x1xf32>
    %323 = math.rsqrt %322 : vector<32x1xf32>
    %324 = vector.broadcast %323 : vector<32x1xf32> to vector<32x128xf32>
    %325 = arith.mulf %320, %324 : vector<32x128xf32>
    %326 = vector.broadcast %192 : vector<1x128xf32> to vector<32x128xf32>
    %327 = arith.mulf %325, %326 : vector<32x128xf32>
    %328 = vector.broadcast %193 : vector<1x128xf32> to vector<32x128xf32>
    %329 = arith.addf %327, %328 : vector<32x128xf32>
    %c0_99 = arith.constant 0 : index
    %c0_100 = arith.constant 0 : index
    %330 = vector.load %arg11[%c0_99, %c0_100] : memref<32x128xf32, #tpu.memory_space<vmem>>, vector<32x128xf32>
    tpu.vector_store %arg11[%c0_99, %c0_100], %329 {strides = array<i32>} : memref<32x128xf32, #tpu.memory_space<vmem>>, vector<32x128xf32>,
    return
  }
  func.func @transform_0(%arg0: i32) -> (i32, i32) {
    %c0_i32 = arith.constant 0 : i32
    %c0_i32_0 = arith.constant 0 : i32
    %c0_i32_1 = arith.constant 0 : i32
    return %c0_i32, %c0_i32_0 : i32, i32
  }
  func.func @transform_1(%arg0: i32) -> (i32, i32, i32) {
    %c0_i32 = arith.constant 0 : i32
    %c0_i32_0 = arith.constant 0 : i32
    %c0_i32_1 = arith.constant 0 : i32
    %c0_i32_2 = arith.constant 0 : i32
    return %c0_i32, %c0_i32_0, %c0_i32_1 : i32, i32, i32
  }
  func.func @transform_2(%arg0: i32) -> (i32, i32) {
    %c0_i32 = arith.constant 0 : i32
    %c0_i32_0 = arith.constant 0 : i32
    %c0_i32_1 = arith.constant 0 : i32
    return %c0_i32, %c0_i32_0 : i32, i32
  }
  func.func @transform_3(%arg0: i32) -> (i32, i32, i32) {
    %c0_i32 = arith.constant 0 : i32
    %c0_i32_0 = arith.constant 0 : i32
    %c0_i32_1 = arith.constant 0 : i32
    %c0_i32_2 = arith.constant 0 : i32
    return %c0_i32, %c0_i32_0, %c0_i32_1 : i32, i32, i32
  }
  func.func @transform_4(%arg0: i32) -> (i32, i32, i32) {
    %c0_i32 = arith.constant 0 : i32
    %c0_i32_0 = arith.constant 0 : i32
    %c0_i32_1 = arith.constant 0 : i32
    %c0_i32_2 = arith.constant 0 : i32
    return %c0_i32, %c0_i32_0, %c0_i32_1 : i32, i32, i32
  }
  func.func @transform_5(%arg0: i32) -> (i32, i32, i32) {
    %c0_i32 = arith.constant 0 : i32
    %c0_i32_0 = arith.constant 0 : i32
    %c0_i32_1 = arith.constant 0 : i32
    %c0_i32_2 = arith.constant 0 : i32
    return %c0_i32, %c0_i32_0, %c0_i32_1 : i32, i32, i32
  }
  func.func @transform_6(%arg0: i32) -> (i32, i32, i32) {
    %c0_i32 = arith.constant 0 : i32
    %c0_i32_0 = arith.constant 0 : i32
    %c0_i32_1 = arith.constant 0 : i32
    %c0_i32_2 = arith.constant 0 : i32
    return %c0_i32, %c0_i32_0, %c0_i32_1 : i32, i32, i32
  }
  func.func @transform_7(%arg0: i32) -> (i32, i32, i32) {
    %c0_i32 = arith.constant 0 : i32
    %c0_i32_0 = arith.constant 0 : i32
    %c0_i32_1 = arith.constant 0 : i32
    %c0_i32_2 = arith.constant 0 : i32
    return %c0_i32, %c0_i32_0, %c0_i32_1 : i32, i32, i32
  }
  func.func @transform_8(%arg0: i32) -> (i32, i32, i32) {
    %c0_i32 = arith.constant 0 : i32
    %c0_i32_0 = arith.constant 0 : i32
    %c0_i32_1 = arith.constant 0 : i32
    %c0_i32_2 = arith.constant 0 : i32
    return %c0_i32, %c0_i32_0, %c0_i32_1 : i32, i32, i32
  }
  func.func @transform_9(%arg0: i32) -> (i32, i32, i32) {
    %c0_i32 = arith.constant 0 : i32
    %c0_i32_0 = arith.constant 0 : i32
    %c0_i32_1 = arith.constant 0 : i32
    %c0_i32_2 = arith.constant 0 : i32
    return %c0_i32, %c0_i32_0, %c0_i32_1 : i32, i32, i32
  }
  func.func @transform_10(%arg0: i32) -> (i32, i32) {
    %c0_i32 = arith.constant 0 : i32
    %c0_i32_0 = arith.constant 0 : i32
    %c0_i32_1 = arith.constant 0 : i32
    return %c0_i32, %c0_i32_0 : i32, i32
  }
}

</mosaic_0001>

<llo_original>
// kernel: encoder_bert_forward.1
$region0: #{encoder_bert_forward.1}
  #allocation0 [shape = 'u32[]', space=smem, size = 0x4, offset = 0x4, fixed_abs, tag = 'smem constant byte address 0x4 - core index']
  #allocation1 [shape = 'u32[144,128]{1,0:T(1,128)}', space=vmem, size = 0x12000, scoped, tag = 'internal scratch']
  %s0 = inlined_call_operand.vmem [shape: f32[32,128], index: 0, kind: input, shape index: {}]
  %s1 = inlined_call_operand.vmem [shape: f32[2,1,16], index: 1, kind: input, shape index: {}]
  %s2 = inlined_call_operand.vmem [shape: f32[2,128], index: 2, kind: input, shape index: {}]
  %s3 = inlined_call_operand.vmem [shape: bf16[2,128,384], index: 3, kind: input, shape index: {}]
  %s4 = inlined_call_operand.vmem [shape: f32[2,1,384], index: 4, kind: input, shape index: {}]
  %s5 = inlined_call_operand.vmem [shape: bf16[2,128,128], index: 5, kind: input, shape index: {}]
  %s6 = inlined_call_operand.vmem [shape: f32[2,6,128], index: 6, kind: input, shape index: {}]
  %s7 = inlined_call_operand.vmem [shape: bf16[2,128,256], index: 7, kind: input, shape index: {}]
  %s8 = inlined_call_operand.vmem [shape: f32[2,1,256], index: 8, kind: input, shape index: {}]
  %s9 = inlined_call_operand.vmem [shape: bf16[2,256,128], index: 9, kind: input, shape index: {}]
  %s10 = inlined_call_operand.hbm [shape: f32[32,128], index: 10, kind: output, shape index: {}]
  %s11 = sld [smem:[#allocation0]]
  $region50: #{encoder_bert_forward.1} parent=0
    _
  %s13 = ssub.s32 1, %s11
  %s14 = scalar_select 0, %s13, %s11
  $region1: #{encoder_bert_forward.1} parent=0
    #allocation2 [shape = 'u8[16384]{0}', space=vmem, size = 0x4000, scoped, tag = 'output window, operand 0, single buffered']
    #allocation3 [shape = 's32[1]{0}', space=sflag, size = 0x4, scoped, tag = 'scoped memory for encoder_bert_forward.1']
    %15 = vsyncpa [#allocation3], 0
    // Predicated region
    $region2: #{encoder_bert_forward.1} parent=1 // pred_check
      _
    $region3: #{encoder_bert_forward.1} parent=1 // pred_check_branch
      %17 = sbr.rel (0) target = $region5
    $region4: #{encoder_bert_forward.1} parent=1 // pred_region
      _
    $region5: #{encoder_bert_forward.1} parent=1 // pred_fallthru
      _
    // Predicated region
    $region6: #{encoder_bert_forward.1} parent=1 // pred_check
      _
    $region7: #{encoder_bert_forward.1} parent=1 // pred_check_branch
      %19 = sbr.rel (0) target = $region9
    $region8: #{encoder_bert_forward.1} parent=1 // pred_region
      _
    $region9: #{encoder_bert_forward.1} parent=1 // pred_fallthru
      _
    // Predicated region
    $region10: #{encoder_bert_forward.1} parent=1 // pred_check
      _
    $region11: #{encoder_bert_forward.1} parent=1 // pred_check_branch
      %21 = sbr.rel (0) target = $region13
    $region12: #{encoder_bert_forward.1} parent=1 // pred_region
      _
    $region13: #{encoder_bert_forward.1} parent=1 // pred_fallthru
      _
    // Predicated region
    $region14: #{encoder_bert_forward.1} parent=1 // pred_check
      _
    $region15: #{encoder_bert_forward.1} parent=1 // pred_check_branch
      %23 = sbr.rel (0) target = $region17
    $region16: #{encoder_bert_forward.1} parent=1 // pred_region
      _
    $region17: #{encoder_bert_forward.1} parent=1 // pred_fallthru
      _
    // Predicated region
    $region18: #{encoder_bert_forward.1} parent=1 // pred_check
      _
    $region19: #{encoder_bert_forward.1} parent=1 // pred_check_branch
      %25 = sbr.rel (0) target = $region21
    $region20: #{encoder_bert_forward.1} parent=1 // pred_region
      _
    $region21: #{encoder_bert_forward.1} parent=1 // pred_fallthru
      _
    // Predicated region
    $region22: #{encoder_bert_forward.1} parent=1 // pred_check
      _
    $region23: #{encoder_bert_forward.1} parent=1 // pred_check_branch
      %27 = sbr.rel (0) target = $region25
    $region24: #{encoder_bert_forward.1} parent=1 // pred_region
      _
    $region25: #{encoder_bert_forward.1} parent=1 // pred_fallthru
      _
    // Predicated region
    $region26: #{encoder_bert_forward.1} parent=1 // pred_check
      _
    $region27: #{encoder_bert_forward.1} parent=1 // pred_check_branch
      %29 = sbr.rel (0) target = $region29
    $region28: #{encoder_bert_forward.1} parent=1 // pred_region
      _
    $region29: #{encoder_bert_forward.1} parent=1 // pred_fallthru
      _
    // Predicated region
    $region30: #{encoder_bert_forward.1} parent=1 // pred_check
      _
    $region31: #{encoder_bert_forward.1} parent=1 // pred_check_branch
      %31 = sbr.rel (0) target = $region33
    $region32: #{encoder_bert_forward.1} parent=1 // pred_region
      _
    $region33: #{encoder_bert_forward.1} parent=1 // pred_fallthru
      _
    // Predicated region
    $region34: #{encoder_bert_forward.1} parent=1 // pred_check
      _
    $region35: #{encoder_bert_forward.1} parent=1 // pred_check_branch
      %33 = sbr.rel (0) target = $region37
    $region36: #{encoder_bert_forward.1} parent=1 // pred_region
      _
    $region37: #{encoder_bert_forward.1} parent=1 // pred_fallthru
      _
    // Predicated region
    $region38: #{encoder_bert_forward.1} parent=1 // pred_check
      _
    $region39: #{encoder_bert_forward.1} parent=1 // pred_check_branch
      %35 = sbr.rel (0) target = $region41
    $region40: #{encoder_bert_forward.1} parent=1 // pred_region
      _
    $region41: #{encoder_bert_forward.1} parent=1 // pred_fallthru
      _
    %v37 = vld [vmem:[%s0] sm:$0xff]
    %v38 = vld [vmem:[%s0 + $0x8] sm:$0xff]
    %v39 = vld [vmem:[%s0 + $0x10] sm:$0xff]
    %v40 = vld [vmem:[%s0 + $0x18] sm:$0xff]
    %v41 = vld [vmem:[%s2] sm:$0x1]
    %v42 = vld [vmem:[%s2 + $0x1] sm:$0x1]
    %43 = vadd.xlane.f32.xlu0 %v37
    %v44 = vpop.xlane.xlu0 %43
    %45 = vadd.xlane.f32.xlu0 %v38
    %v46 = vpop.xlane.xlu0 %45
    %47 = vadd.xlane.f32.xlu0 %v39
    %v48 = vpop.xlane.xlu0 %47
    %49 = vadd.xlane.f32.xlu0 %v40
    %v50 = vpop.xlane.xlu0 %49
    %v51 = vrcp.pop 128.0
    %v52 = vmul.f32 %v44, %v51
    %v53 = vmul.f32 %v46, %v51
    %v54 = vmul.f32 %v48, %v51
    %v55 = vmul.f32 %v50, %v51
    %v56 = vsub.f32 %v37, %v52
    %v57 = vsub.f32 %v38, %v53
    %v58 = vsub.f32 %v39, %v54
    %v59 = vsub.f32 %v40, %v55
    %v60 = vmul.f32 %v56, %v56
    %v61 = vmul.f32 %v57, %v57
    %v62 = vmul.f32 %v58, %v58
    %v63 = vmul.f32 %v59, %v59
    %64 = vadd.xlane.f32.xlu0 %v60
    %v65 = vpop.xlane.xlu0 %64
    %66 = vadd.xlane.f32.xlu0 %v61
    %v67 = vpop.xlane.xlu0 %66
    %68 = vadd.xlane.f32.xlu0 %v62
    %v69 = vpop.xlane.xlu0 %68
    %70 = vadd.xlane.f32.xlu0 %v63
    %v71 = vpop.xlane.xlu0 %70
    %v72 = vmul.f32 %v65, %v51
    %v73 = vmul.f32 %v67, %v51
    %v74 = vmul.f32 %v69, %v51
    %v75 = vmul.f32 %v71, %v51
    %v76 = vadd.f32 %v72, 1e-12
    %v77 = vadd.f32 %v73, 1e-12
    %v78 = vadd.f32 %v74, 1e-12
    %v79 = vadd.f32 %v75, 1e-12
    %v80 = vrsqrt.pop %v76
    %v81 = vrsqrt.pop %v77
    %v82 = vrsqrt.pop %v78
    %v83 = vrsqrt.pop %v79
    %v84 = vmul.f32 %v56, %v80
    %v85 = vmul.f32 %v57, %v81
    %v86 = vmul.f32 %v58, %v82
    %v87 = vmul.f32 %v59, %v83
    %v88 = vlaneseq
    %v89 = vshrl.u32 %v88, 7
    %v90 = vsub.s32 0, %v89
    %v91 = vrot.slane %v41, %v90
    %v92 = vmul.f32 %v84, %v91
    %v93 = vmul.f32 %v85, %v91
    %v94 = vmul.f32 %v86, %v91
    %v95 = vmul.f32 %v87, %v91
    %v96 = vlaneseq
    %v97 = vshrl.u32 %v96, 7
    %v98 = vsub.s32 0, %v97
    %v99 = vrot.slane %v42, %v98
    %v100 = vadd.f32 %v92, %v99
    %v101 = vadd.f32 %v93, %v99
    %v102 = vadd.f32 %v94, %v99
    %v103 = vadd.f32 %v95, %v99
    %v104 = vld [vmem:[%s1] sm:$0x1]
    %v105 = vld [vmem:[%s1 + $0x1] sm:$0x1]
    %v106 = vld [vmem:[%s3] sm:$0xff]
    %v107 = vld [vmem:[%s3 + $0x8] sm:$0xf]
    %v108 = vld [vmem:[%s3 + $0xc] sm:$0xff]
    %v109 = vld [vmem:[%s3 + $0x14] sm:$0xf]
    %v110 = vld [vmem:[%s3 + $0x18] sm:$0xff]
    %v111 = vld [vmem:[%s3 + $0x20] sm:$0xf]
    %v112 = vld [vmem:[%s3 + $0x24] sm:$0xff]
    %v113 = vld [vmem:[%s3 + $0x2c] sm:$0xf]
    %v114 = vld [vmem:[%s3 + $0x30] sm:$0xff]
    %v115 = vld [vmem:[%s3 + $0x38] sm:$0xf]
    %v116 = vld [vmem:[%s3 + $0x3c] sm:$0xff]
    %v117 = vld [vmem:[%s3 + $0x44] sm:$0xf]
    %v118 = vld [vmem:[%s3 + $0x48] sm:$0xff]
    %v119 = vld [vmem:[%s3 + $0x50] sm:$0xf]
    %v120 = vld [vmem:[%s3 + $0x54] sm:$0xff]
    %v121 = vld [vmem:[%s3 + $0x5c] sm:$0xf]
    %v122 = vld [vmem:[%s3 + $0x60] sm:$0xff]
    %v123 = vld [vmem:[%s3 + $0x68] sm:$0xf]
    %v124 = vld [vmem:[%s3 + $0x6c] sm:$0xff]
    %v125 = vld [vmem:[%s3 + $0x74] sm:$0xf]
    %v126 = vld [vmem:[%s3 + $0x78] sm:$0xff]
    %v127 = vld [vmem:[%s3 + $0x80] sm:$0xf]
    %v128 = vld [vmem:[%s3 + $0x84] sm:$0xff]
    %v129 = vld [vmem:[%s3 + $0x8c] sm:$0xf]
    %v130 = vld [vmem:[%s3 + $0x90] sm:$0xff]
    %v131 = vld [vmem:[%s3 + $0x98] sm:$0xf]
    %v132 = vld [vmem:[%s3 + $0x9c] sm:$0xff]
    %v133 = vld [vmem:[%s3 + $0xa4] sm:$0xf]
    %v134 = vld [vmem:[%s3 + $0xa8] sm:$0xff]
    %v135 = vld [vmem:[%s3 + $0xb0] sm:$0xf]
    %v136 = vld [vmem:[%s3 + $0xb4] sm:$0xff]
    %v137 = vld [vmem:[%s3 + $0xbc] sm:$0xf]
    %v138 = vld [vmem:[%s4] sm:$0x7]
    %v139 = vld [vmem:[%s5] sm:$0xf]
    %v140 = vld [vmem:[%s5 + $0x4] sm:$0xf]
    %v141 = vld [vmem:[%s5 + $0x8] sm:$0xf]
    %v142 = vld [vmem:[%s5 + $0xc] sm:$0xf]
    %v143 = vld [vmem:[%s5 + $0x10] sm:$0xf]
    %v144 = vld [vmem:[%s5 + $0x14] sm:$0xf]
    %v145 = vld [vmem:[%s5 + $0x18] sm:$0xf]
    %v146 = vld [vmem:[%s5 + $0x1c] sm:$0xf]
    %v147 = vld [vmem:[%s5 + $0x20] sm:$0xf]
    %v148 = vld [vmem:[%s5 + $0x24] sm:$0xf]
    %v149 = vld [vmem:[%s5 + $0x28] sm:$0xf]
    %v150 = vld [vmem:[%s5 + $0x2c] sm:$0xf]
    %v151 = vld [vmem:[%s5 + $0x30] sm:$0xf]
    %v152 = vld [vmem:[%s5 + $0x34] sm:$0xf]
    %v153 = vld [vmem:[%s5 + $0x38] sm:$0xf]
    %v154 = vld [vmem:[%s5 + $0x3c] sm:$0xf]
    %v155 = vld [vmem:[%s6] sm:$0x3f]
    %v156 = vld [vmem:[%s7] sm:$0xff]
    %v157 = vld [vmem:[%s7 + $0x8] sm:$0xff]
    %v158 = vld [vmem:[%s7 + $0x10] sm:$0xff]
    %v159 = vld [vmem:[%s7 + $0x18] sm:$0xff]
    %v160 = vld [vmem:[%s7 + $0x20] sm:$0xff]
    %v161 = vld [vmem:[%s7 + $0x28] sm:$0xff]
    %v162 = vld [vmem:[%s7 + $0x30] sm:$0xff]
    %v163 = vld [vmem:[%s7 + $0x38] sm:$0xff]
    %v164 = vld [vmem:[%s7 + $0x40] sm:$0xff]
    %v165 = vld [vmem:[%s7 + $0x48] sm:$0xff]
    %v166 = vld [vmem:[%s7 + $0x50] sm:$0xff]
    %v167 = vld [vmem:[%s7 + $0x58] sm:$0xff]
    %v168 = vld [vmem:[%s7 + $0x60] sm:$0xff]
    %v169 = vld [vmem:[%s7 + $0x68] sm:$0xff]
    %v170 = vld [vmem:[%s7 + $0x70] sm:$0xff]
    %v171 = vld [vmem:[%s7 + $0x78] sm:$0xff]
    %v172 = vld [vmem:[%s8] sm:$0x3]
    %v173 = vld [vmem:[%s9] sm:$0xf]
    %v174 = vld [vmem:[%s9 + $0x4] sm:$0xf]
    %v175 = vld [vmem:[%s9 + $0x8] sm:$0xf]
    %v176 = vld [vmem:[%s9 + $0xc] sm:$0xf]
    %v177 = vld [vmem:[%s9 + $0x10] sm:$0xf]
    %v178 = vld [vmem:[%s9 + $0x14] sm:$0xf]
    %v179 = vld [vmem:[%s9 + $0x18] sm:$0xf]
    %v180 = vld [vmem:[%s9 + $0x1c] sm:$0xf]
    %v181 = vld [vmem:[%s9 + $0x20] sm:$0xf]
    %v182 = vld [vmem:[%s9 + $0x24] sm:$0xf]
    %v183 = vld [vmem:[%s9 + $0x28] sm:$0xf]
    %v184 = vld [vmem:[%s9 + $0x2c] sm:$0xf]
    %v185 = vld [vmem:[%s9 + $0x30] sm:$0xf]
    %v186 = vld [vmem:[%s9 + $0x34] sm:$0xf]
    %v187 = vld [vmem:[%s9 + $0x38] sm:$0xf]
    %v188 = vld [vmem:[%s9 + $0x3c] sm:$0xf]
    %v189 = vld [vmem:[%s9 + $0x40] sm:$0xf]
    %v190 = vld [vmem:[%s9 + $0x44] sm:$0xf]
    %v191 = vld [vmem:[%s9 + $0x48] sm:$0xf]
    %v192 = vld [vmem:[%s9 + $0x4c] sm:$0xf]
    %v193 = vld [vmem:[%s9 + $0x50] sm:$0xf]
    %v194 = vld [vmem:[%s9 + $0x54] sm:$0xf]
    %v195 = vld [vmem:[%s9 + $0x58] sm:$0xf]
    %v196 = vld [vmem:[%s9 + $0x5c] sm:$0xf]
    %v197 = vld [vmem:[%s9 + $0x60] sm:$0xf]
    %v198 = vld [vmem:[%s9 + $0x64] sm:$0xf]
    %v199 = vld [vmem:[%s9 + $0x68] sm:$0xf]
    %v200 = vld [vmem:[%s9 + $0x6c] sm:$0xf]
    %v201 = vld [vmem:[%s9 + $0x70] sm:$0xf]
    %v202 = vld [vmem:[%s9 + $0x74] sm:$0xf]
    %v203 = vld [vmem:[%s9 + $0x78] sm:$0xf]
    %v204 = vld [vmem:[%s9 + $0x7c] sm:$0xf]
    %v205 = vpack.c.bf16 %v101, %v100
    %v206 = vpack.c.bf16 %v103, %v102
    %v208 = vlaneseq
    %v209 = vshrl.u32 %v208, 7
    %v210 = vsub.s32 0, %v209
    %v211 = vrot.slane %v138, %v210
    %v212 = vlaneseq
    %v213 = vshrl.u32 %v212, 7
    %v214 = vsub.s32 1, %v213
    %v215 = vrot.slane %v138, %v214
    %v216 = vlaneseq
    %v217 = vshrl.u32 %v216, 7
    %v218 = vsub.s32 2, %v217
    %v219 = vrot.slane %v138, %v218
    %v255 = vunpack.c.l.b16 %v106
    %v256 = vunpack.c.h.b16 %v106
    %v257 = vunpack.c.l.b16 %v107
    %v258 = vunpack.c.l.b16 %v108
    %v259 = vunpack.c.h.b16 %v108
    %v260 = vunpack.c.l.b16 %v109
    %v261 = vunpack.c.l.b16 %v110
    %v262 = vunpack.c.h.b16 %v110
    %v263 = vunpack.c.l.b16 %v111
    %v264 = vunpack.c.l.b16 %v112
    %v265 = vunpack.c.h.b16 %v112
    %v266 = vunpack.c.l.b16 %v113
    %v267 = vunpack.c.l.b16 %v114
    %v268 = vunpack.c.h.b16 %v114
    %v269 = vunpack.c.l.b16 %v115
    %v270 = vunpack.c.l.b16 %v116
    %v271 = vunpack.c.h.b16 %v116
    %v272 = vunpack.c.l.b16 %v117
    %v273 = vunpack.c.l.b16 %v118
    %v274 = vunpack.c.h.b16 %v118
    %v275 = vunpack.c.l.b16 %v119
    %v276 = vunpack.c.l.b16 %v120
    %v277 = vunpack.c.h.b16 %v120
    %v278 = vunpack.c.l.b16 %v121
    %v279 = vunpack.c.l.b16 %v122
    %v280 = vunpack.c.h.b16 %v122
    %v281 = vunpack.c.l.b16 %v123
    %v282 = vunpack.c.l.b16 %v124
    %v283 = vunpack.c.h.b16 %v124
    %v284 = vunpack.c.l.b16 %v125
    %v285 = vunpack.c.l.b16 %v126
    %v286 = vunpack.c.h.b16 %v126
    %v287 = vunpack.c.l.b16 %v127
    %v288 = vunpack.c.l.b16 %v128
    %v289 = vunpack.c.h.b16 %v128
    %v290 = vunpack.c.l.b16 %v129
    %v291 = vunpack.c.l.b16 %v130
    %v292 = vunpack.c.h.b16 %v130
    %v293 = vunpack.c.l.b16 %v131
    %v294 = vunpack.c.l.b16 %v132
    %v295 = vunpack.c.h.b16 %v132
    %v296 = vunpack.c.l.b16 %v133
    %v297 = vunpack.c.l.b16 %v134
    %v298 = vunpack.c.h.b16 %v134
    %v299 = vunpack.c.l.b16 %v135
    %v300 = vunpack.c.l.b16 %v136
    %v301 = vunpack.c.h.b16 %v136
    %v302 = vunpack.c.l.b16 %v137
    %v303 = vpack.c.b16 %v258, %v255
    %v304 = vpack.c.b16 %v259, %v256
    %v305 = vpack.c.b16 %v260, %v257
    %v306 = vpack.c.b16 %v264, %v261
    %v307 = vpack.c.b16 %v265, %v262
    %v308 = vpack.c.b16 %v266, %v263
    %v309 = vpack.c.b16 %v270, %v267
    %v310 = vpack.c.b16 %v271, %v268
    %v311 = vpack.c.b16 %v272, %v269
    %v312 = vpack.c.b16 %v276, %v273
    %v313 = vpack.c.b16 %v277, %v274
    %v314 = vpack.c.b16 %v278, %v275
    %v315 = vpack.c.b16 %v282, %v279
    %v316 = vpack.c.b16 %v283, %v280
    %v317 = vpack.c.b16 %v284, %v281
    %v318 = vpack.c.b16 %v288, %v285
    %v319 = vpack.c.b16 %v289, %v286
    %v320 = vpack.c.b16 %v290, %v287
    %v321 = vpack.c.b16 %v294, %v291
    %v322 = vpack.c.b16 %v295, %v292
    %v323 = vpack.c.b16 %v296, %v293
    %v324 = vpack.c.b16 %v300, %v297
    %v325 = vpack.c.b16 %v301, %v298
    %v326 = vpack.c.b16 %v302, %v299
    %351 = vmatprep.subr.bf16.mxu0 %v304
    %352 = vmatpush1.bf16.msra.mxu0 %v303
    %353 = vmatprep.subr.bf16.mxu0 %v307
    %354 = vmatpush1.bf16.msra.mxu0 %v306
    %355 = vmatprep.subr.bf16.mxu0 %v310
    %356 = vmatpush1.bf16.msra.mxu0 %v309
    %357 = vmatprep.subr.bf16.mxu0 %v313
    %358 = vmatpush1.bf16.msra.mxu0 %v312
    %359 = vmatprep.subr.bf16.mxu0 %v316
    %360 = vmatpush1.bf16.msra.mxu0 %v315
    %361 = vmatprep.subr.bf16.mxu0 %v319
    %362 = vmatpush1.bf16.msra.mxu0 %v318
    %363 = vmatprep.subr.bf16.mxu0 %v322
    %364 = vmatpush1.bf16.msra.mxu0 %v321
    %365 = vmatprep.subr.bf16.mxu0 %v325
    %366 = vmatpush1.bf16.msra.mxu0 %v324
    %367 = vmatprep.subr.bf16.mxu0 0
    %368 = vmatpush1.bf16.msra.mxu0 0
    %369 = vmatprep.subr.bf16.mxu0 0
    %370 = vmatpush1.bf16.msra.mxu0 0
    %371 = vmatprep.subr.bf16.mxu0 0
    %372 = vmatpush1.bf16.msra.mxu0 0
    %373 = vmatprep.subr.bf16.mxu0 0
    %374 = vmatpush1.bf16.msra.mxu0 0
    %375 = vmatprep.subr.bf16.mxu0 0
    %376 = vmatpush1.bf16.msra.mxu0 0
    %377 = vmatprep.subr.bf16.mxu0 0
    %378 = vmatpush1.bf16.msra.mxu0 0
    %379 = vmatprep.subr.bf16.mxu0 0
    %380 = vmatpush1.bf16.msra.mxu0 0
    %381 = vmatprep.subr.bf16.mxu0 0
    %382 = vmatpush1.bf16.msra.mxu0 0
    %383 = vmatprep.mubr.bf16.mxu0 0
    %384 = vmatmul.mubr.bf16.gmra.mrb[0].mxu0 %v205
    %v385 = vpop.f32.mrb[0].mxu0
    %v386 = vadd.f32 %v211, %v385
    %v387 = vpop.f32.mrb[0].mxu0
    %v388 = vadd.f32 %v215, %v387
    %v389 = vpop.f32.mrb[0].mxu0
    %v390 = vadd.f32 %v211, %v389
    %v391 = vpop.f32.mrb[0].mxu0
    %v392 = vadd.f32 %v215, %v391
    %393 = vmatprep.mubr.bf16.mxu0 0
    %394 = vmatmul.mubr.bf16.gmra.mrb[0].mxu0 %v206
    %v395 = vpop.f32.mrb[0].mxu0
    %v396 = vadd.f32 %v211, %v395
    %v397 = vpop.f32.mrb[0].mxu0
    %v398 = vadd.f32 %v215, %v397
    %v399 = vpop.f32.mrb[0].mxu0
    %v400 = vadd.f32 %v211, %v399
    %v401 = vpop.f32.mrb[0].mxu0
    %v402 = vadd.f32 %v215, %v401
    %403 = vdwg.mxu0
    %404 = vmatprep.subr.bf16.mxu0 0
    %405 = vmatpush1.bf16.msra.mxu0 %v305
    %406 = vmatprep.subr.bf16.mxu0 0
    %407 = vmatpush1.bf16.msra.mxu0 %v308
    %408 = vmatprep.subr.bf16.mxu0 0
    %409 = vmatpush1.bf16.msra.mxu0 %v311
    %410 = vmatprep.subr.bf16.mxu0 0
    %411 = vmatpush1.bf16.msra.mxu0 %v314
    %412 = vmatprep.subr.bf16.mxu0 0
    %413 = vmatpush1.bf16.msra.mxu0 %v317
    %414 = vmatprep.subr.bf16.mxu0 0
    %415 = vmatpush1.bf16.msra.mxu0 %v320
    %416 = vmatprep.subr.bf16.mxu0 0
    %417 = vmatpush1.bf16.msra.mxu0 %v323
    %418 = vmatprep.subr.bf16.mxu0 0
    %419 = vmatpush1.bf16.msra.mxu0 %v326
    %420 = vmatprep.subr.bf16.mxu0 0
    %421 = vmatpush1.bf16.msra.mxu0 0
    %422 = vmatprep.subr.bf16.mxu0 0
    %423 = vmatpush1.bf16.msra.mxu0 0
    %424 = vmatprep.subr.bf16.mxu0 0
    %425 = vmatpush1.bf16.msra.mxu0 0
    %426 = vmatprep.subr.bf16.mxu0 0
    %427 = vmatpush1.bf16.msra.mxu0 0
    %428 = vmatprep.subr.bf16.mxu0 0
    %429 = vmatpush1.bf16.msra.mxu0 0
    %430 = vmatprep.subr.bf16.mxu0 0
    %431 = vmatpush1.bf16.msra.mxu0 0
    %432 = vmatprep.subr.bf16.mxu0 0
    %433 = vmatpush1.bf16.msra.mxu0 0
    %434 = vmatprep.subr.bf16.mxu0 0
    %435 = vmatpush1.bf16.msra.mxu0 0
    %436 = vmatprep.mubr.bf16.mxu0 0
    %437 = vmatmul.mubr.bf16.gmra.mrb[0].mxu0 %v205
    %v438 = vpop.f32.mrb[0].mxu0
    %v439 = vadd.f32 %v219, %v438
    %v440 = vpop.f32.mrb[0].mxu0
    %v441 = vpop.f32.mrb[0].mxu0
    %v442 = vadd.f32 %v219, %v441
    %v443 = vpop.f32.mrb[0].mxu0
    %444 = vmatprep.mubr.bf16.mxu0 0
    %445 = vmatmul.mubr.bf16.gmra.mrb[0].mxu0 %v206
    %v446 = vpop.f32.mrb[0].mxu0
    %v447 = vadd.f32 %v219, %v446
    %v448 = vpop.f32.mrb[0].mxu0
    %v449 = vpop.f32.mrb[0].mxu0
    %v450 = vadd.f32 %v219, %v449
    %v451 = vpop.f32.mrb[0].mxu0
    %452 = vdwg.mxu0
    %457 = vrot.lane.b32.xlu0 %v386, 96
    %v458 = vpop.permute.xlu0 %457
    %459 = vrot.lane.b32.xlu0 %v390, 96
    %v460 = vpop.permute.xlu0 %459
    %461 = vrot.lane.b32.xlu0 %v396, 96
    %v462 = vpop.permute.xlu0 %461
    %463 = vrot.lane.b32.xlu0 %v400, 96
    %v464 = vpop.permute.xlu0 %463
    %465 = vrot.lane.b32.xlu0 %v386, 64
    %v466 = vpop.permute.xlu0 %465
    %467 = vrot.lane.b32.xlu0 %v390, 64
    %v468 = vpop.permute.xlu0 %467
    %469 = vrot.lane.b32.xlu0 %v396, 64
    %v470 = vpop.permute.xlu0 %469
    %471 = vrot.lane.b32.xlu0 %v400, 64
    %v472 = vpop.permute.xlu0 %471
    %473 = vrot.lane.b32.xlu0 %v386, 32
    %v474 = vpop.permute.xlu0 %473
    %475 = vrot.lane.b32.xlu0 %v390, 32
    %v476 = vpop.permute.xlu0 %475
    %477 = vrot.lane.b32.xlu0 %v396, 32
    %v478 = vpop.permute.xlu0 %477
    %479 = vrot.lane.b32.xlu0 %v400, 32
    %v480 = vpop.permute.xlu0 %479
    %485 = vrot.lane.b32.xlu0 %v388, 96
    %v486 = vpop.permute.xlu0 %485
    %487 = vrot.lane.b32.xlu0 %v392, 96
    %v488 = vpop.permute.xlu0 %487
    %489 = vrot.lane.b32.xlu0 %v398, 96
    %v490 = vpop.permute.xlu0 %489
    %491 = vrot.lane.b32.xlu0 %v402, 96
    %v492 = vpop.permute.xlu0 %491
    %493 = vrot.lane.b32.xlu0 %v388, 64
    %v494 = vpop.permute.xlu0 %493
    %495 = vrot.lane.b32.xlu0 %v392, 64
    %v496 = vpop.permute.xlu0 %495
    %497 = vrot.lane.b32.xlu0 %v398, 64
    %v498 = vpop.permute.xlu0 %497
    %499 = vrot.lane.b32.xlu0 %v402, 64
    %v500 = vpop.permute.xlu0 %499
    %501 = vrot.lane.b32.xlu0 %v388, 32
    %v502 = vpop.permute.xlu0 %501
    %503 = vrot.lane.b32.xlu0 %v392, 32
    %v504 = vpop.permute.xlu0 %503
    %505 = vrot.lane.b32.xlu0 %v398, 32
    %v506 = vpop.permute.xlu0 %505
    %507 = vrot.lane.b32.xlu0 %v402, 32
    %v508 = vpop.permute.xlu0 %507
    %513 = vrot.lane.b32.xlu0 %v439, 96
    %v514 = vpop.permute.xlu0 %513
    %515 = vrot.lane.b32.xlu0 %v442, 96
    %v516 = vpop.permute.xlu0 %515
    %517 = vrot.lane.b32.xlu0 %v447, 96
    %v518 = vpop.permute.xlu0 %517
    %519 = vrot.lane.b32.xlu0 %v450, 96
    %v520 = vpop.permute.xlu0 %519
    %525 = vrot.lane.b32.xlu0 %v439, 64
    %v526 = vpop.permute.xlu0 %525
    %527 = vrot.lane.b32.xlu0 %v442, 64
    %v528 = vpop.permute.xlu0 %527
    %529 = vrot.lane.b32.xlu0 %v447, 64
    %v530 = vpop.permute.xlu0 %529
    %531 = vrot.lane.b32.xlu0 %v450, 64
    %v532 = vpop.permute.xlu0 %531
    %537 = vrot.lane.b32.xlu0 %v439, 32
    %v538 = vpop.permute.xlu0 %537
    %539 = vrot.lane.b32.xlu0 %v442, 32
    %v540 = vpop.permute.xlu0 %539
    %541 = vrot.lane.b32.xlu0 %v447, 32
    %v542 = vpop.permute.xlu0 %541
    %543 = vrot.lane.b32.xlu0 %v450, 32
    %v544 = vpop.permute.xlu0 %543
    %vm549 = vcmask 261120
    %v550 = vsel %vm549, %v386, 0
    %v552 = vsel %vm549, %v390, 0
    %v554 = vsel %vm549, %v388, 0
    %v556 = vsel %vm549, %v392, 0
    %558 = vmatprep.subr.mxu0 0.0
    %559 = vmatpush1.xpose.msra.mxu0 %v554
    %560 = vmatprep.subr.mxu0 0.0
    %561 = vmatpush1.xpose.msra.mxu0 %v556
    %562 = vmatprep.subr.mxu0 0.0
    %563 = vmatpush1.xpose.msra.mxu0 0.0
    %564 = vmatprep.subr.mxu0 0.0
    %565 = vmatpush1.xpose.msra.mxu0 0.0
    %566 = vmatprep.subr.mxu0 0.0
    %567 = vmatpush1.xpose.msra.mxu0 0.0
    %568 = vmatprep.subr.mxu0 0.0
    %569 = vmatpush1.xpose.msra.mxu0 0.0
    %570 = vmatprep.subr.mxu0 0.0
    %571 = vmatpush1.xpose.msra.mxu0 0.0
    %572 = vmatprep.subr.mxu0 0.0
    %573 = vmatpush1.xpose.msra.mxu0 0.0
    %574 = vmatprep.subr.mxu0 0.0
    %575 = vmatpush1.xpose.msra.mxu0 0.0
    %576 = vmatprep.subr.mxu0 0.0
    %577 = vmatpush1.xpose.msra.mxu0 0.0
    %578 = vmatprep.subr.mxu0 0.0
    %579 = vmatpush1.xpose.msra.mxu0 0.0
    %580 = vmatprep.subr.mxu0 0.0
    %581 = vmatpush1.xpose.msra.mxu0 0.0
    %582 = vmatprep.subr.mxu0 0.0
    %583 = vmatpush1.xpose.msra.mxu0 0.0
    %584 = vmatprep.subr.mxu0 0.0
    %585 = vmatpush1.xpose.msra.mxu0 0.0
    %586 = vmatprep.subr.mxu0 0.0
    %587 = vmatpush1.xpose.msra.mxu0 0.0
    %588 = vmatprep.subr.mxu0 0.0
    %589 = vmatpush1.xpose.msra.mxu0 0.0
    %590 = vmatprep.subr.mxu0 0.0
    %591 = vmatpush1.xpose.msra.mxu0 0.0
    %592 = vmatprep.subr.mxu0 0.0
    %593 = vmatpush1.xpose.msra.mxu0 0.0
    %594 = vmatprep.subr.mxu0 0.0
    %595 = vmatpush1.xpose.msra.mxu0 0.0
    %596 = vmatprep.subr.mxu0 0.0
    %597 = vmatpush1.xpose.msra.mxu0 0.0
    %598 = vmatprep.subr.mxu0 0.0
    %599 = vmatpush1.xpose.msra.mxu0 0.0
    %600 = vmatprep.subr.mxu0 0.0
    %601 = vmatpush1.xpose.msra.mxu0 0.0
    %602 = vmatprep.subr.mxu0 0.0
    %603 = vmatpush1.xpose.msra.mxu0 0.0
    %604 = vmatprep.subr.mxu0 0.0
    %605 = vmatpush1.xpose.msra.mxu0 0.0
    %606 = vmatprep.subr.mxu0 0.0
    %607 = vmatpush1.xpose.msra.mxu0 0.0
    %608 = vmatprep.subr.mxu0 0.0
    %609 = vmatpush1.xpose.msra.mxu0 0.0
    %610 = vmatprep.subr.mxu0 0.0
    %611 = vmatpush1.xpose.msra.mxu0 0.0
    %612 = vmatprep.subr.mxu0 0.0
    %613 = vmatpush1.xpose.msra.mxu0 0.0
    %614 = vmatprep.subr.mxu0 0.0
    %615 = vmatpush1.xpose.msra.mxu0 0.0
    %616 = vmatprep.subr.mxu0 0.0
    %617 = vmatpush1.xpose.msra.mxu0 0.0
    %618 = vmatprep.subr.mxu0 0.0
    %619 = vmatpush1.xpose.msra.mxu0 0.0
    %620 = vmatprep.subr.mxu0 0.0
    %621 = vmatpush1.xpose.msra.mxu0 0.0
    %622 = vmatprep.mubr.f32.mxu0 0.0
    %623 = vmatmul.mubr.f32.gmra.mrb[0].mxu0 %v550
    %v624 = vpop.f32.mrb[0].mxu0
    %v625 = vadd.f32 0.0, %v624
    %v626 = vpop.f32.mrb[0].mxu0
    %627 = vmatprep.mubr.f32.mxu0 0.0
    %628 = vmatmul.mubr.f32.gmra.mrb[0].mxu0 %v552
    %v629 = vpop.f32.mrb[0].mxu0
    %v630 = vadd.f32 0.0, %v629
    %v631 = vpop.f32.mrb[0].mxu0
    %632 = vdwg.mxu0
    %v633 = vsel %vm549, %v396, 0
    %v635 = vsel %vm549, %v400, 0
    %v637 = vsel %vm549, %v398, 0
    %v639 = vsel %vm549, %v402, 0
    %641 = vmatprep.subr.mxu0 0.0
    %642 = vmatpush1.xpose.msra.mxu0 %v637
    %643 = vmatprep.subr.mxu0 0.0
    %644 = vmatpush1.xpose.msra.mxu0 %v639
    %645 = vmatprep.subr.mxu0 0.0
    %646 = vmatpush1.xpose.msra.mxu0 0.0
    %647 = vmatprep.subr.mxu0 0.0
    %648 = vmatpush1.xpose.msra.mxu0 0.0
    %649 = vmatprep.subr.mxu0 0.0
    %650 = vmatpush1.xpose.msra.mxu0 0.0
    %651 = vmatprep.subr.mxu0 0.0
    %652 = vmatpush1.xpose.msra.mxu0 0.0
    %653 = vmatprep.subr.mxu0 0.0
    %654 = vmatpush1.xpose.msra.mxu0 0.0
    %655 = vmatprep.subr.mxu0 0.0
    %656 = vmatpush1.xpose.msra.mxu0 0.0
    %657 = vmatprep.subr.mxu0 0.0
    %658 = vmatpush1.xpose.msra.mxu0 0.0
    %659 = vmatprep.subr.mxu0 0.0
    %660 = vmatpush1.xpose.msra.mxu0 0.0
    %661 = vmatprep.subr.mxu0 0.0
    %662 = vmatpush1.xpose.msra.mxu0 0.0
    %663 = vmatprep.subr.mxu0 0.0
    %664 = vmatpush1.xpose.msra.mxu0 0.0
    %665 = vmatprep.subr.mxu0 0.0
    %666 = vmatpush1.xpose.msra.mxu0 0.0
    %667 = vmatprep.subr.mxu0 0.0
    %668 = vmatpush1.xpose.msra.mxu0 0.0
    %669 = vmatprep.subr.mxu0 0.0
    %670 = vmatpush1.xpose.msra.mxu0 0.0
    %671 = vmatprep.subr.mxu0 0.0
    %672 = vmatpush1.xpose.msra.mxu0 0.0
    %673 = vmatprep.subr.mxu0 0.0
    %674 = vmatpush1.xpose.msra.mxu0 0.0
    %675 = vmatprep.subr.mxu0 0.0
    %676 = vmatpush1.xpose.msra.mxu0 0.0
    %677 = vmatprep.subr.mxu0 0.0
    %678 = vmatpush1.xpose.msra.mxu0 0.0
    %679 = vmatprep.subr.mxu0 0.0
    %680 = vmatpush1.xpose.msra.mxu0 0.0
    %681 = vmatprep.subr.mxu0 0.0
    %682 = vmatpush1.xpose.msra.mxu0 0.0
    %683 = vmatprep.subr.mxu0 0.0
    %684 = vmatpush1.xpose.msra.mxu0 0.0
    %685 = vmatprep.subr.mxu0 0.0
    %686 = vmatpush1.xpose.msra.mxu0 0.0
    %687 = vmatprep.subr.mxu0 0.0
    %688 = vmatpush1.xpose.msra.mxu0 0.0
    %689 = vmatprep.subr.mxu0 0.0
    %690 = vmatpush1.xpose.msra.mxu0 0.0
    %691 = vmatprep.subr.mxu0 0.0
    %692 = vmatpush1.xpose.msra.mxu0 0.0
    %693 = vmatprep.subr.mxu0 0.0
    %694 = vmatpush1.xpose.msra.mxu0 0.0
    %695 = vmatprep.subr.mxu0 0.0
    %696 = vmatpush1.xpose.msra.mxu0 0.0
    %697 = vmatprep.subr.mxu0 0.0
    %698 = vmatpush1.xpose.msra.mxu0 0.0
    %699 = vmatprep.subr.mxu0 0.0
    %700 = vmatpush1.xpose.msra.mxu0 0.0
    %701 = vmatprep.subr.mxu0 0.0
    %702 = vmatpush1.xpose.msra.mxu0 0.0
    %703 = vmatprep.subr.mxu0 0.0
    %704 = vmatpush1.xpose.msra.mxu0 0.0
    %705 = vmatprep.mubr.f32.mxu0 0.0
    %706 = vmatmul.mubr.f32.gmra.mrb[0].mxu0 %v633
    %v707 = vpop.f32.mrb[0].mxu0
    %v708 = vadd.f32 0.0, %v707
    %v709 = vpop.f32.mrb[0].mxu0
    %710 = vmatprep.mubr.f32.mxu0 0.0
    %711 = vmatmul.mubr.f32.gmra.mrb[0].mxu0 %v635
    %v712 = vpop.f32.mrb[0].mxu0
    %v713 = vadd.f32 0.0, %v712
    %v714 = vpop.f32.mrb[0].mxu0
    %715 = vdwg.mxu0
    %v716 = vsel %vm549, %v458, 0
    %v718 = vsel %vm549, %v460, 0
    %v720 = vsel %vm549, %v486, 0
    %v722 = vsel %vm549, %v488, 0
    %724 = vmatprep.subr.mxu0 0.0
    %725 = vmatpush1.xpose.msra.mxu0 %v720
    %726 = vmatprep.subr.mxu0 0.0
    %727 = vmatpush1.xpose.msra.mxu0 %v722
    %728 = vmatprep.subr.mxu0 0.0
    %729 = vmatpush1.xpose.msra.mxu0 0.0
    %730 = vmatprep.subr.mxu0 0.0
    %731 = vmatpush1.xpose.msra.mxu0 0.0
    %732 = vmatprep.subr.mxu0 0.0
    %733 = vmatpush1.xpose.msra.mxu0 0.0
    %734 = vmatprep.subr.mxu0 0.0
    %735 = vmatpush1.xpose.msra.mxu0 0.0
    %736 = vmatprep.subr.mxu0 0.0
    %737 = vmatpush1.xpose.msra.mxu0 0.0
    %738 = vmatprep.subr.mxu0 0.0
    %739 = vmatpush1.xpose.msra.mxu0 0.0
    %740 = vmatprep.subr.mxu0 0.0
    %741 = vmatpush1.xpose.msra.mxu0 0.0
    %742 = vmatprep.subr.mxu0 0.0
    %743 = vmatpush1.xpose.msra.mxu0 0.0
    %744 = vmatprep.subr.mxu0 0.0
    %745 = vmatpush1.xpose.msra.mxu0 0.0
    %746 = vmatprep.subr.mxu0 0.0
    %747 = vmatpush1.xpose.msra.mxu0 0.0
    %748 = vmatprep.subr.mxu0 0.0
    %749 = vmatpush1.xpose.msra.mxu0 0.0
    %750 = vmatprep.subr.mxu0 0.0
    %751 = vmatpush1.xpose.msra.mxu0 0.0
    %752 = vmatprep.subr.mxu0 0.0
    %753 = vmatpush1.xpose.msra.mxu0 0.0
    %754 = vmatprep.subr.mxu0 0.0
    %755 = vmatpush1.xpose.msra.mxu0 0.0
    %756 = vmatprep.subr.mxu0 0.0
    %757 = vmatpush1.xpose.msra.mxu0 0.0
    %758 = vmatprep.subr.mxu0 0.0
    %759 = vmatpush1.xpose.msra.mxu0 0.0
    %760 = vmatprep.subr.mxu0 0.0
    %761 = vmatpush1.xpose.msra.mxu0 0.0
    %762 = vmatprep.subr.mxu0 0.0
    %763 = vmatpush1.xpose.msra.mxu0 0.0
    %764 = vmatprep.subr.mxu0 0.0
    %765 = vmatpush1.xpose.msra.mxu0 0.0
    %766 = vmatprep.subr.mxu0 0.0
    %767 = vmatpush1.xpose.msra.mxu0 0.0
    %768 = vmatprep.subr.mxu0 0.0
    %769 = vmatpush1.xpose.msra.mxu0 0.0
    %770 = vmatprep.subr.mxu0 0.0
    %771 = vmatpush1.xpose.msra.mxu0 0.0
    %772 = vmatprep.subr.mxu0 0.0
    %773 = vmatpush1.xpose.msra.mxu0 0.0
    %774 = vmatprep.subr.mxu0 0.0
    %775 = vmatpush1.xpose.msra.mxu0 0.0
    %776 = vmatprep.subr.mxu0 0.0
    %777 = vmatpush1.xpose.msra.mxu0 0.0
    %778 = vmatprep.subr.mxu0 0.0
    %779 = vmatpush1.xpose.msra.mxu0 0.0
    %780 = vmatprep.subr.mxu0 0.0
    %781 = vmatpush1.xpose.msra.mxu0 0.0
    %782 = vmatprep.subr.mxu0 0.0
    %783 = vmatpush1.xpose.msra.mxu0 0.0
    %784 = vmatprep.subr.mxu0 0.0
    %785 = vmatpush1.xpose.msra.mxu0 0.0
    %786 = vmatprep.subr.mxu0 0.0
    %787 = vmatpush1.xpose.msra.mxu0 0.0
    %788 = vmatprep.mubr.f32.mxu0 0.0
    %789 = vmatmul.mubr.f32.gmra.mrb[0].mxu0 %v716
    %v790 = vpop.f32.mrb[0].mxu0
    %v791 = vadd.f32 0.0, %v790
    %v792 = vpop.f32.mrb[0].mxu0
    %793 = vmatprep.mubr.f32.mxu0 0.0
    %794 = vmatmul.mubr.f32.gmra.mrb[0].mxu0 %v718
    %v795 = vpop.f32.mrb[0].mxu0
    %v796 = vadd.f32 0.0, %v795
    %v797 = vpop.f32.mrb[0].mxu0
    %798 = vdwg.mxu0
    %v799 = vsel %vm549, %v462, 0
    %v801 = vsel %vm549, %v464, 0
    %v803 = vsel %vm549, %v490, 0
    %v805 = vsel %vm549, %v492, 0
    %807 = vmatprep.subr.mxu0 0.0
    %808 = vmatpush1.xpose.msra.mxu0 %v803
    %809 = vmatprep.subr.mxu0 0.0
    %810 = vmatpush1.xpose.msra.mxu0 %v805
    %811 = vmatprep.subr.mxu0 0.0
    %812 = vmatpush1.xpose.msra.mxu0 0.0
    %813 = vmatprep.subr.mxu0 0.0
    %814 = vmatpush1.xpose.msra.mxu0 0.0
    %815 = vmatprep.subr.mxu0 0.0
    %816 = vmatpush1.xpose.msra.mxu0 0.0
    %817 = vmatprep.subr.mxu0 0.0
    %818 = vmatpush1.xpose.msra.mxu0 0.0
    %819 = vmatprep.subr.mxu0 0.0
    %820 = vmatpush1.xpose.msra.mxu0 0.0
    %821 = vmatprep.subr.mxu0 0.0
    %822 = vmatpush1.xpose.msra.mxu0 0.0
    %823 = vmatprep.subr.mxu0 0.0
    %824 = vmatpush1.xpose.msra.mxu0 0.0
    %825 = vmatprep.subr.mxu0 0.0
    %826 = vmatpush1.xpose.msra.mxu0 0.0
    %827 = vmatprep.subr.mxu0 0.0
    %828 = vmatpush1.xpose.msra.mxu0 0.0
    %829 = vmatprep.subr.mxu0 0.0
    %830 = vmatpush1.xpose.msra.mxu0 0.0
    %831 = vmatprep.subr.mxu0 0.0
    %832 = vmatpush1.xpose.msra.mxu0 0.0
    %833 = vmatprep.subr.mxu0 0.0
    %834 = vmatpush1.xpose.msra.mxu0 0.0
    %835 = vmatprep.subr.mxu0 0.0
    %836 = vmatpush1.xpose.msra.mxu0 0.0
    %837 = vmatprep.subr.mxu0 0.0
    %838 = vmatpush1.xpose.msra.mxu0 0.0
    %839 = vmatprep.subr.mxu0 0.0
    %840 = vmatpush1.xpose.msra.mxu0 0.0
    %841 = vmatprep.subr.mxu0 0.0
    %842 = vmatpush1.xpose.msra.mxu0 0.0
    %843 = vmatprep.subr.mxu0 0.0
    %844 = vmatpush1.xpose.msra.mxu0 0.0
    %845 = vmatprep.subr.mxu0 0.0
    %846 = vmatpush1.xpose.msra.mxu0 0.0
    %847 = vmatprep.subr.mxu0 0.0
    %848 = vmatpush1.xpose.msra.mxu0 0.0
    %849 = vmatprep.subr.mxu0 0.0
    %850 = vmatpush1.xpose.msra.mxu0 0.0
    %851 = vmatprep.subr.mxu0 0.0
    %852 = vmatpush1.xpose.msra.mxu0 0.0
    %853 = vmatprep.subr.mxu0 0.0
    %854 = vmatpush1.xpose.msra.mxu0 0.0
    %855 = vmatprep.subr.mxu0 0.0
    %856 = vmatpush1.xpose.msra.mxu0 0.0
    %857 = vmatprep.subr.mxu0 0.0
    %858 = vmatpush1.xpose.msra.mxu0 0.0
    %859 = vmatprep.subr.mxu0 0.0
    %860 = vmatpush1.xpose.msra.mxu0 0.0
    %861 = vmatprep.subr.mxu0 0.0
    %862 = vmatpush1.xpose.msra.mxu0 0.0
    %863 = vmatprep.subr.mxu0 0.0
    %864 = vmatpush1.xpose.msra.mxu0 0.0
    %865 = vmatprep.subr.mxu0 0.0
    %866 = vmatpush1.xpose.msra.mxu0 0.0
    %867 = vmatprep.subr.mxu0 0.0
    %868 = vmatpush1.xpose.msra.mxu0 0.0
    %869 = vmatprep.subr.mxu0 0.0
    %870 = vmatpush1.xpose.msra.mxu0 0.0
    %871 = vmatprep.mubr.f32.mxu0 0.0
    %872 = vmatmul.mubr.f32.gmra.mrb[0].mxu0 %v799
    %v873 = vpop.f32.mrb[0].mxu0
    %v874 = vadd.f32 0.0, %v873
    %v875 = vpop.f32.mrb[0].mxu0
    %876 = vmatprep.mubr.f32.mxu0 0.0
    %877 = vmatmul.mubr.f32.gmra.mrb[0].mxu0 %v801
    %v878 = vpop.f32.mrb[0].mxu0
    %v879 = vadd.f32 0.0, %v878
    %v880 = vpop.f32.mrb[0].mxu0
    %881 = vdwg.mxu0
    %v882 = vsel %vm549, %v466, 0
    %v884 = vsel %vm549, %v468, 0
    %v886 = vsel %vm549, %v494, 0
    %v888 = vsel %vm549, %v496, 0
    %890 = vmatprep.subr.mxu0 0.0
    %891 = vmatpush1.xpose.msra.mxu0 %v886
    %892 = vmatprep.subr.mxu0 0.0
    %893 = vmatpush1.xpose.msra.mxu0 %v888
    %894 = vmatprep.subr.mxu0 0.0
    %895 = vmatpush1.xpose.msra.mxu0 0.0
    %896 = vmatprep.subr.mxu0 0.0
    %897 = vmatpush1.xpose.msra.mxu0 0.0
    %898 = vmatprep.subr.mxu0 0.0
    %899 = vmatpush1.xpose.msra.mxu0 0.0
    %900 = vmatprep.subr.mxu0 0.0
    %901 = vmatpush1.xpose.msra.mxu0 0.0
    %902 = vmatprep.subr.mxu0 0.0
    %903 = vmatpush1.xpose.msra.mxu0 0.0
    %904 = vmatprep.subr.mxu0 0.0
    %905 = vmatpush1.xpose.msra.mxu0 0.0
    %906 = vmatprep.subr.mxu0 0.0
    %907 = vmatpush1.xpose.msra.mxu0 0.0
    %908 = vmatprep.subr.mxu0 0.0
    %909 = vmatpush1.xpose.msra.mxu0 0.0
    %910 = vmatprep.subr.mxu0 0.0
    %911 = vmatpush1.xpose.msra.mxu0 0.0
    %912 = vmatprep.subr.mxu0 0.0
    %913 = vmatpush1.xpose.msra.mxu0 0.0
    %914 = vmatprep.subr.mxu0 0.0
    %915 = vmatpush1.xpose.msra.mxu0 0.0
    %916 = vmatprep.subr.mxu0 0.0
    %917 = vmatpush1.xpose.msra.mxu0 0.0
    %918 = vmatprep.subr.mxu0 0.0
    %919 = vmatpush1.xpose.msra.mxu0 0.0
    %920 = vmatprep.subr.mxu0 0.0
    %921 = vmatpush1.xpose.msra.mxu0 0.0
    %922 = vmatprep.subr.mxu0 0.0
    %923 = vmatpush1.xpose.msra.mxu0 0.0
    %924 = vmatprep.subr.mxu0 0.0
    %925 = vmatpush1.xpose.msra.mxu0 0.0
    %926 = vmatprep.subr.mxu0 0.0
    %927 = vmatpush1.xpose.msra.mxu0 0.0
    %928 = vmatprep.subr.mxu0 0.0
    %929 = vmatpush1.xpose.msra.mxu0 0.0
    %930 = vmatprep.subr.mxu0 0.0
    %931 = vmatpush1.xpose.msra.mxu0 0.0
    %932 = vmatprep.subr.mxu0 0.0
    %933 = vmatpush1.xpose.msra.mxu0 0.0
    %934 = vmatprep.subr.mxu0 0.0
    %935 = vmatpush1.xpose.msra.mxu0 0.0
    %936 = vmatprep.subr.mxu0 0.0
    %937 = vmatpush1.xpose.msra.mxu0 0.0
    %938 = vmatprep.subr.mxu0 0.0
    %939 = vmatpush1.xpose.msra.mxu0 0.0
    %940 = vmatprep.subr.mxu0 0.0
    %941 = vmatpush1.xpose.msra.mxu0 0.0
    %942 = vmatprep.subr.mxu0 0.0
    %943 = vmatpush1.xpose.msra.mxu0 0.0
    %944 = vmatprep.subr.mxu0 0.0
    %945 = vmatpush1.xpose.msra.mxu0 0.0
    %946 = vmatprep.subr.mxu0 0.0
    %947 = vmatpush1.xpose.msra.mxu0 0.0
    %948 = vmatprep.subr.mxu0 0.0
    %949 = vmatpush1.xpose.msra.mxu0 0.0
    %950 = vmatprep.subr.mxu0 0.0
    %951 = vmatpush1.xpose.msra.mxu0 0.0
    %952 = vmatprep.subr.mxu0 0.0
    %953 = vmatpush1.xpose.msra.mxu0 0.0
    %954 = vmatprep.mubr.f32.mxu0 0.0
    %955 = vmatmul.mubr.f32.gmra.mrb[0].mxu0 %v882
    %v956 = vpop.f32.mrb[0].mxu0
    %v957 = vadd.f32 0.0, %v956
    %v958 = vpop.f32.mrb[0].mxu0
    %959 = vmatprep.mubr.f32.mxu0 0.0
    %960 = vmatmul.mubr.f32.gmra.mrb[0].mxu0 %v884
    %v961 = vpop.f32.mrb[0].mxu0
    %v962 = vadd.f32 0.0, %v961
    %v963 = vpop.f32.mrb[0].mxu0
    %964 = vdwg.mxu0
    %v965 = vsel %vm549, %v470, 0
    %v967 = vsel %vm549, %v472, 0
    %v969 = vsel %vm549, %v498, 0
    %v971 = vsel %vm549, %v500, 0
    %973 = vmatprep.subr.mxu0 0.0
    %974 = vmatpush1.xpose.msra.mxu0 %v969
    %975 = vmatprep.subr.mxu0 0.0
    %976 = vmatpush1.xpose.msra.mxu0 %v971
    %977 = vmatprep.subr.mxu0 0.0
    %978 = vmatpush1.xpose.msra.mxu0 0.0
    %979 = vmatprep.subr.mxu0 0.0
    %980 = vmatpush1.xpose.msra.mxu0 0.0
    %981 = vmatprep.subr.mxu0 0.0
    %982 = vmatpush1.xpose.msra.mxu0 0.0
    %983 = vmatprep.subr.mxu0 0.0
    %984 = vmatpush1.xpose.msra.mxu0 0.0
    %985 = vmatprep.subr.mxu0 0.0
    %986 = vmatpush1.xpose.msra.mxu0 0.0
    %987 = vmatprep.subr.mxu0 0.0
    %988 = vmatpush1.xpose.msra.mxu0 0.0
    %989 = vmatprep.subr.mxu0 0.0
    %990 = vmatpush1.xpose.msra.mxu0 0.0
    %991 = vmatprep.subr.mxu0 0.0
    %992 = vmatpush1.xpose.msra.mxu0 0.0
    %993 = vmatprep.subr.mxu0 0.0
    %994 = vmatpush1.xpose.msra.mxu0 0.0
    %995 = vmatprep.subr.mxu0 0.0
    %996 = vmatpush1.xpose.msra.mxu0 0.0
    %997 = vmatprep.subr.mxu0 0.0
    %998 = vmatpush1.xpose.msra.mxu0 0.0
    %999 = vmatprep.subr.mxu0 0.0
    %1000 = vmatpush1.xpose.msra.mxu0 0.0
    %1001 = vmatprep.subr.mxu0 0.0
    %1002 = vmatpush1.xpose.msra.mxu0 0.0
    %1003 = vmatprep.subr.mxu0 0.0
    %1004 = vmatpush1.xpose.msra.mxu0 0.0
    %1005 = vmatprep.subr.mxu0 0.0
    %1006 = vmatpush1.xpose.msra.mxu0 0.0
    %1007 = vmatprep.subr.mxu0 0.0
    %1008 = vmatpush1.xpose.msra.mxu0 0.0
    %1009 = vmatprep.subr.mxu0 0.0
    %1010 = vmatpush1.xpose.msra.mxu0 0.0
    %1011 = vmatprep.subr.mxu0 0.0
    %1012 = vmatpush1.xpose.msra.mxu0 0.0
    %1013 = vmatprep.subr.mxu0 0.0
    %1014 = vmatpush1.xpose.msra.mxu0 0.0
    %1015 = vmatprep.subr.mxu0 0.0
    %1016 = vmatpush1.xpose.msra.mxu0 0.0
    %1017 = vmatprep.subr.mxu0 0.0
    %1018 = vmatpush1.xpose.msra.mxu0 0.0
    %1019 = vmatprep.subr.mxu0 0.0
    %1020 = vmatpush1.xpose.msra.mxu0 0.0
    %1021 = vmatprep.subr.mxu0 0.0
    %1022 = vmatpush1.xpose.msra.mxu0 0.0
    %1023 = vmatprep.subr.mxu0 0.0
    %1024 = vmatpush1.xpose.msra.mxu0 0.0
    %1025 = vmatprep.subr.mxu0 0.0
    %1026 = vmatpush1.xpose.msra.mxu0 0.0
    %1027 = vmatprep.subr.mxu0 0.0
    %1028 = vmatpush1.xpose.msra.mxu0 0.0
    %1029 = vmatprep.subr.mxu0 0.0
    %1030 = vmatpush1.xpose.msra.mxu0 0.0
    %1031 = vmatprep.subr.mxu0 0.0
    %1032 = vmatpush1.xpose.msra.mxu0 0.0
    %1033 = vmatprep.subr.mxu0 0.0
    %1034 = vmatpush1.xpose.msra.mxu0 0.0
    %1035 = vmatprep.subr.mxu0 0.0
    %1036 = vmatpush1.xpose.msra.mxu0 0.0
    %1037 = vmatprep.mubr.f32.mxu0 0.0
    %1038 = vmatmul.mubr.f32.gmra.mrb[0].mxu0 %v965
    %v1039 = vpop.f32.mrb[0].mxu0
    %v1040 = vadd.f32 0.0, %v1039
    %v1041 = vpop.f32.mrb[0].mxu0
    %1042 = vmatprep.mubr.f32.mxu0 0.0
    %1043 = vmatmul.mubr.f32.gmra.mrb[0].mxu0 %v967
    %v1044 = vpop.f32.mrb[0].mxu0
    %v1045 = vadd.f32 0.0, %v1044
    %v1046 = vpop.f32.mrb[0].mxu0
    %1047 = vdwg.mxu0
    %v1048 = vsel %vm549, %v474, 0
    %v1050 = vsel %vm549, %v476, 0
    %v1052 = vsel %vm549, %v502, 0
    %v1054 = vsel %vm549, %v504, 0
    %1056 = vmatprep.subr.mxu0 0.0
    %1057 = vmatpush1.xpose.msra.mxu0 %v1052
    %1058 = vmatprep.subr.mxu0 0.0
    %1059 = vmatpush1.xpose.msra.mxu0 %v1054
    %1060 = vmatprep.subr.mxu0 0.0
    %1061 = vmatpush1.xpose.msra.mxu0 0.0
    %1062 = vmatprep.subr.mxu0 0.0
    %1063 = vmatpush1.xpose.msra.mxu0 0.0
    %1064 = vmatprep.subr.mxu0 0.0
    %1065 = vmatpush1.xpose.msra.mxu0 0.0
    %1066 = vmatprep.subr.mxu0 0.0
    %1067 = vmatpush1.xpose.msra.mxu0 0.0
    %1068 = vmatprep.subr.mxu0 0.0
    %1069 = vmatpush1.xpose.msra.mxu0 0.0
    %1070 = vmatprep.subr.mxu0 0.0
    %1071 = vmatpush1.xpose.msra.mxu0 0.0
    %1072 = vmatprep.subr.mxu0 0.0
    %1073 = vmatpush1.xpose.msra.mxu0 0.0
    %1074 = vmatprep.subr.mxu0 0.0
    %1075 = vmatpush1.xpose.msra.mxu0 0.0
    %1076 = vmatprep.subr.mxu0 0.0
    %1077 = vmatpush1.xpose.msra.mxu0 0.0
    %1078 = vmatprep.subr.mxu0 0.0
    %1079 = vmatpush1.xpose.msra.mxu0 0.0
    %1080 = vmatprep.subr.mxu0 0.0
    %1081 = vmatpush1.xpose.msra.mxu0 0.0
    %1082 = vmatprep.subr.mxu0 0.0
    %1083 = vmatpush1.xpose.msra.mxu0 0.0
    %1084 = vmatprep.subr.mxu0 0.0
    %1085 = vmatpush1.xpose.msra.mxu0 0.0
    %1086 = vmatprep.subr.mxu0 0.0
    %1087 = vmatpush1.xpose.msra.mxu0 0.0
    %1088 = vmatprep.subr.mxu0 0.0
    %1089 = vmatpush1.xpose.msra.mxu0 0.0
    %1090 = vmatprep.subr.mxu0 0.0
    %1091 = vmatpush1.xpose.msra.mxu0 0.0
    %1092 = vmatprep.subr.mxu0 0.0
    %1093 = vmatpush1.xpose.msra.mxu0 0.0
    %1094 = vmatprep.subr.mxu0 0.0
    %1095 = vmatpush1.xpose.msra.mxu0 0.0
    %1096 = vmatprep.subr.mxu0 0.0
    %1097 = vmatpush1.xpose.msra.mxu0 0.0
    %1098 = vmatprep.subr.mxu0 0.0
    %1099 = vmatpush1.xpose.msra.mxu0 0.0
    %1100 = vmatprep.subr.mxu0 0.0
    %1101 = vmatpush1.xpose.msra.mxu0 0.0
    %1102 = vmatprep.subr.mxu0 0.0
    %1103 = vmatpush1.xpose.msra.mxu0 0.0
    %1104 = vmatprep.subr.mxu0 0.0
    %1105 = vmatpush1.xpose.msra.mxu0 0.0
    %1106 = vmatprep.subr.mxu0 0.0
    %1107 = vmatpush1.xpose.msra.mxu0 0.0
    %1108 = vmatprep.subr.mxu0 0.0
    %1109 = vmatpush1.xpose.msra.mxu0 0.0
    %1110 = vmatprep.subr.mxu0 0.0
    %1111 = vmatpush1.xpose.msra.mxu0 0.0
    %1112 = vmatprep.subr.mxu0 0.0
    %1113 = vmatpush1.xpose.msra.mxu0 0.0
    %1114 = vmatprep.subr.mxu0 0.0
    %1115 = vmatpush1.xpose.msra.mxu0 0.0
    %1116 = vmatprep.subr.mxu0 0.0
    %1117 = vmatpush1.xpose.msra.mxu0 0.0
    %1118 = vmatprep.subr.mxu0 0.0
    %1119 = vmatpush1.xpose.msra.mxu0 0.0
    %1120 = vmatprep.mubr.f32.mxu0 0.0
    %1121 = vmatmul.mubr.f32.gmra.mrb[0].mxu0 %v1048
    %v1122 = vpop.f32.mrb[0].mxu0
    %v1123 = vadd.f32 0.0, %v1122
    %v1124 = vpop.f32.mrb[0].mxu0
    %1125 = vmatprep.mubr.f32.mxu0 0.0
    %1126 = vmatmul.mubr.f32.gmra.mrb[0].mxu0 %v1050
    %v1127 = vpop.f32.mrb[0].mxu0
    %v1128 = vadd.f32 0.0, %v1127
    %v1129 = vpop.f32.mrb[0].mxu0
    %1130 = vdwg.mxu0
    %v1131 = vsel %vm549, %v478, 0
    %v1133 = vsel %vm549, %v480, 0
    %v1135 = vsel %vm549, %v506, 0
    %v1137 = vsel %vm549, %v508, 0
    %1139 = vmatprep.subr.mxu0 0.0
    %1140 = vmatpush1.xpose.msra.mxu0 %v1135
    %1141 = vmatprep.subr.mxu0 0.0
    %1142 = vmatpush1.xpose.msra.mxu0 %v1137
    %1143 = vmatprep.subr.mxu0 0.0
    %1144 = vmatpush1.xpose.msra.mxu0 0.0
    %1145 = vmatprep.subr.mxu0 0.0
    %1146 = vmatpush1.xpose.msra.mxu0 0.0
    %1147 = vmatprep.subr.mxu0 0.0
    %1148 = vmatpush1.xpose.msra.mxu0 0.0
    %1149 = vmatprep.subr.mxu0 0.0
    %1150 = vmatpush1.xpose.msra.mxu0 0.0
    %1151 = vmatprep.subr.mxu0 0.0
    %1152 = vmatpush1.xpose.msra.mxu0 0.0
    %1153 = vmatprep.subr.mxu0 0.0
    %1154 = vmatpush1.xpose.msra.mxu0 0.0
    %1155 = vmatprep.subr.mxu0 0.0
    %1156 = vmatpush1.xpose.msra.mxu0 0.0
    %1157 = vmatprep.subr.mxu0 0.0
    %1158 = vmatpush1.xpose.msra.mxu0 0.0
    %1159 = vmatprep.subr.mxu0 0.0
    %1160 = vmatpush1.xpose.msra.mxu0 0.0
    %1161 = vmatprep.subr.mxu0 0.0
    %1162 = vmatpush1.xpose.msra.mxu0 0.0
    %1163 = vmatprep.subr.mxu0 0.0
    %1164 = vmatpush1.xpose.msra.mxu0 0.0
    %1165 = vmatprep.subr.mxu0 0.0
    %1166 = vmatpush1.xpose.msra.mxu0 0.0
    %1167 = vmatprep.subr.mxu0 0.0
    %1168 = vmatpush1.xpose.msra.mxu0 0.0
    %1169 = vmatprep.subr.mxu0 0.0
    %1170 = vmatpush1.xpose.msra.mxu0 0.0
    %1171 = vmatprep.subr.mxu0 0.0
    %1172 = vmatpush1.xpose.msra.mxu0 0.0
    %1173 = vmatprep.subr.mxu0 0.0
    %1174 = vmatpush1.xpose.msra.mxu0 0.0
    %1175 = vmatprep.subr.mxu0 0.0
    %1176 = vmatpush1.xpose.msra.mxu0 0.0
    %1177 = vmatprep.subr.mxu0 0.0
    %1178 = vmatpush1.xpose.msra.mxu0 0.0
    %1179 = vmatprep.subr.mxu0 0.0
    %1180 = vmatpush1.xpose.msra.mxu0 0.0
    %1181 = vmatprep.subr.mxu0 0.0
    %1182 = vmatpush1.xpose.msra.mxu0 0.0
    %1183 = vmatprep.subr.mxu0 0.0
    %1184 = vmatpush1.xpose.msra.mxu0 0.0
    %1185 = vmatprep.subr.mxu0 0.0
    %1186 = vmatpush1.xpose.msra.mxu0 0.0
    %1187 = vmatprep.subr.mxu0 0.0
    %1188 = vmatpush1.xpose.msra.mxu0 0.0
    %1189 = vmatprep.subr.mxu0 0.0
    %1190 = vmatpush1.xpose.msra.mxu0 0.0
    %1191 = vmatprep.subr.mxu0 0.0
    %1192 = vmatpush1.xpose.msra.mxu0 0.0
    %1193 = vmatprep.subr.mxu0 0.0
    %1194 = vmatpush1.xpose.msra.mxu0 0.0
    %1195 = vmatprep.subr.mxu0 0.0
    %1196 = vmatpush1.xpose.msra.mxu0 0.0
    %1197 = vmatprep.subr.mxu0 0.0
    %1198 = vmatpush1.xpose.msra.mxu0 0.0
    %1199 = vmatprep.subr.mxu0 0.0
    %1200 = vmatpush1.xpose.msra.mxu0 0.0
    %1201 = vmatprep.subr.mxu0 0.0
    %1202 = vmatpush1.xpose.msra.mxu0 0.0
    %1203 = vmatprep.mubr.f32.mxu0 0.0
    %1204 = vmatmul.mubr.f32.gmra.mrb[0].mxu0 %v1131
    %v1205 = vpop.f32.mrb[0].mxu0
    %v1206 = vadd.f32 0.0, %v1205
    %v1207 = vpop.f32.mrb[0].mxu0
    %1208 = vmatprep.mubr.f32.mxu0 0.0
    %1209 = vmatmul.mubr.f32.gmra.mrb[0].mxu0 %v1133
    %v1210 = vpop.f32.mrb[0].mxu0
    %v1211 = vadd.f32 0.0, %v1210
    %v1212 = vpop.f32.mrb[0].mxu0
    %1213 = vdwg.mxu0
    %v1214 = vmul.f32 %v625, 0.17677669
    %v1215 = vmul.f32 %v630, 0.17677669
    %v1216 = vmul.f32 %v708, 0.17677669
    %v1217 = vmul.f32 %v713, 0.17677669
    %v1218 = vmul.f32 %v791, 0.17677669
    %v1219 = vmul.f32 %v796, 0.17677669
    %v1220 = vmul.f32 %v874, 0.17677669
    %v1221 = vmul.f32 %v879, 0.17677669
    %v1222 = vmul.f32 %v957, 0.17677669
    %v1223 = vmul.f32 %v962, 0.17677669
    %v1224 = vmul.f32 %v1040, 0.17677669
    %v1225 = vmul.f32 %v1045, 0.17677669
    %v1226 = vmul.f32 %v1123, 0.17677669
    %v1227 = vmul.f32 %v1128, 0.17677669
    %v1228 = vmul.f32 %v1206, 0.17677669
    %v1229 = vmul.f32 %v1211, 0.17677669
    %v1232 = vlaneseq
    %v1233 = vshrl.u32 %v1232, 7
    %v1234 = vsub.s32 0, %v1233
    %v1235 = vrot.slane %v104, %v1234
    %v1236 = vlaneseq
    %v1237 = vshrl.u32 %v1236, 7
    %v1238 = vsub.s32 0, %v1237
    %v1239 = vrot.slane %v105, %v1238
    %v1242 = vadd.f32 %v1214, %v1235
    %v1243 = vadd.f32 %v1215, %v1235
    %v1244 = vadd.f32 %v1216, %v1239
    %v1245 = vadd.f32 %v1217, %v1239
    %v1246 = vadd.f32 %v1218, %v1235
    %v1247 = vadd.f32 %v1219, %v1235
    %v1248 = vadd.f32 %v1220, %v1239
    %v1249 = vadd.f32 %v1221, %v1239
    %v1250 = vadd.f32 %v1222, %v1235
    %v1251 = vadd.f32 %v1223, %v1235
    %v1252 = vadd.f32 %v1224, %v1239
    %v1253 = vadd.f32 %v1225, %v1239
    %v1254 = vadd.f32 %v1226, %v1235
    %v1255 = vadd.f32 %v1227, %v1235
    %v1256 = vadd.f32 %v1228, %v1239
    %v1257 = vadd.f32 %v1229, %v1239
    %vm1258 = vcmask 130048
    %v1259 = vsel %vm1258, %v1242, -inf
    %1260 = vmax.xlane.f32.xlu0 %v1259
    %v1261 = vpop.xlane.xlu0 %1260
    %v1262 = vsel %vm1258, %v1243, -inf
    %1263 = vmax.xlane.f32.xlu0 %v1262
    %v1264 = vpop.xlane.xlu0 %1263
    %v1265 = vsel %vm1258, %v1244, -inf
    %1266 = vmax.xlane.f32.xlu0 %v1265
    %v1267 = vpop.xlane.xlu0 %1266
    %v1268 = vsel %vm1258, %v1245, -inf
    %1269 = vmax.xlane.f32.xlu0 %v1268
    %v1270 = vpop.xlane.xlu0 %1269
    %v1271 = vsel %vm1258, %v1246, -inf
    %1272 = vmax.xlane.f32.xlu0 %v1271
    %v1273 = vpop.xlane.xlu0 %1272
    %v1274 = vsel %vm1258, %v1247, -inf
    %1275 = vmax.xlane.f32.xlu0 %v1274
    %v1276 = vpop.xlane.xlu0 %1275
    %v1277 = vsel %vm1258, %v1248, -inf
    %1278 = vmax.xlane.f32.xlu0 %v1277
    %v1279 = vpop.xlane.xlu0 %1278
    %v1280 = vsel %vm1258, %v1249, -inf
    %1281 = vmax.xlane.f32.xlu0 %v1280
    %v1282 = vpop.xlane.xlu0 %1281
    %v1283 = vsel %vm1258, %v1250, -inf
    %1284 = vmax.xlane.f32.xlu0 %v1283
    %v1285 = vpop.xlane.xlu0 %1284
    %v1286 = vsel %vm1258, %v1251, -inf
    %1287 = vmax.xlane.f32.xlu0 %v1286
    %v1288 = vpop.xlane.xlu0 %1287
    %v1289 = vsel %vm1258, %v1252, -inf
    %1290 = vmax.xlane.f32.xlu0 %v1289
    %v1291 = vpop.xlane.xlu0 %1290
    %v1292 = vsel %vm1258, %v1253, -inf
    %1293 = vmax.xlane.f32.xlu0 %v1292
    %v1294 = vpop.xlane.xlu0 %1293
    %v1295 = vsel %vm1258, %v1254, -inf
    %1296 = vmax.xlane.f32.xlu0 %v1295
    %v1297 = vpop.xlane.xlu0 %1296
    %v1298 = vsel %vm1258, %v1255, -inf
    %1299 = vmax.xlane.f32.xlu0 %v1298
    %v1300 = vpop.xlane.xlu0 %1299
    %v1301 = vsel %vm1258, %v1256, -inf
    %1302 = vmax.xlane.f32.xlu0 %v1301
    %v1303 = vpop.xlane.xlu0 %1302
    %v1304 = vsel %vm1258, %v1257, -inf
    %1305 = vmax.xlane.f32.xlu0 %v1304
    %v1306 = vpop.xlane.xlu0 %1305
    %v1307 = vsub.f32 %v1242, %v1261
    %v1308 = vsub.f32 %v1243, %v1264
    %v1309 = vsub.f32 %v1244, %v1267
    %v1310 = vsub.f32 %v1245, %v1270
    %v1311 = vsub.f32 %v1246, %v1273
    %v1312 = vsub.f32 %v1247, %v1276
    %v1313 = vsub.f32 %v1248, %v1279
    %v1314 = vsub.f32 %v1249, %v1282
    %v1315 = vsub.f32 %v1250, %v1285
    %v1316 = vsub.f32 %v1251, %v1288
    %v1317 = vsub.f32 %v1252, %v1291
    %v1318 = vsub.f32 %v1253, %v1294
    %v1319 = vsub.f32 %v1254, %v1297
    %v1320 = vsub.f32 %v1255, %v1300
    %v1321 = vsub.f32 %v1256, %v1303
    %v1322 = vsub.f32 %v1257, %v1306
    %v1323 = vmul.f32 %v1307, 1.442695
    %v1324 = vpow.pop %v1323
    %v1325 = vmul.f32 %v1308, 1.442695
    %v1326 = vpow.pop %v1325
    %v1327 = vmul.f32 %v1309, 1.442695
    %v1328 = vpow.pop %v1327
    %v1329 = vmul.f32 %v1310, 1.442695
    %v1330 = vpow.pop %v1329
    %v1331 = vmul.f32 %v1311, 1.442695
    %v1332 = vpow.pop %v1331
    %v1333 = vmul.f32 %v1312, 1.442695
    %v1334 = vpow.pop %v1333
    %v1335 = vmul.f32 %v1313, 1.442695
    %v1336 = vpow.pop %v1335
    %v1337 = vmul.f32 %v1314, 1.442695
    %v1338 = vpow.pop %v1337
    %v1339 = vmul.f32 %v1315, 1.442695
    %v1340 = vpow.pop %v1339
    %v1341 = vmul.f32 %v1316, 1.442695
    %v1342 = vpow.pop %v1341
    %v1343 = vmul.f32 %v1317, 1.442695
    %v1344 = vpow.pop %v1343
    %v1345 = vmul.f32 %v1318, 1.442695
    %v1346 = vpow.pop %v1345
    %v1347 = vmul.f32 %v1319, 1.442695
    %v1348 = vpow.pop %v1347
    %v1349 = vmul.f32 %v1320, 1.442695
    %v1350 = vpow.pop %v1349
    %v1351 = vmul.f32 %v1321, 1.442695
    %v1352 = vpow.pop %v1351
    %v1353 = vmul.f32 %v1322, 1.442695
    %v1354 = vpow.pop %v1353
    %v1355 = vsel %vm1258, %v1324, 0.0
    %1356 = vadd.xlane.f32.xlu0 %v1355
    %v1357 = vpop.xlane.xlu0 %1356
    %v1358 = vsel %vm1258, %v1326, 0.0
    %1359 = vadd.xlane.f32.xlu0 %v1358
    %v1360 = vpop.xlane.xlu0 %1359
    %v1361 = vsel %vm1258, %v1328, 0.0
    %1362 = vadd.xlane.f32.xlu0 %v1361
    %v1363 = vpop.xlane.xlu0 %1362
    %v1364 = vsel %vm1258, %v1330, 0.0
    %1365 = vadd.xlane.f32.xlu0 %v1364
    %v1366 = vpop.xlane.xlu0 %1365
    %v1367 = vsel %vm1258, %v1332, 0.0
    %1368 = vadd.xlane.f32.xlu0 %v1367
    %v1369 = vpop.xlane.xlu0 %1368
    %v1370 = vsel %vm1258, %v1334, 0.0
    %1371 = vadd.xlane.f32.xlu0 %v1370
    %v1372 = vpop.xlane.xlu0 %1371
    %v1373 = vsel %vm1258, %v1336, 0.0
    %1374 = vadd.xlane.f32.xlu0 %v1373
    %v1375 = vpop.xlane.xlu0 %1374
    %v1376 = vsel %vm1258, %v1338, 0.0
    %1377 = vadd.xlane.f32.xlu0 %v1376
    %v1378 = vpop.xlane.xlu0 %1377
    %v1379 = vsel %vm1258, %v1340, 0.0
    %1380 = vadd.xlane.f32.xlu0 %v1379
    %v1381 = vpop.xlane.xlu0 %1380
    %v1382 = vsel %vm1258, %v1342, 0.0
    %1383 = vadd.xlane.f32.xlu0 %v1382
    %v1384 = vpop.xlane.xlu0 %1383
    %v1385 = vsel %vm1258, %v1344, 0.0
    %1386 = vadd.xlane.f32.xlu0 %v1385
    %v1387 = vpop.xlane.xlu0 %1386
    %v1388 = vsel %vm1258, %v1346, 0.0
    %1389 = vadd.xlane.f32.xlu0 %v1388
    %v1390 = vpop.xlane.xlu0 %1389
    %v1391 = vsel %vm1258, %v1348, 0.0
    %1392 = vadd.xlane.f32.xlu0 %v1391
    %v1393 = vpop.xlane.xlu0 %1392
    %v1394 = vsel %vm1258, %v1350, 0.0
    %1395 = vadd.xlane.f32.xlu0 %v1394
    %v1396 = vpop.xlane.xlu0 %1395
    %v1397 = vsel %vm1258, %v1352, 0.0
    %1398 = vadd.xlane.f32.xlu0 %v1397
    %v1399 = vpop.xlane.xlu0 %1398
    %v1400 = vsel %vm1258, %v1354, 0.0
    %1401 = vadd.xlane.f32.xlu0 %v1400
    %v1402 = vpop.xlane.xlu0 %1401
    %v1403 = vrcp.pop %v1357
    %v1404 = vmul.f32 %v1324, %v1403
    %v1405 = vrcp.pop %v1360
    %v1406 = vmul.f32 %v1326, %v1405
    %v1407 = vrcp.pop %v1363
    %v1408 = vmul.f32 %v1328, %v1407
    %v1409 = vrcp.pop %v1366
    %v1410 = vmul.f32 %v1330, %v1409
    %v1411 = vrcp.pop %v1369
    %v1412 = vmul.f32 %v1332, %v1411
    %v1413 = vrcp.pop %v1372
    %v1414 = vmul.f32 %v1334, %v1413
    %v1415 = vrcp.pop %v1375
    %v1416 = vmul.f32 %v1336, %v1415
    %v1417 = vrcp.pop %v1378
    %v1418 = vmul.f32 %v1338, %v1417
    %v1419 = vrcp.pop %v1381
    %v1420 = vmul.f32 %v1340, %v1419
    %v1421 = vrcp.pop %v1384
    %v1422 = vmul.f32 %v1342, %v1421
    %v1423 = vrcp.pop %v1387
    %v1424 = vmul.f32 %v1344, %v1423
    %v1425 = vrcp.pop %v1390
    %v1426 = vmul.f32 %v1346, %v1425
    %v1427 = vrcp.pop %v1393
    %v1428 = vmul.f32 %v1348, %v1427
    %v1429 = vrcp.pop %v1396
    %v1430 = vmul.f32 %v1350, %v1429
    %v1431 = vrcp.pop %v1399
    %v1432 = vmul.f32 %v1352, %v1431
    %v1433 = vrcp.pop %v1402
    %v1434 = vmul.f32 %v1354, %v1433
    %v1436 = vsel %vm1258, %v1404, 0
    %v1439 = vsel %vm1258, %v1406, 0
    %1441 = vmatprep.subr.mxu0 0.0
    %1442 = vmatpush1.msra.mxu0 %v439
    %1443 = vmatprep.subr.mxu0 0.0
    %1444 = vmatpush1.msra.mxu0 %v442
    %1445 = vmatprep.subr.mxu0 0.0
    %1446 = vmatpush1.msra.mxu0 0.0
    %1447 = vmatprep.subr.mxu0 0.0
    %1448 = vmatpush1.msra.mxu0 0.0
    %1449 = vmatprep.subr.mxu0 0.0
    %1450 = vmatpush1.msra.mxu0 0.0
    %1451 = vmatprep.subr.mxu0 0.0
    %1452 = vmatpush1.msra.mxu0 0.0
    %1453 = vmatprep.subr.mxu0 0.0
    %1454 = vmatpush1.msra.mxu0 0.0
    %1455 = vmatprep.subr.mxu0 0.0
    %1456 = vmatpush1.msra.mxu0 0.0
    %1457 = vmatprep.subr.mxu0 0.0
    %1458 = vmatpush1.msra.mxu0 0.0
    %1459 = vmatprep.subr.mxu0 0.0
    %1460 = vmatpush1.msra.mxu0 0.0
    %1461 = vmatprep.subr.mxu0 0.0
    %1462 = vmatpush1.msra.mxu0 0.0
    %1463 = vmatprep.subr.mxu0 0.0
    %1464 = vmatpush1.msra.mxu0 0.0
    %1465 = vmatprep.subr.mxu0 0.0
    %1466 = vmatpush1.msra.mxu0 0.0
    %1467 = vmatprep.subr.mxu0 0.0
    %1468 = vmatpush1.msra.mxu0 0.0
    %1469 = vmatprep.subr.mxu0 0.0
    %1470 = vmatpush1.msra.mxu0 0.0
    %1471 = vmatprep.subr.mxu0 0.0
    %1472 = vmatpush1.msra.mxu0 0.0
    %1473 = vmatprep.subr.mxu0 0.0
    %1474 = vmatpush1.msra.mxu0 0.0
    %1475 = vmatprep.subr.mxu0 0.0
    %1476 = vmatpush1.msra.mxu0 0.0
    %1477 = vmatprep.subr.mxu0 0.0
    %1478 = vmatpush1.msra.mxu0 0.0
    %1479 = vmatprep.subr.mxu0 0.0
    %1480 = vmatpush1.msra.mxu0 0.0
    %1481 = vmatprep.subr.mxu0 0.0
    %1482 = vmatpush1.msra.mxu0 0.0
    %1483 = vmatprep.subr.mxu0 0.0
    %1484 = vmatpush1.msra.mxu0 0.0
    %1485 = vmatprep.subr.mxu0 0.0
    %1486 = vmatpush1.msra.mxu0 0.0
    %1487 = vmatprep.subr.mxu0 0.0
    %1488 = vmatpush1.msra.mxu0 0.0
    %1489 = vmatprep.subr.mxu0 0.0
    %1490 = vmatpush1.msra.mxu0 0.0
    %1491 = vmatprep.subr.mxu0 0.0
    %1492 = vmatpush1.msra.mxu0 0.0
    %1493 = vmatprep.subr.mxu0 0.0
    %1494 = vmatpush1.msra.mxu0 0.0
    %1495 = vmatprep.subr.mxu0 0.0
    %1496 = vmatpush1.msra.mxu0 0.0
    %1497 = vmatprep.subr.mxu0 0.0
    %1498 = vmatpush1.msra.mxu0 0.0
    %1499 = vmatprep.subr.mxu0 0.0
    %1500 = vmatpush1.msra.mxu0 0.0
    %1501 = vmatprep.subr.mxu0 0.0
    %1502 = vmatpush1.msra.mxu0 0.0
    %1503 = vmatprep.subr.mxu0 0.0
    %1504 = vmatpush1.msra.mxu0 0.0
    %1505 = vmatprep.mubr.f32.mxu0 0.0
    %1506 = vmatmul.mubr.f32.gmra.mrb[0].mxu0 %v1436
    %v1507 = vpop.f32.mrb[0].mxu0
    %v1508 = vadd.f32 0.0, %v1507
    %v1509 = vpop.f32.mrb[0].mxu0
    %1510 = vmatprep.mubr.f32.mxu0 0.0
    %1511 = vmatmul.mubr.f32.gmra.mrb[0].mxu0 %v1439
    %v1512 = vpop.f32.mrb[0].mxu0
    %v1513 = vadd.f32 0.0, %v1512
    %v1514 = vpop.f32.mrb[0].mxu0
    %1515 = vdwg.mxu0
    %v1517 = vsel %vm1258, %v1408, 0
    %v1520 = vsel %vm1258, %v1410, 0
    %1522 = vmatprep.subr.mxu0 0.0
    %1523 = vmatpush1.msra.mxu0 %v447
    %1524 = vmatprep.subr.mxu0 0.0
    %1525 = vmatpush1.msra.mxu0 %v450
    %1526 = vmatprep.subr.mxu0 0.0
    %1527 = vmatpush1.msra.mxu0 0.0
    %1528 = vmatprep.subr.mxu0 0.0
    %1529 = vmatpush1.msra.mxu0 0.0
    %1530 = vmatprep.subr.mxu0 0.0
    %1531 = vmatpush1.msra.mxu0 0.0
    %1532 = vmatprep.subr.mxu0 0.0
    %1533 = vmatpush1.msra.mxu0 0.0
    %1534 = vmatprep.subr.mxu0 0.0
    %1535 = vmatpush1.msra.mxu0 0.0
    %1536 = vmatprep.subr.mxu0 0.0
    %1537 = vmatpush1.msra.mxu0 0.0
    %1538 = vmatprep.subr.mxu0 0.0
    %1539 = vmatpush1.msra.mxu0 0.0
    %1540 = vmatprep.subr.mxu0 0.0
    %1541 = vmatpush1.msra.mxu0 0.0
    %1542 = vmatprep.subr.mxu0 0.0
    %1543 = vmatpush1.msra.mxu0 0.0
    %1544 = vmatprep.subr.mxu0 0.0
    %1545 = vmatpush1.msra.mxu0 0.0
    %1546 = vmatprep.subr.mxu0 0.0
    %1547 = vmatpush1.msra.mxu0 0.0
    %1548 = vmatprep.subr.mxu0 0.0
    %1549 = vmatpush1.msra.mxu0 0.0
    %1550 = vmatprep.subr.mxu0 0.0
    %1551 = vmatpush1.msra.mxu0 0.0
    %1552 = vmatprep.subr.mxu0 0.0
    %1553 = vmatpush1.msra.mxu0 0.0
    %1554 = vmatprep.subr.mxu0 0.0
    %1555 = vmatpush1.msra.mxu0 0.0
    %1556 = vmatprep.subr.mxu0 0.0
    %1557 = vmatpush1.msra.mxu0 0.0
    %1558 = vmatprep.subr.mxu0 0.0
    %1559 = vmatpush1.msra.mxu0 0.0
    %1560 = vmatprep.subr.mxu0 0.0
    %1561 = vmatpush1.msra.mxu0 0.0
    %1562 = vmatprep.subr.mxu0 0.0
    %1563 = vmatpush1.msra.mxu0 0.0
    %1564 = vmatprep.subr.mxu0 0.0
    %1565 = vmatpush1.msra.mxu0 0.0
    %1566 = vmatprep.subr.mxu0 0.0
    %1567 = vmatpush1.msra.mxu0 0.0
    %1568 = vmatprep.subr.mxu0 0.0
    %1569 = vmatpush1.msra.mxu0 0.0
    %1570 = vmatprep.subr.mxu0 0.0
    %1571 = vmatpush1.msra.mxu0 0.0
    %1572 = vmatprep.subr.mxu0 0.0
    %1573 = vmatpush1.msra.mxu0 0.0
    %1574 = vmatprep.subr.mxu0 0.0
    %1575 = vmatpush1.msra.mxu0 0.0
    %1576 = vmatprep.subr.mxu0 0.0
    %1577 = vmatpush1.msra.mxu0 0.0
    %1578 = vmatprep.subr.mxu0 0.0
    %1579 = vmatpush1.msra.mxu0 0.0
    %1580 = vmatprep.subr.mxu0 0.0
    %1581 = vmatpush1.msra.mxu0 0.0
    %1582 = vmatprep.subr.mxu0 0.0
    %1583 = vmatpush1.msra.mxu0 0.0
    %1584 = vmatprep.subr.mxu0 0.0
    %1585 = vmatpush1.msra.mxu0 0.0
    %1586 = vmatprep.mubr.f32.mxu0 0.0
    %1587 = vmatmul.mubr.f32.gmra.mrb[0].mxu0 %v1517
    %v1588 = vpop.f32.mrb[0].mxu0
    %v1589 = vadd.f32 0.0, %v1588
    %v1590 = vpop.f32.mrb[0].mxu0
    %1591 = vmatprep.mubr.f32.mxu0 0.0
    %1592 = vmatmul.mubr.f32.gmra.mrb[0].mxu0 %v1520
    %v1593 = vpop.f32.mrb[0].mxu0
    %v1594 = vadd.f32 0.0, %v1593
    %v1595 = vpop.f32.mrb[0].mxu0
    %1596 = vdwg.mxu0
    %v1598 = vsel %vm1258, %v1412, 0
    %v1601 = vsel %vm1258, %v1414, 0
    %1603 = vmatprep.subr.mxu0 0.0
    %1604 = vmatpush1.msra.mxu0 %v514
    %1605 = vmatprep.subr.mxu0 0.0
    %1606 = vmatpush1.msra.mxu0 %v516
    %1607 = vmatprep.subr.mxu0 0.0
    %1608 = vmatpush1.msra.mxu0 0.0
    %1609 = vmatprep.subr.mxu0 0.0
    %1610 = vmatpush1.msra.mxu0 0.0
    %1611 = vmatprep.subr.mxu0 0.0
    %1612 = vmatpush1.msra.mxu0 0.0
    %1613 = vmatprep.subr.mxu0 0.0
    %1614 = vmatpush1.msra.mxu0 0.0
    %1615 = vmatprep.subr.mxu0 0.0
    %1616 = vmatpush1.msra.mxu0 0.0
    %1617 = vmatprep.subr.mxu0 0.0
    %1618 = vmatpush1.msra.mxu0 0.0
    %1619 = vmatprep.subr.mxu0 0.0
    %1620 = vmatpush1.msra.mxu0 0.0
    %1621 = vmatprep.subr.mxu0 0.0
    %1622 = vmatpush1.msra.mxu0 0.0
    %1623 = vmatprep.subr.mxu0 0.0
    %1624 = vmatpush1.msra.mxu0 0.0
    %1625 = vmatprep.subr.mxu0 0.0
    %1626 = vmatpush1.msra.mxu0 0.0
    %1627 = vmatprep.subr.mxu0 0.0
    %1628 = vmatpush1.msra.mxu0 0.0
    %1629 = vmatprep.subr.mxu0 0.0
    %1630 = vmatpush1.msra.mxu0 0.0
    %1631 = vmatprep.subr.mxu0 0.0
    %1632 = vmatpush1.msra.mxu0 0.0
    %1633 = vmatprep.subr.mxu0 0.0
    %1634 = vmatpush1.msra.mxu0 0.0
    %1635 = vmatprep.subr.mxu0 0.0
    %1636 = vmatpush1.msra.mxu0 0.0
    %1637 = vmatprep.subr.mxu0 0.0
    %1638 = vmatpush1.msra.mxu0 0.0
    %1639 = vmatprep.subr.mxu0 0.0
    %1640 = vmatpush1.msra.mxu0 0.0
    %1641 = vmatprep.subr.mxu0 0.0
    %1642 = vmatpush1.msra.mxu0 0.0
    %1643 = vmatprep.subr.mxu0 0.0
    %1644 = vmatpush1.msra.mxu0 0.0
    %1645 = vmatprep.subr.mxu0 0.0
    %1646 = vmatpush1.msra.mxu0 0.0
    %1647 = vmatprep.subr.mxu0 0.0
    %1648 = vmatpush1.msra.mxu0 0.0
    %1649 = vmatprep.subr.mxu0 0.0
    %1650 = vmatpush1.msra.mxu0 0.0
    %1651 = vmatprep.subr.mxu0 0.0
    %1652 = vmatpush1.msra.mxu0 0.0
    %1653 = vmatprep.subr.mxu0 0.0
    %1654 = vmatpush1.msra.mxu0 0.0
    %1655 = vmatprep.subr.mxu0 0.0
    %1656 = vmatpush1.msra.mxu0 0.0
    %1657 = vmatprep.subr.mxu0 0.0
    %1658 = vmatpush1.msra.mxu0 0.0
    %1659 = vmatprep.subr.mxu0 0.0
    %1660 = vmatpush1.msra.mxu0 0.0
    %1661 = vmatprep.subr.mxu0 0.0
    %1662 = vmatpush1.msra.mxu0 0.0
    %1663 = vmatprep.subr.mxu0 0.0
    %1664 = vmatpush1.msra.mxu0 0.0
    %1665 = vmatprep.subr.mxu0 0.0
    %1666 = vmatpush1.msra.mxu0 0.0
    %1667 = vmatprep.mubr.f32.mxu0 0.0
    %1668 = vmatmul.mubr.f32.gmra.mrb[0].mxu0 %v1598
    %v1669 = vpop.f32.mrb[0].mxu0
    %v1670 = vadd.f32 0.0, %v1669
    %v1671 = vpop.f32.mrb[0].mxu0
    %1672 = vmatprep.mubr.f32.mxu0 0.0
    %1673 = vmatmul.mubr.f32.gmra.mrb[0].mxu0 %v1601
    %v1674 = vpop.f32.mrb[0].mxu0
    %v1675 = vadd.f32 0.0, %v1674
    %v1676 = vpop.f32.mrb[0].mxu0
    %1677 = vdwg.mxu0
    %v1679 = vsel %vm1258, %v1416, 0
    %v1682 = vsel %vm1258, %v1418, 0
    %1684 = vmatprep.subr.mxu0 0.0
    %1685 = vmatpush1.msra.mxu0 %v518
    %1686 = vmatprep.subr.mxu0 0.0
    %1687 = vmatpush1.msra.mxu0 %v520
    %1688 = vmatprep.subr.mxu0 0.0
    %1689 = vmatpush1.msra.mxu0 0.0
    %1690 = vmatprep.subr.mxu0 0.0
    %1691 = vmatpush1.msra.mxu0 0.0
    %1692 = vmatprep.subr.mxu0 0.0
    %1693 = vmatpush1.msra.mxu0 0.0
    %1694 = vmatprep.subr.mxu0 0.0
    %1695 = vmatpush1.msra.mxu0 0.0
    %1696 = vmatprep.subr.mxu0 0.0
    %1697 = vmatpush1.msra.mxu0 0.0
    %1698 = vmatprep.subr.mxu0 0.0
    %1699 = vmatpush1.msra.mxu0 0.0
    %1700 = vmatprep.subr.mxu0 0.0
    %1701 = vmatpush1.msra.mxu0 0.0
    %1702 = vmatprep.subr.mxu0 0.0
    %1703 = vmatpush1.msra.mxu0 0.0
    %1704 = vmatprep.subr.mxu0 0.0
    %1705 = vmatpush1.msra.mxu0 0.0
    %1706 = vmatprep.subr.mxu0 0.0
    %1707 = vmatpush1.msra.mxu0 0.0
    %1708 = vmatprep.subr.mxu0 0.0
    %1709 = vmatpush1.msra.mxu0 0.0
    %1710 = vmatprep.subr.mxu0 0.0
    %1711 = vmatpush1.msra.mxu0 0.0
    %1712 = vmatprep.subr.mxu0 0.0
    %1713 = vmatpush1.msra.mxu0 0.0
    %1714 = vmatprep.subr.mxu0 0.0
    %1715 = vmatpush1.msra.mxu0 0.0
    %1716 = vmatprep.subr.mxu0 0.0
    %1717 = vmatpush1.msra.mxu0 0.0
    %1718 = vmatprep.subr.mxu0 0.0
    %1719 = vmatpush1.msra.mxu0 0.0
    %1720 = vmatprep.subr.mxu0 0.0
    %1721 = vmatpush1.msra.mxu0 0.0
    %1722 = vmatprep.subr.mxu0 0.0
    %1723 = vmatpush1.msra.mxu0 0.0
    %1724 = vmatprep.subr.mxu0 0.0
    %1725 = vmatpush1.msra.mxu0 0.0
    %1726 = vmatprep.subr.mxu0 0.0
    %1727 = vmatpush1.msra.mxu0 0.0
    %1728 = vmatprep.subr.mxu0 0.0
    %1729 = vmatpush1.msra.mxu0 0.0
    %1730 = vmatprep.subr.mxu0 0.0
    %1731 = vmatpush1.msra.mxu0 0.0
    %1732 = vmatprep.subr.mxu0 0.0
    %1733 = vmatpush1.msra.mxu0 0.0
    %1734 = vmatprep.subr.mxu0 0.0
    %1735 = vmatpush1.msra.mxu0 0.0
    %1736 = vmatprep.subr.mxu0 0.0
    %1737 = vmatpush1.msra.mxu0 0.0
    %1738 = vmatprep.subr.mxu0 0.0
    %1739 = vmatpush1.msra.mxu0 0.0
    %1740 = vmatprep.subr.mxu0 0.0
    %1741 = vmatpush1.msra.mxu0 0.0
    %1742 = vmatprep.subr.mxu0 0.0
    %1743 = vmatpush1.msra.mxu0 0.0
    %1744 = vmatprep.subr.mxu0 0.0
    %1745 = vmatpush1.msra.mxu0 0.0
    %1746 = vmatprep.subr.mxu0 0.0
    %1747 = vmatpush1.msra.mxu0 0.0
    %1748 = vmatprep.mubr.f32.mxu0 0.0
    %1749 = vmatmul.mubr.f32.gmra.mrb[0].mxu0 %v1679
    %v1750 = vpop.f32.mrb[0].mxu0
    %v1751 = vadd.f32 0.0, %v1750
    %v1752 = vpop.f32.mrb[0].mxu0
    %1753 = vmatprep.mubr.f32.mxu0 0.0
    %1754 = vmatmul.mubr.f32.gmra.mrb[0].mxu0 %v1682
    %v1755 = vpop.f32.mrb[0].mxu0
    %v1756 = vadd.f32 0.0, %v1755
    %v1757 = vpop.f32.mrb[0].mxu0
    %1758 = vdwg.mxu0
    %v1760 = vsel %vm1258, %v1420, 0
    %v1763 = vsel %vm1258, %v1422, 0
    %1765 = vmatprep.subr.mxu0 0.0
    %1766 = vmatpush1.msra.mxu0 %v526
    %1767 = vmatprep.subr.mxu0 0.0
    %1768 = vmatpush1.msra.mxu0 %v528
    %1769 = vmatprep.subr.mxu0 0.0
    %1770 = vmatpush1.msra.mxu0 0.0
    %1771 = vmatprep.subr.mxu0 0.0
    %1772 = vmatpush1.msra.mxu0 0.0
    %1773 = vmatprep.subr.mxu0 0.0
    %1774 = vmatpush1.msra.mxu0 0.0
    %1775 = vmatprep.subr.mxu0 0.0
    %1776 = vmatpush1.msra.mxu0 0.0
    %1777 = vmatprep.subr.mxu0 0.0
    %1778 = vmatpush1.msra.mxu0 0.0
    %1779 = vmatprep.subr.mxu0 0.0
    %1780 = vmatpush1.msra.mxu0 0.0
    %1781 = vmatprep.subr.mxu0 0.0
    %1782 = vmatpush1.msra.mxu0 0.0
    %1783 = vmatprep.subr.mxu0 0.0
    %1784 = vmatpush1.msra.mxu0 0.0
    %1785 = vmatprep.subr.mxu0 0.0
    %1786 = vmatpush1.msra.mxu0 0.0
    %1787 = vmatprep.subr.mxu0 0.0
    %1788 = vmatpush1.msra.mxu0 0.0
    %1789 = vmatprep.subr.mxu0 0.0
    %1790 = vmatpush1.msra.mxu0 0.0
    %1791 = vmatprep.subr.mxu0 0.0
    %1792 = vmatpush1.msra.mxu0 0.0
    %1793 = vmatprep.subr.mxu0 0.0
    %1794 = vmatpush1.msra.mxu0 0.0
    %1795 = vmatprep.subr.mxu0 0.0
    %1796 = vmatpush1.msra.mxu0 0.0
    %1797 = vmatprep.subr.mxu0 0.0
    %1798 = vmatpush1.msra.mxu0 0.0
    %1799 = vmatprep.subr.mxu0 0.0
    %1800 = vmatpush1.msra.mxu0 0.0
    %1801 = vmatprep.subr.mxu0 0.0
    %1802 = vmatpush1.msra.mxu0 0.0
    %1803 = vmatprep.subr.mxu0 0.0
    %1804 = vmatpush1.msra.mxu0 0.0
    %1805 = vmatprep.subr.mxu0 0.0
    %1806 = vmatpush1.msra.mxu0 0.0
    %1807 = vmatprep.subr.mxu0 0.0
    %1808 = vmatpush1.msra.mxu0 0.0
    %1809 = vmatprep.subr.mxu0 0.0
    %1810 = vmatpush1.msra.mxu0 0.0
    %1811 = vmatprep.subr.mxu0 0.0
    %1812 = vmatpush1.msra.mxu0 0.0
    %1813 = vmatprep.subr.mxu0 0.0
    %1814 = vmatpush1.msra.mxu0 0.0
    %1815 = vmatprep.subr.mxu0 0.0
    %1816 = vmatpush1.msra.mxu0 0.0
    %1817 = vmatprep.subr.mxu0 0.0
    %1818 = vmatpush1.msra.mxu0 0.0
    %1819 = vmatprep.subr.mxu0 0.0
    %1820 = vmatpush1.msra.mxu0 0.0
    %1821 = vmatprep.subr.mxu0 0.0
    %1822 = vmatpush1.msra.mxu0 0.0
    %1823 = vmatprep.subr.mxu0 0.0
    %1824 = vmatpush1.msra.mxu0 0.0
    %1825 = vmatprep.subr.mxu0 0.0
    %1826 = vmatpush1.msra.mxu0 0.0
    %1827 = vmatprep.subr.mxu0 0.0
    %1828 = vmatpush1.msra.mxu0 0.0
    %1829 = vmatprep.mubr.f32.mxu0 0.0
    %1830 = vmatmul.mubr.f32.gmra.mrb[0].mxu0 %v1760
    %v1831 = vpop.f32.mrb[0].mxu0
    %v1832 = vadd.f32 0.0, %v1831
    %v1833 = vpop.f32.mrb[0].mxu0
    %1834 = vmatprep.mubr.f32.mxu0 0.0
    %1835 = vmatmul.mubr.f32.gmra.mrb[0].mxu0 %v1763
    %v1836 = vpop.f32.mrb[0].mxu0
    %v1837 = vadd.f32 0.0, %v1836
    %v1838 = vpop.f32.mrb[0].mxu0
    %1839 = vdwg.mxu0
    %v1841 = vsel %vm1258, %v1424, 0
    %v1844 = vsel %vm1258, %v1426, 0
    %1846 = vmatprep.subr.mxu0 0.0
    %1847 = vmatpush1.msra.mxu0 %v530
    %1848 = vmatprep.subr.mxu0 0.0
    %1849 = vmatpush1.msra.mxu0 %v532
    %1850 = vmatprep.subr.mxu0 0.0
    %1851 = vmatpush1.msra.mxu0 0.0
    %1852 = vmatprep.subr.mxu0 0.0
    %1853 = vmatpush1.msra.mxu0 0.0
    %1854 = vmatprep.subr.mxu0 0.0
    %1855 = vmatpush1.msra.mxu0 0.0
    %1856 = vmatprep.subr.mxu0 0.0
    %1857 = vmatpush1.msra.mxu0 0.0
    %1858 = vmatprep.subr.mxu0 0.0
    %1859 = vmatpush1.msra.mxu0 0.0
    %1860 = vmatprep.subr.mxu0 0.0
    %1861 = vmatpush1.msra.mxu0 0.0
    %1862 = vmatprep.subr.mxu0 0.0
    %1863 = vmatpush1.msra.mxu0 0.0
    %1864 = vmatprep.subr.mxu0 0.0
    %1865 = vmatpush1.msra.mxu0 0.0
    %1866 = vmatprep.subr.mxu0 0.0
    %1867 = vmatpush1.msra.mxu0 0.0
    %1868 = vmatprep.subr.mxu0 0.0
    %1869 = vmatpush1.msra.mxu0 0.0
    %1870 = vmatprep.subr.mxu0 0.0
    %1871 = vmatpush1.msra.mxu0 0.0
    %1872 = vmatprep.subr.mxu0 0.0
    %1873 = vmatpush1.msra.mxu0 0.0
    %1874 = vmatprep.subr.mxu0 0.0
    %1875 = vmatpush1.msra.mxu0 0.0
    %1876 = vmatprep.subr.mxu0 0.0
    %1877 = vmatpush1.msra.mxu0 0.0
    %1878 = vmatprep.subr.mxu0 0.0
    %1879 = vmatpush1.msra.mxu0 0.0
    %1880 = vmatprep.subr.mxu0 0.0
    %1881 = vmatpush1.msra.mxu0 0.0
    %1882 = vmatprep.subr.mxu0 0.0
    %1883 = vmatpush1.msra.mxu0 0.0
    %1884 = vmatprep.subr.mxu0 0.0
    %1885 = vmatpush1.msra.mxu0 0.0
    %1886 = vmatprep.subr.mxu0 0.0
    %1887 = vmatpush1.msra.mxu0 0.0
    %1888 = vmatprep.subr.mxu0 0.0
    %1889 = vmatpush1.msra.mxu0 0.0
    %1890 = vmatprep.subr.mxu0 0.0
    %1891 = vmatpush1.msra.mxu0 0.0
    %1892 = vmatprep.subr.mxu0 0.0
    %1893 = vmatpush1.msra.mxu0 0.0
    %1894 = vmatprep.subr.mxu0 0.0
    %1895 = vmatpush1.msra.mxu0 0.0
    %1896 = vmatprep.subr.mxu0 0.0
    %1897 = vmatpush1.msra.mxu0 0.0
    %1898 = vmatprep.subr.mxu0 0.0
    %1899 = vmatpush1.msra.mxu0 0.0
    %1900 = vmatprep.subr.mxu0 0.0
    %1901 = vmatpush1.msra.mxu0 0.0
    %1902 = vmatprep.subr.mxu0 0.0
    %1903 = vmatpush1.msra.mxu0 0.0
    %1904 = vmatprep.subr.mxu0 0.0
    %1905 = vmatpush1.msra.mxu0 0.0
    %1906 = vmatprep.subr.mxu0 0.0
    %1907 = vmatpush1.msra.mxu0 0.0
    %1908 = vmatprep.subr.mxu0 0.0
    %1909 = vmatpush1.msra.mxu0 0.0
    %1910 = vmatprep.mubr.f32.mxu0 0.0
    %1911 = vmatmul.mubr.f32.gmra.mrb[0].mxu0 %v1841
    %v1912 = vpop.f32.mrb[0].mxu0
    %v1913 = vadd.f32 0.0, %v1912
    %v1914 = vpop.f32.mrb[0].mxu0
    %1915 = vmatprep.mubr.f32.mxu0 0.0
    %1916 = vmatmul.mubr.f32.gmra.mrb[0].mxu0 %v1844
    %v1917 = vpop.f32.mrb[0].mxu0
    %v1918 = vadd.f32 0.0, %v1917
    %v1919 = vpop.f32.mrb[0].mxu0
    %1920 = vdwg.mxu0
    %v1922 = vsel %vm1258, %v1428, 0
    %v1925 = vsel %vm1258, %v1430, 0
    %1927 = vmatprep.subr.mxu0 0.0
    %1928 = vmatpush1.msra.mxu0 %v538
    %1929 = vmatprep.subr.mxu0 0.0
    %1930 = vmatpush1.msra.mxu0 %v540
    %1931 = vmatprep.subr.mxu0 0.0
    %1932 = vmatpush1.msra.mxu0 0.0
    %1933 = vmatprep.subr.mxu0 0.0
    %1934 = vmatpush1.msra.mxu0 0.0
    %1935 = vmatprep.subr.mxu0 0.0
    %1936 = vmatpush1.msra.mxu0 0.0
    %1937 = vmatprep.subr.mxu0 0.0
    %1938 = vmatpush1.msra.mxu0 0.0
    %1939 = vmatprep.subr.mxu0 0.0
    %1940 = vmatpush1.msra.mxu0 0.0
    %1941 = vmatprep.subr.mxu0 0.0
    %1942 = vmatpush1.msra.mxu0 0.0
    %1943 = vmatprep.subr.mxu0 0.0
    %1944 = vmatpush1.msra.mxu0 0.0
    %1945 = vmatprep.subr.mxu0 0.0
    %1946 = vmatpush1.msra.mxu0 0.0
    %1947 = vmatprep.subr.mxu0 0.0
    %1948 = vmatpush1.msra.mxu0 0.0
    %1949 = vmatprep.subr.mxu0 0.0
    %1950 = vmatpush1.msra.mxu0 0.0
    %1951 = vmatprep.subr.mxu0 0.0
    %1952 = vmatpush1.msra.mxu0 0.0
    %1953 = vmatprep.subr.mxu0 0.0
    %1954 = vmatpush1.msra.mxu0 0.0
    %1955 = vmatprep.subr.mxu0 0.0
    %1956 = vmatpush1.msra.mxu0 0.0
    %1957 = vmatprep.subr.mxu0 0.0
    %1958 = vmatpush1.msra.mxu0 0.0
    %1959 = vmatprep.subr.mxu0 0.0
    %1960 = vmatpush1.msra.mxu0 0.0
    %1961 = vmatprep.subr.mxu0 0.0
    %1962 = vmatpush1.msra.mxu0 0.0
    %1963 = vmatprep.subr.mxu0 0.0
    %1964 = vmatpush1.msra.mxu0 0.0
    %1965 = vmatprep.subr.mxu0 0.0
    %1966 = vmatpush1.msra.mxu0 0.0
    %1967 = vmatprep.subr.mxu0 0.0
    %1968 = vmatpush1.msra.mxu0 0.0
    %1969 = vmatprep.subr.mxu0 0.0
    %1970 = vmatpush1.msra.mxu0 0.0
    %1971 = vmatprep.subr.mxu0 0.0
    %1972 = vmatpush1.msra.mxu0 0.0
    %1973 = vmatprep.subr.mxu0 0.0
    %1974 = vmatpush1.msra.mxu0 0.0
    %1975 = vmatprep.subr.mxu0 0.0
    %1976 = vmatpush1.msra.mxu0 0.0
    %1977 = vmatprep.subr.mxu0 0.0
    %1978 = vmatpush1.msra.mxu0 0.0
    %1979 = vmatprep.subr.mxu0 0.0
    %1980 = vmatpush1.msra.mxu0 0.0
    %1981 = vmatprep.subr.mxu0 0.0
    %1982 = vmatpush1.msra.mxu0 0.0
    %1983 = vmatprep.subr.mxu0 0.0
    %1984 = vmatpush1.msra.mxu0 0.0
    %1985 = vmatprep.subr.mxu0 0.0
    %1986 = vmatpush1.msra.mxu0 0.0
    %1987 = vmatprep.subr.mxu0 0.0
    %1988 = vmatpush1.msra.mxu0 0.0
    %1989 = vmatprep.subr.mxu0 0.0
    %1990 = vmatpush1.msra.mxu0 0.0
    %1991 = vmatprep.mubr.f32.mxu0 0.0
    %1992 = vmatmul.mubr.f32.gmra.mrb[0].mxu0 %v1922
    %v1993 = vpop.f32.mrb[0].mxu0
    %v1994 = vadd.f32 0.0, %v1993
    %v1995 = vpop.f32.mrb[0].mxu0
    %1996 = vmatprep.mubr.f32.mxu0 0.0
    %1997 = vmatmul.mubr.f32.gmra.mrb[0].mxu0 %v1925
    %v1998 = vpop.f32.mrb[0].mxu0
    %v1999 = vadd.f32 0.0, %v1998
    %v2000 = vpop.f32.mrb[0].mxu0
    %2001 = vdwg.mxu0
    %v2003 = vsel %vm1258, %v1432, 0
    %v2006 = vsel %vm1258, %v1434, 0
    %2008 = vmatprep.subr.mxu0 0.0
    %2009 = vmatpush1.msra.mxu0 %v542
    %2010 = vmatprep.subr.mxu0 0.0
    %2011 = vmatpush1.msra.mxu0 %v544
    %2012 = vmatprep.subr.mxu0 0.0
    %2013 = vmatpush1.msra.mxu0 0.0
    %2014 = vmatprep.subr.mxu0 0.0
    %2015 = vmatpush1.msra.mxu0 0.0
    %2016 = vmatprep.subr.mxu0 0.0
    %2017 = vmatpush1.msra.mxu0 0.0
    %2018 = vmatprep.subr.mxu0 0.0
    %2019 = vmatpush1.msra.mxu0 0.0
    %2020 = vmatprep.subr.mxu0 0.0
    %2021 = vmatpush1.msra.mxu0 0.0
    %2022 = vmatprep.subr.mxu0 0.0
    %2023 = vmatpush1.msra.mxu0 0.0
    %2024 = vmatprep.subr.mxu0 0.0
    %2025 = vmatpush1.msra.mxu0 0.0
    %2026 = vmatprep.subr.mxu0 0.0
    %2027 = vmatpush1.msra.mxu0 0.0
    %2028 = vmatprep.subr.mxu0 0.0
    %2029 = vmatpush1.msra.mxu0 0.0
    %2030 = vmatprep.subr.mxu0 0.0
    %2031 = vmatpush1.msra.mxu0 0.0
    %2032 = vmatprep.subr.mxu0 0.0
    %2033 = vmatpush1.msra.mxu0 0.0
    %2034 = vmatprep.subr.mxu0 0.0
    %2035 = vmatpush1.msra.mxu0 0.0
    %2036 = vmatprep.subr.mxu0 0.0
    %2037 = vmatpush1.msra.mxu0 0.0
    %2038 = vmatprep.subr.mxu0 0.0
    %2039 = vmatpush1.msra.mxu0 0.0
    %2040 = vmatprep.subr.mxu0 0.0
    %2041 = vmatpush1.msra.mxu0 0.0
    %2042 = vmatprep.subr.mxu0 0.0
    %2043 = vmatpush1.msra.mxu0 0.0
    %2044 = vmatprep.subr.mxu0 0.0
    %2045 = vmatpush1.msra.mxu0 0.0
    %2046 = vmatprep.subr.mxu0 0.0
    %2047 = vmatpush1.msra.mxu0 0.0
    %2048 = vmatprep.subr.mxu0 0.0
    %2049 = vmatpush1.msra.mxu0 0.0
    %2050 = vmatprep.subr.mxu0 0.0
    %2051 = vmatpush1.msra.mxu0 0.0
    %2052 = vmatprep.subr.mxu0 0.0
    %2053 = vmatpush1.msra.mxu0 0.0
    %2054 = vmatprep.subr.mxu0 0.0
    %2055 = vmatpush1.msra.mxu0 0.0
    %2056 = vmatprep.subr.mxu0 0.0
    %2057 = vmatpush1.msra.mxu0 0.0
    %2058 = vmatprep.subr.mxu0 0.0
    %2059 = vmatpush1.msra.mxu0 0.0
    %2060 = vmatprep.subr.mxu0 0.0
    %2061 = vmatpush1.msra.mxu0 0.0
    %2062 = vmatprep.subr.mxu0 0.0
    %2063 = vmatpush1.msra.mxu0 0.0
    %2064 = vmatprep.subr.mxu0 0.0
    %2065 = vmatpush1.msra.mxu0 0.0
    %2066 = vmatprep.subr.mxu0 0.0
    %2067 = vmatpush1.msra.mxu0 0.0
    %2068 = vmatprep.subr.mxu0 0.0
    %2069 = vmatpush1.msra.mxu0 0.0
    %2070 = vmatprep.subr.mxu0 0.0
    %2071 = vmatpush1.msra.mxu0 0.0
    %2072 = vmatprep.mubr.f32.mxu0 0.0
    %2073 = vmatmul.mubr.f32.gmra.mrb[0].mxu0 %v2003
    %v2074 = vpop.f32.mrb[0].mxu0
    %v2075 = vadd.f32 0.0, %v2074
    %v2076 = vpop.f32.mrb[0].mxu0
    %2077 = vmatprep.mubr.f32.mxu0 0.0
    %2078 = vmatmul.mubr.f32.gmra.mrb[0].mxu0 %v2006
    %v2079 = vpop.f32.mrb[0].mxu0
    %v2080 = vadd.f32 0.0, %v2079
    %v2081 = vpop.f32.mrb[0].mxu0
    %2082 = vdwg.mxu0
    %2087 = vrot.lane.b32.xlu0 %v1670, 32
    %v2088 = vpop.permute.xlu0 %2087
    %2089 = vrot.lane.b32.xlu0 %v1675, 32
    %v2090 = vpop.permute.xlu0 %2089
    %2091 = vrot.lane.b32.xlu0 %v1751, 32
    %v2092 = vpop.permute.xlu0 %2091
    %2093 = vrot.lane.b32.xlu0 %v1756, 32
    %v2094 = vpop.permute.xlu0 %2093
    %2103 = vrot.lane.b32.xlu0 %v1832, 64
    %v2104 = vpop.permute.xlu0 %2103
    %2105 = vrot.lane.b32.xlu0 %v1837, 64
    %v2106 = vpop.permute.xlu0 %2105
    %2107 = vrot.lane.b32.xlu0 %v1913, 64
    %v2108 = vpop.permute.xlu0 %2107
    %2109 = vrot.lane.b32.xlu0 %v1918, 64
    %v2110 = vpop.permute.xlu0 %2109
    %2119 = vrot.lane.b32.xlu0 %v1994, 96
    %v2120 = vpop.permute.xlu0 %2119
    %2121 = vrot.lane.b32.xlu0 %v1999, 96
    %v2122 = vpop.permute.xlu0 %2121
    %2123 = vrot.lane.b32.xlu0 %v2075, 96
    %v2124 = vpop.permute.xlu0 %2123
    %2125 = vrot.lane.b32.xlu0 %v2080, 96
    %v2126 = vpop.permute.xlu0 %2125
    %v2131 = vsel %vm549, %v1508, %v2088
    %v2132 = vsel %vm549, %v1513, %v2090
    %v2133 = vsel %vm549, %v1589, %v2092
    %v2134 = vsel %vm549, %v1594, %v2094
    %vm2135 = vcmask 523264
    %v2136 = vsel %vm2135, %v2131, %v2104
    %v2137 = vsel %vm2135, %v2132, %v2106
    %v2138 = vsel %vm2135, %v2133, %v2108
    %v2139 = vsel %vm2135, %v2134, %v2110
    %vm2140 = vcmask 785408
    %v2141 = vsel %vm2140, %v2136, %v2120
    %v2142 = vsel %vm2140, %v2137, %v2122
    %v2143 = vsel %vm2140, %v2138, %v2124
    %v2144 = vsel %vm2140, %v2139, %v2126
    %v2145 = vpack.c.bf16 %v2142, %v2141
    %v2146 = vpack.c.bf16 %v2144, %v2143
    %v2147 = vlaneseq
    %v2148 = vshrl.u32 %v2147, 7
    %v2149 = vsub.s32 0, %v2148
    %v2150 = vrot.slane %v155, %v2149
    %v2167 = vunpack.c.l.b16 %v139
    %v2168 = vunpack.c.l.b16 %v140
    %v2169 = vunpack.c.l.b16 %v141
    %v2170 = vunpack.c.l.b16 %v142
    %v2171 = vunpack.c.l.b16 %v143
    %v2172 = vunpack.c.l.b16 %v144
    %v2173 = vunpack.c.l.b16 %v145
    %v2174 = vunpack.c.l.b16 %v146
    %v2175 = vunpack.c.l.b16 %v147
    %v2176 = vunpack.c.l.b16 %v148
    %v2177 = vunpack.c.l.b16 %v149
    %v2178 = vunpack.c.l.b16 %v150
    %v2179 = vunpack.c.l.b16 %v151
    %v2180 = vunpack.c.l.b16 %v152
    %v2181 = vunpack.c.l.b16 %v153
    %v2182 = vunpack.c.l.b16 %v154
    %v2183 = vpack.c.b16 %v2168, %v2167
    %v2184 = vpack.c.b16 %v2170, %v2169
    %v2185 = vpack.c.b16 %v2172, %v2171
    %v2186 = vpack.c.b16 %v2174, %v2173
    %v2187 = vpack.c.b16 %v2176, %v2175
    %v2188 = vpack.c.b16 %v2178, %v2177
    %v2189 = vpack.c.b16 %v2180, %v2179
    %v2190 = vpack.c.b16 %v2182, %v2181
    %2199 = vmatprep.subr.bf16.mxu0 0
    %2200 = vmatpush1.bf16.msra.mxu0 %v2183
    %2201 = vmatprep.subr.bf16.mxu0 0
    %2202 = vmatpush1.bf16.msra.mxu0 %v2184
    %2203 = vmatprep.subr.bf16.mxu0 0
    %2204 = vmatpush1.bf16.msra.mxu0 %v2185
    %2205 = vmatprep.subr.bf16.mxu0 0
    %2206 = vmatpush1.bf16.msra.mxu0 %v2186
    %2207 = vmatprep.subr.bf16.mxu0 0
    %2208 = vmatpush1.bf16.msra.mxu0 %v2187
    %2209 = vmatprep.subr.bf16.mxu0 0
    %2210 = vmatpush1.bf16.msra.mxu0 %v2188
    %2211 = vmatprep.subr.bf16.mxu0 0
    %2212 = vmatpush1.bf16.msra.mxu0 %v2189
    %2213 = vmatprep.subr.bf16.mxu0 0
    %2214 = vmatpush1.bf16.msra.mxu0 %v2190
    %2215 = vmatprep.subr.bf16.mxu0 0
    %2216 = vmatpush1.bf16.msra.mxu0 0
    %2217 = vmatprep.subr.bf16.mxu0 0
    %2218 = vmatpush1.bf16.msra.mxu0 0
    %2219 = vmatprep.subr.bf16.mxu0 0
    %2220 = vmatpush1.bf16.msra.mxu0 0
    %2221 = vmatprep.subr.bf16.mxu0 0
    %2222 = vmatpush1.bf16.msra.mxu0 0
    %2223 = vmatprep.subr.bf16.mxu0 0
    %2224 = vmatpush1.bf16.msra.mxu0 0
    %2225 = vmatprep.subr.bf16.mxu0 0
    %2226 = vmatpush1.bf16.msra.mxu0 0
    %2227 = vmatprep.subr.bf16.mxu0 0
    %2228 = vmatpush1.bf16.msra.mxu0 0
    %2229 = vmatprep.subr.bf16.mxu0 0
    %2230 = vmatpush1.bf16.msra.mxu0 0
    %2231 = vmatprep.mubr.bf16.mxu0 0
    %2232 = vmatmul.mubr.bf16.gmra.mrb[0].mxu0 %v2145
    %v2233 = vpop.f32.mrb[0].mxu0
    %v2234 = vadd.f32 %v2150, %v2233
    %v2235 = vpop.f32.mrb[0].mxu0
    %v2236 = vpop.f32.mrb[0].mxu0
    %v2237 = vadd.f32 %v2150, %v2236
    %v2238 = vpop.f32.mrb[0].mxu0
    %2239 = vmatprep.mubr.bf16.mxu0 0
    %2240 = vmatmul.mubr.bf16.gmra.mrb[0].mxu0 %v2146
    %v2241 = vpop.f32.mrb[0].mxu0
    %v2242 = vadd.f32 %v2150, %v2241
    %v2243 = vpop.f32.mrb[0].mxu0
    %v2244 = vpop.f32.mrb[0].mxu0
    %v2245 = vadd.f32 %v2150, %v2244
    %v2246 = vpop.f32.mrb[0].mxu0
    %2247 = vdwg.mxu0
    %v2248 = vadd.f32 %v100, %v2234
    %v2249 = vadd.f32 %v101, %v2237
    %v2250 = vadd.f32 %v102, %v2242
    %v2251 = vadd.f32 %v103, %v2245
    %2252 = vadd.xlane.f32.xlu0 %v2248
    %v2253 = vpop.xlane.xlu0 %2252
    %2254 = vadd.xlane.f32.xlu0 %v2249
    %v2255 = vpop.xlane.xlu0 %2254
    %2256 = vadd.xlane.f32.xlu0 %v2250
    %v2257 = vpop.xlane.xlu0 %2256
    %2258 = vadd.xlane.f32.xlu0 %v2251
    %v2259 = vpop.xlane.xlu0 %2258
    %v2260 = vmul.f32 %v2253, %v51
    %v2261 = vmul.f32 %v2255, %v51
    %v2262 = vmul.f32 %v2257, %v51
    %v2263 = vmul.f32 %v2259, %v51
    %v2264 = vsub.f32 %v2248, %v2260
    %v2265 = vsub.f32 %v2249, %v2261
    %v2266 = vsub.f32 %v2250, %v2262
    %v2267 = vsub.f32 %v2251, %v2263
    %v2268 = vmul.f32 %v2264, %v2264
    %v2269 = vmul.f32 %v2265, %v2265
    %v2270 = vmul.f32 %v2266, %v2266
    %v2271 = vmul.f32 %v2267, %v2267
    %2272 = vadd.xlane.f32.xlu0 %v2268
    %v2273 = vpop.xlane.xlu0 %2272
    %2274 = vadd.xlane.f32.xlu0 %v2269
    %v2275 = vpop.xlane.xlu0 %2274
    %2276 = vadd.xlane.f32.xlu0 %v2270
    %v2277 = vpop.xlane.xlu0 %2276
    %2278 = vadd.xlane.f32.xlu0 %v2271
    %v2279 = vpop.xlane.xlu0 %2278
    %v2280 = vmul.f32 %v2273, %v51
    %v2281 = vmul.f32 %v2275, %v51
    %v2282 = vmul.f32 %v2277, %v51
    %v2283 = vmul.f32 %v2279, %v51
    %v2284 = vadd.f32 %v2280, 1e-12
    %v2285 = vadd.f32 %v2281, 1e-12
    %v2286 = vadd.f32 %v2282, 1e-12
    %v2287 = vadd.f32 %v2283, 1e-12
    %v2288 = vrsqrt.pop %v2284
    %v2289 = vrsqrt.pop %v2285
    %v2290 = vrsqrt.pop %v2286
    %v2291 = vrsqrt.pop %v2287
    %v2292 = vmul.f32 %v2264, %v2288
    %v2293 = vmul.f32 %v2265, %v2289
    %v2294 = vmul.f32 %v2266, %v2290
    %v2295 = vmul.f32 %v2267, %v2291
    %v2296 = vlaneseq
    %v2297 = vshrl.u32 %v2296, 7
    %v2298 = vsub.s32 1, %v2297
    %v2299 = vrot.slane %v155, %v2298
    %v2300 = vmul.f32 %v2292, %v2299
    %v2301 = vmul.f32 %v2293, %v2299
    %v2302 = vmul.f32 %v2294, %v2299
    %v2303 = vmul.f32 %v2295, %v2299
    %v2304 = vlaneseq
    %v2305 = vshrl.u32 %v2304, 7
    %v2306 = vsub.s32 2, %v2305
    %v2307 = vrot.slane %v155, %v2306
    %v2308 = vadd.f32 %v2300, %v2307
    %v2309 = vadd.f32 %v2301, %v2307
    %v2310 = vadd.f32 %v2302, %v2307
    %v2311 = vadd.f32 %v2303, %v2307
    %v2312 = vpack.c.bf16 %v2309, %v2308
    %v2313 = vpack.c.bf16 %v2311, %v2310
    %v2315 = vlaneseq
    %v2316 = vshrl.u32 %v2315, 7
    %v2317 = vsub.s32 0, %v2316
    %v2318 = vrot.slane %v172, %v2317
    %v2319 = vlaneseq
    %v2320 = vshrl.u32 %v2319, 7
    %v2321 = vsub.s32 1, %v2320
    %v2322 = vrot.slane %v172, %v2321
    %v2341 = vunpack.c.l.b16 %v156
    %v2342 = vunpack.c.h.b16 %v156
    %v2343 = vunpack.c.l.b16 %v157
    %v2344 = vunpack.c.h.b16 %v157
    %v2345 = vunpack.c.l.b16 %v158
    %v2346 = vunpack.c.h.b16 %v158
    %v2347 = vunpack.c.l.b16 %v159
    %v2348 = vunpack.c.h.b16 %v159
    %v2349 = vunpack.c.l.b16 %v160
    %v2350 = vunpack.c.h.b16 %v160
    %v2351 = vunpack.c.l.b16 %v161
    %v2352 = vunpack.c.h.b16 %v161
    %v2353 = vunpack.c.l.b16 %v162
    %v2354 = vunpack.c.h.b16 %v162
    %v2355 = vunpack.c.l.b16 %v163
    %v2356 = vunpack.c.h.b16 %v163
    %v2357 = vunpack.c.l.b16 %v164
    %v2358 = vunpack.c.h.b16 %v164
    %v2359 = vunpack.c.l.b16 %v165
    %v2360 = vunpack.c.h.b16 %v165
    %v2361 = vunpack.c.l.b16 %v166
    %v2362 = vunpack.c.h.b16 %v166
    %v2363 = vunpack.c.l.b16 %v167
    %v2364 = vunpack.c.h.b16 %v167
    %v2365 = vunpack.c.l.b16 %v168
    %v2366 = vunpack.c.h.b16 %v168
    %v2367 = vunpack.c.l.b16 %v169
    %v2368 = vunpack.c.h.b16 %v169
    %v2369 = vunpack.c.l.b16 %v170
    %v2370 = vunpack.c.h.b16 %v170
    %v2371 = vunpack.c.l.b16 %v171
    %v2372 = vunpack.c.h.b16 %v171
    %v2373 = vpack.c.b16 %v2343, %v2341
    %v2374 = vpack.c.b16 %v2344, %v2342
    %v2375 = vpack.c.b16 %v2347, %v2345
    %v2376 = vpack.c.b16 %v2348, %v2346
    %v2377 = vpack.c.b16 %v2351, %v2349
    %v2378 = vpack.c.b16 %v2352, %v2350
    %v2379 = vpack.c.b16 %v2355, %v2353
    %v2380 = vpack.c.b16 %v2356, %v2354
    %v2381 = vpack.c.b16 %v2359, %v2357
    %v2382 = vpack.c.b16 %v2360, %v2358
    %v2383 = vpack.c.b16 %v2363, %v2361
    %v2384 = vpack.c.b16 %v2364, %v2362
    %v2385 = vpack.c.b16 %v2367, %v2365
    %v2386 = vpack.c.b16 %v2368, %v2366
    %v2387 = vpack.c.b16 %v2371, %v2369
    %v2388 = vpack.c.b16 %v2372, %v2370
    %2405 = vmatprep.subr.bf16.mxu0 %v2374
    %2406 = vmatpush1.bf16.msra.mxu0 %v2373
    %2407 = vmatprep.subr.bf16.mxu0 %v2376
    %2408 = vmatpush1.bf16.msra.mxu0 %v2375
    %2409 = vmatprep.subr.bf16.mxu0 %v2378
    %2410 = vmatpush1.bf16.msra.mxu0 %v2377
    %2411 = vmatprep.subr.bf16.mxu0 %v2380
    %2412 = vmatpush1.bf16.msra.mxu0 %v2379
    %2413 = vmatprep.subr.bf16.mxu0 %v2382
    %2414 = vmatpush1.bf16.msra.mxu0 %v2381
    %2415 = vmatprep.subr.bf16.mxu0 %v2384
    %2416 = vmatpush1.bf16.msra.mxu0 %v2383
    %2417 = vmatprep.subr.bf16.mxu0 %v2386
    %2418 = vmatpush1.bf16.msra.mxu0 %v2385
    %2419 = vmatprep.subr.bf16.mxu0 %v2388
    %2420 = vmatpush1.bf16.msra.mxu0 %v2387
    %2421 = vmatprep.subr.bf16.mxu0 0
    %2422 = vmatpush1.bf16.msra.mxu0 0
    %2423 = vmatprep.subr.bf16.mxu0 0
    %2424 = vmatpush1.bf16.msra.mxu0 0
    %2425 = vmatprep.subr.bf16.mxu0 0
    %2426 = vmatpush1.bf16.msra.mxu0 0
    %2427 = vmatprep.subr.bf16.mxu0 0
    %2428 = vmatpush1.bf16.msra.mxu0 0
    %2429 = vmatprep.subr.bf16.mxu0 0
    %2430 = vmatpush1.bf16.msra.mxu0 0
    %2431 = vmatprep.subr.bf16.mxu0 0
    %2432 = vmatpush1.bf16.msra.mxu0 0
    %2433 = vmatprep.subr.bf16.mxu0 0
    %2434 = vmatpush1.bf16.msra.mxu0 0
    %2435 = vmatprep.subr.bf16.mxu0 0
    %2436 = vmatpush1.bf16.msra.mxu0 0
    %2437 = vmatprep.mubr.bf16.mxu0 0
    %2438 = vmatmul.mubr.bf16.gmra.mrb[0].mxu0 %v2312
    %v2439 = vpop.f32.mrb[0].mxu0
    %v2440 = vadd.f32 %v2318, %v2439
    %v2441 = vpop.f32.mrb[0].mxu0
    %v2442 = vadd.f32 %v2322, %v2441
    %v2443 = vpop.f32.mrb[0].mxu0
    %v2444 = vadd.f32 %v2318, %v2443
    %v2445 = vpop.f32.mrb[0].mxu0
    %v2446 = vadd.f32 %v2322, %v2445
    %2447 = vmatprep.mubr.bf16.mxu0 0
    %2448 = vmatmul.mubr.bf16.gmra.mrb[0].mxu0 %v2313
    %v2449 = vpop.f32.mrb[0].mxu0
    %v2450 = vadd.f32 %v2318, %v2449
    %v2451 = vpop.f32.mrb[0].mxu0
    %v2452 = vadd.f32 %v2322, %v2451
    %v2453 = vpop.f32.mrb[0].mxu0
    %v2454 = vadd.f32 %v2318, %v2453
    %v2455 = vpop.f32.mrb[0].mxu0
    %v2456 = vadd.f32 %v2322, %v2455
    %2457 = vdwg.mxu0
    %v2458 = vmul.f32 %v2440, %v2440
    %v2459 = vmul.f32 %v2442, %v2442
    %v2460 = vmul.f32 %v2444, %v2444
    %v2461 = vmul.f32 %v2446, %v2446
    %v2462 = vmul.f32 %v2450, %v2450
    %v2463 = vmul.f32 %v2452, %v2452
    %v2464 = vmul.f32 %v2454, %v2454
    %v2465 = vmul.f32 %v2456, %v2456
    %v2466 = vmul.f32 %v2440, %v2458
    %v2467 = vmul.f32 %v2442, %v2459
    %v2468 = vmul.f32 %v2444, %v2460
    %v2469 = vmul.f32 %v2446, %v2461
    %v2470 = vmul.f32 %v2450, %v2462
    %v2471 = vmul.f32 %v2452, %v2463
    %v2472 = vmul.f32 %v2454, %v2464
    %v2473 = vmul.f32 %v2456, %v2465
    %v2474 = vmul.f32 %v2466, 0.044715
    %v2475 = vmul.f32 %v2467, 0.044715
    %v2476 = vmul.f32 %v2468, 0.044715
    %v2477 = vmul.f32 %v2469, 0.044715
    %v2478 = vmul.f32 %v2470, 0.044715
    %v2479 = vmul.f32 %v2471, 0.044715
    %v2480 = vmul.f32 %v2472, 0.044715
    %v2481 = vmul.f32 %v2473, 0.044715
    %v2482 = vadd.f32 %v2440, %v2474
    %v2483 = vadd.f32 %v2442, %v2475
    %v2484 = vadd.f32 %v2444, %v2476
    %v2485 = vadd.f32 %v2446, %v2477
    %v2486 = vadd.f32 %v2450, %v2478
    %v2487 = vadd.f32 %v2452, %v2479
    %v2488 = vadd.f32 %v2454, %v2480
    %v2489 = vadd.f32 %v2456, %v2481
    %v2490 = vmul.f32 %v2482, 0.7978846
    %v2491 = vmul.f32 %v2483, 0.7978846
    %v2492 = vmul.f32 %v2484, 0.7978846
    %v2493 = vmul.f32 %v2485, 0.7978846
    %v2494 = vmul.f32 %v2486, 0.7978846
    %v2495 = vmul.f32 %v2487, 0.7978846
    %v2496 = vmul.f32 %v2488, 0.7978846
    %v2497 = vmul.f32 %v2489, 0.7978846
    %v2498 = vtanh.pop %v2490
    %v2499 = vtanh.pop %v2491
    %v2500 = vtanh.pop %v2492
    %v2501 = vtanh.pop %v2493
    %v2502 = vtanh.pop %v2494
    %v2503 = vtanh.pop %v2495
    %v2504 = vtanh.pop %v2496
    %v2505 = vtanh.pop %v2497
    %v2506 = vadd.f32 %v2498, 1.0
    %v2507 = vadd.f32 %v2499, 1.0
    %v2508 = vadd.f32 %v2500, 1.0
    %v2509 = vadd.f32 %v2501, 1.0
    %v2510 = vadd.f32 %v2502, 1.0
    %v2511 = vadd.f32 %v2503, 1.0
    %v2512 = vadd.f32 %v2504, 1.0
    %v2513 = vadd.f32 %v2505, 1.0
    %v2514 = vmul.f32 %v2506, 0.5
    %v2515 = vmul.f32 %v2507, 0.5
    %v2516 = vmul.f32 %v2508, 0.5
    %v2517 = vmul.f32 %v2509, 0.5
    %v2518 = vmul.f32 %v2510, 0.5
    %v2519 = vmul.f32 %v2511, 0.5
    %v2520 = vmul.f32 %v2512, 0.5
    %v2521 = vmul.f32 %v2513, 0.5
    %v2522 = vmul.f32 %v2440, %v2514
    %v2523 = vmul.f32 %v2442, %v2515
    %v2524 = vmul.f32 %v2444, %v2516
    %v2525 = vmul.f32 %v2446, %v2517
    %v2526 = vmul.f32 %v2450, %v2518
    %v2527 = vmul.f32 %v2452, %v2519
    %v2528 = vmul.f32 %v2454, %v2520
    %v2529 = vmul.f32 %v2456, %v2521
    %v2530 = vpack.c.bf16 %v2524, %v2522
    %v2531 = vpack.c.bf16 %v2525, %v2523
    %v2532 = vpack.c.bf16 %v2528, %v2526
    %v2533 = vpack.c.bf16 %v2529, %v2527
    %v2534 = vlaneseq
    %v2535 = vshrl.u32 %v2534, 7
    %v2536 = vsub.s32 3, %v2535
    %v2537 = vrot.slane %v155, %v2536
    %v2570 = vunpack.c.l.b16 %v173
    %v2571 = vunpack.c.l.b16 %v174
    %v2572 = vunpack.c.l.b16 %v175
    %v2573 = vunpack.c.l.b16 %v176
    %v2574 = vunpack.c.l.b16 %v177
    %v2575 = vunpack.c.l.b16 %v178
    %v2576 = vunpack.c.l.b16 %v179
    %v2577 = vunpack.c.l.b16 %v180
    %v2578 = vunpack.c.l.b16 %v181
    %v2579 = vunpack.c.l.b16 %v182
    %v2580 = vunpack.c.l.b16 %v183
    %v2581 = vunpack.c.l.b16 %v184
    %v2582 = vunpack.c.l.b16 %v185
    %v2583 = vunpack.c.l.b16 %v186
    %v2584 = vunpack.c.l.b16 %v187
    %v2585 = vunpack.c.l.b16 %v188
    %v2586 = vunpack.c.l.b16 %v189
    %v2587 = vunpack.c.l.b16 %v190
    %v2588 = vunpack.c.l.b16 %v191
    %v2589 = vunpack.c.l.b16 %v192
    %v2590 = vunpack.c.l.b16 %v193
    %v2591 = vunpack.c.l.b16 %v194
    %v2592 = vunpack.c.l.b16 %v195
    %v2593 = vunpack.c.l.b16 %v196
    %v2594 = vunpack.c.l.b16 %v197
    %v2595 = vunpack.c.l.b16 %v198
    %v2596 = vunpack.c.l.b16 %v199
    %v2597 = vunpack.c.l.b16 %v200
    %v2598 = vunpack.c.l.b16 %v201
    %v2599 = vunpack.c.l.b16 %v202
    %v2600 = vunpack.c.l.b16 %v203
    %v2601 = vunpack.c.l.b16 %v204
    %v2602 = vpack.c.b16 %v2571, %v2570
    %v2603 = vpack.c.b16 %v2573, %v2572
    %v2604 = vpack.c.b16 %v2575, %v2574
    %v2605 = vpack.c.b16 %v2577, %v2576
    %v2606 = vpack.c.b16 %v2579, %v2578
    %v2607 = vpack.c.b16 %v2581, %v2580
    %v2608 = vpack.c.b16 %v2583, %v2582
    %v2609 = vpack.c.b16 %v2585, %v2584
    %v2610 = vpack.c.b16 %v2587, %v2586
    %v2611 = vpack.c.b16 %v2589, %v2588
    %v2612 = vpack.c.b16 %v2591, %v2590
    %v2613 = vpack.c.b16 %v2593, %v2592
    %v2614 = vpack.c.b16 %v2595, %v2594
    %v2615 = vpack.c.b16 %v2597, %v2596
    %v2616 = vpack.c.b16 %v2599, %v2598
    %v2617 = vpack.c.b16 %v2601, %v2600
    %2634 = vmatprep.subr.bf16.mxu0 0
    %2635 = vmatpush1.bf16.msra.mxu0 %v2602
    %2636 = vmatprep.subr.bf16.mxu0 0
    %2637 = vmatpush1.bf16.msra.mxu0 %v2603
    %2638 = vmatprep.subr.bf16.mxu0 0
    %2639 = vmatpush1.bf16.msra.mxu0 %v2604
    %2640 = vmatprep.subr.bf16.mxu0 0
    %2641 = vmatpush1.bf16.msra.mxu0 %v2605
    %2642 = vmatprep.subr.bf16.mxu0 0
    %2643 = vmatpush1.bf16.msra.mxu0 %v2606
    %2644 = vmatprep.subr.bf16.mxu0 0
    %2645 = vmatpush1.bf16.msra.mxu0 %v2607
    %2646 = vmatprep.subr.bf16.mxu0 0
    %2647 = vmatpush1.bf16.msra.mxu0 %v2608
    %2648 = vmatprep.subr.bf16.mxu0 0
    %2649 = vmatpush1.bf16.msra.mxu0 %v2609
    %2650 = vmatprep.subr.bf16.mxu0 0
    %2651 = vmatpush1.bf16.msra.mxu0 %v2610
    %2652 = vmatprep.subr.bf16.mxu0 0
    %2653 = vmatpush1.bf16.msra.mxu0 %v2611
    %2654 = vmatprep.subr.bf16.mxu0 0
    %2655 = vmatpush1.bf16.msra.mxu0 %v2612
    %2656 = vmatprep.subr.bf16.mxu0 0
    %2657 = vmatpush1.bf16.msra.mxu0 %v2613
    %2658 = vmatprep.subr.bf16.mxu0 0
    %2659 = vmatpush1.bf16.msra.mxu0 %v2614
    %2660 = vmatprep.subr.bf16.mxu0 0
    %2661 = vmatpush1.bf16.msra.mxu0 %v2615
    %2662 = vmatprep.subr.bf16.mxu0 0
    %2663 = vmatpush1.bf16.msra.mxu0 %v2616
    %2664 = vmatprep.subr.bf16.mxu0 0
    %2665 = vmatpush1.bf16.msra.mxu0 %v2617
    %2666 = vmatprep.mubr.bf16.mxu0 %v2531
    %2667 = vmatmul.mubr.bf16.gmra.mrb[0].mxu0 %v2530
    %v2668 = vpop.f32.mrb[0].mxu0
    %v2669 = vadd.f32 %v2537, %v2668
    %v2670 = vpop.f32.mrb[0].mxu0
    %v2671 = vpop.f32.mrb[0].mxu0
    %v2672 = vadd.f32 %v2537, %v2671
    %v2673 = vpop.f32.mrb[0].mxu0
    %2674 = vmatprep.mubr.bf16.mxu0 %v2533
    %2675 = vmatmul.mubr.bf16.gmra.mrb[0].mxu0 %v2532
    %v2676 = vpop.f32.mrb[0].mxu0
    %v2677 = vadd.f32 %v2537, %v2676
    %v2678 = vpop.f32.mrb[0].mxu0
    %v2679 = vpop.f32.mrb[0].mxu0
    %v2680 = vadd.f32 %v2537, %v2679
    %v2681 = vpop.f32.mrb[0].mxu0
    %2682 = vdwg.mxu0
    %v2683 = vadd.f32 %v2308, %v2669
    %v2684 = vadd.f32 %v2309, %v2672
    %v2685 = vadd.f32 %v2310, %v2677
    %v2686 = vadd.f32 %v2311, %v2680
    %2687 = vadd.xlane.f32.xlu0 %v2683
    %v2688 = vpop.xlane.xlu0 %2687
    %2689 = vadd.xlane.f32.xlu0 %v2684
    %v2690 = vpop.xlane.xlu0 %2689
    %2691 = vadd.xlane.f32.xlu0 %v2685
    %v2692 = vpop.xlane.xlu0 %2691
    %2693 = vadd.xlane.f32.xlu0 %v2686
    %v2694 = vpop.xlane.xlu0 %2693
    %v2695 = vmul.f32 %v2688, %v51
    %v2696 = vmul.f32 %v2690, %v51
    %v2697 = vmul.f32 %v2692, %v51
    %v2698 = vmul.f32 %v2694, %v51
    %v2699 = vsub.f32 %v2683, %v2695
    %v2700 = vsub.f32 %v2684, %v2696
    %v2701 = vsub.f32 %v2685, %v2697
    %v2702 = vsub.f32 %v2686, %v2698
    %v2703 = vmul.f32 %v2699, %v2699
    %v2704 = vmul.f32 %v2700, %v2700
    %v2705 = vmul.f32 %v2701, %v2701
    %v2706 = vmul.f32 %v2702, %v2702
    %2707 = vadd.xlane.f32.xlu0 %v2703
    %v2708 = vpop.xlane.xlu0 %2707
    %2709 = vadd.xlane.f32.xlu0 %v2704
    %v2710 = vpop.xlane.xlu0 %2709
    %2711 = vadd.xlane.f32.xlu0 %v2705
    %v2712 = vpop.xlane.xlu0 %2711
    %2713 = vadd.xlane.f32.xlu0 %v2706
    %v2714 = vpop.xlane.xlu0 %2713
    %v2715 = vmul.f32 %v2708, %v51
    %v2716 = vmul.f32 %v2710, %v51
    %v2717 = vmul.f32 %v2712, %v51
    %v2718 = vmul.f32 %v2714, %v51
    %v2719 = vadd.f32 %v2715, 1e-12
    %v2720 = vadd.f32 %v2716, 1e-12
    %v2721 = vadd.f32 %v2717, 1e-12
    %v2722 = vadd.f32 %v2718, 1e-12
    %v2723 = vrsqrt.pop %v2719
    %v2724 = vrsqrt.pop %v2720
    %v2725 = vrsqrt.pop %v2721
    %v2726 = vrsqrt.pop %v2722
    %v2727 = vmul.f32 %v2699, %v2723
    %v2728 = vmul.f32 %v2700, %v2724
    %v2729 = vmul.f32 %v2701, %v2725
    %v2730 = vmul.f32 %v2702, %v2726
    %v2731 = vlaneseq
    %v2732 = vshrl.u32 %v2731, 7
    %v2733 = vsub.s32 4, %v2732
    %v2734 = vrot.slane %v155, %v2733
    %v2735 = vmul.f32 %v2727, %v2734
    %v2736 = vmul.f32 %v2728, %v2734
    %v2737 = vmul.f32 %v2729, %v2734
    %v2738 = vmul.f32 %v2730, %v2734
    %v2739 = vlaneseq
    %v2740 = vshrl.u32 %v2739, 7
    %v2741 = vsub.s32 5, %v2740
    %v2742 = vrot.slane %v155, %v2741
    %v2743 = vadd.f32 %v2735, %v2742
    %v2744 = vadd.f32 %v2736, %v2742
    %v2745 = vadd.f32 %v2737, %v2742
    %v2746 = vadd.f32 %v2738, %v2742
    %s2747 = scalar_lea.vmem %s3, 192
    %v2748 = vld [vmem:[%s2747] sm:$0xff]
    %v2749 = vld [vmem:[%s2747 + $0x8] sm:$0xf]
    %v2750 = vld [vmem:[%s2747 + $0xc] sm:$0xff]
    %v2751 = vld [vmem:[%s2747 + $0x14] sm:$0xf]
    %v2752 = vld [vmem:[%s2747 + $0x18] sm:$0xff]
    %v2753 = vld [vmem:[%s2747 + $0x20] sm:$0xf]
    %v2754 = vld [vmem:[%s2747 + $0x24] sm:$0xff]
    %v2755 = vld [vmem:[%s2747 + $0x2c] sm:$0xf]
    %v2756 = vld [vmem:[%s2747 + $0x30] sm:$0xff]
    %v2757 = vld [vmem:[%s2747 + $0x38] sm:$0xf]
    %v2758 = vld [vmem:[%s2747 + $0x3c] sm:$0xff]
    %v2759 = vld [vmem:[%s2747 + $0x44] sm:$0xf]
    %v2760 = vld [vmem:[%s2747 + $0x48] sm:$0xff]
    %v2761 = vld [vmem:[%s2747 + $0x50] sm:$0xf]
    %v2762 = vld [vmem:[%s2747 + $0x54] sm:$0xff]
    %v2763 = vld [vmem:[%s2747 + $0x5c] sm:$0xf]
    %v2764 = vld [vmem:[%s2747 + $0x60] sm:$0xff]
    %v2765 = vld [vmem:[%s2747 + $0x68] sm:$0xf]
    %v2766 = vld [vmem:[%s2747 + $0x6c] sm:$0xff]
    %v2767 = vld [vmem:[%s2747 + $0x74] sm:$0xf]
    %v2768 = vld [vmem:[%s2747 + $0x78] sm:$0xff]
    %v2769 = vld [vmem:[%s2747 + $0x80] sm:$0xf]
    %v2770 = vld [vmem:[%s2747 + $0x84] sm:$0xff]
    %v2771 = vld [vmem:[%s2747 + $0x8c] sm:$0xf]
    %v2772 = vld [vmem:[%s2747 + $0x90] sm:$0xff]
    %v2773 = vld [vmem:[%s2747 + $0x98] sm:$0xf]
    %v2774 = vld [vmem:[%s2747 + $0x9c] sm:$0xff]
    %v2775 = vld [vmem:[%s2747 + $0xa4] sm:$0xf]
    %v2776 = vld [vmem:[%s2747 + $0xa8] sm:$0xff]
    %v2777 = vld [vmem:[%s2747 + $0xb0] sm:$0xf]
    %v2778 = vld [vmem:[%s2747 + $0xb4] sm:$0xff]
    %v2779 = vld [vmem:[%s2747 + $0xbc] sm:$0xf]
    %s2780 = scalar_lea.vmem %s4, 3
    %v2781 = vld [vmem:[%s2780] sm:$0x7]
    %s2782 = scalar_lea.vmem %s5, 64
    %v2783 = vld [vmem:[%s2782] sm:$0xf]
    %v2784 = vld [vmem:[%s2782 + $0x4] sm:$0xf]
    %v2785 = vld [vmem:[%s2782 + $0x8] sm:$0xf]
    %v2786 = vld [vmem:[%s2782 + $0xc] sm:$0xf]
    %v2787 = vld [vmem:[%s2782 + $0x10] sm:$0xf]
    %v2788 = vld [vmem:[%s2782 + $0x14] sm:$0xf]
    %v2789 = vld [vmem:[%s2782 + $0x18] sm:$0xf]
    %v2790 = vld [vmem:[%s2782 + $0x1c] sm:$0xf]
    %v2791 = vld [vmem:[%s2782 + $0x20] sm:$0xf]
    %v2792 = vld [vmem:[%s2782 + $0x24] sm:$0xf]
    %v2793 = vld [vmem:[%s2782 + $0x28] sm:$0xf]
    %v2794 = vld [vmem:[%s2782 + $0x2c] sm:$0xf]
    %v2795 = vld [vmem:[%s2782 + $0x30] sm:$0xf]
    %v2796 = vld [vmem:[%s2782 + $0x34] sm:$0xf]
    %v2797 = vld [vmem:[%s2782 + $0x38] sm:$0xf]
    %v2798 = vld [vmem:[%s2782 + $0x3c] sm:$0xf]
    %s2799 = scalar_lea.vmem %s6, 8
    %v2800 = vld [vmem:[%s2799] sm:$0x3f]
    %s2801 = scalar_lea.vmem %s7, 128
    %v2802 = vld [vmem:[%s2801] sm:$0xff]
    %v2803 = vld [vmem:[%s2801 + $0x8] sm:$0xff]
    %v2804 = vld [vmem:[%s2801 + $0x10] sm:$0xff]
    %v2805 = vld [vmem:[%s2801 + $0x18] sm:$0xff]
    %v2806 = vld [vmem:[%s2801 + $0x20] sm:$0xff]
    %v2807 = vld [vmem:[%s2801 + $0x28] sm:$0xff]
    %v2808 = vld [vmem:[%s2801 + $0x30] sm:$0xff]
    %v2809 = vld [vmem:[%s2801 + $0x38] sm:$0xff]
    %v2810 = vld [vmem:[%s2801 + $0x40] sm:$0xff]
    %v2811 = vld [vmem:[%s2801 + $0x48] sm:$0xff]
    %v2812 = vld [vmem:[%s2801 + $0x50] sm:$0xff]
    %v2813 = vld [vmem:[%s2801 + $0x58] sm:$0xff]
    %v2814 = vld [vmem:[%s2801 + $0x60] sm:$0xff]
    %v2815 = vld [vmem:[%s2801 + $0x68] sm:$0xff]
    %v2816 = vld [vmem:[%s2801 + $0x70] sm:$0xff]
    %v2817 = vld [vmem:[%s2801 + $0x78] sm:$0xff]
    %s2818 = scalar_lea.vmem %s8, 2
    %v2819 = vld [vmem:[%s2818] sm:$0x3]
    %s2820 = scalar_lea.vmem %s9, 128
    %v2821 = vld [vmem:[%s2820] sm:$0xf]
    %v2822 = vld [vmem:[%s2820 + $0x4] sm:$0xf]
    %v2823 = vld [vmem:[%s2820 + $0x8] sm:$0xf]
    %v2824 = vld [vmem:[%s2820 + $0xc] sm:$0xf]
    %v2825 = vld [vmem:[%s2820 + $0x10] sm:$0xf]
    %v2826 = vld [vmem:[%s2820 + $0x14] sm:$0xf]
    %v2827 = vld [vmem:[%s2820 + $0x18] sm:$0xf]
    %v2828 = vld [vmem:[%s2820 + $0x1c] sm:$0xf]
    %v2829 = vld [vmem:[%s2820 + $0x20] sm:$0xf]
    %v2830 = vld [vmem:[%s2820 + $0x24] sm:$0xf]
    %v2831 = vld [vmem:[%s2820 + $0x28] sm:$0xf]
    %v2832 = vld [vmem:[%s2820 + $0x2c] sm:$0xf]
    %v2833 = vld [vmem:[%s2820 + $0x30] sm:$0xf]
    %v2834 = vld [vmem:[%s2820 + $0x34] sm:$0xf]
    %v2835 = vld [vmem:[%s2820 + $0x38] sm:$0xf]
    %v2836 = vld [vmem:[%s2820 + $0x3c] sm:$0xf]
    %v2837 = vld [vmem:[%s2820 + $0x40] sm:$0xf]
    %v2838 = vld [vmem:[%s2820 + $0x44] sm:$0xf]
    %v2839 = vld [vmem:[%s2820 + $0x48] sm:$0xf]
    %v2840 = vld [vmem:[%s2820 + $0x4c] sm:$0xf]
    %v2841 = vld [vmem:[%s2820 + $0x50] sm:$0xf]
    %v2842 = vld [vmem:[%s2820 + $0x54] sm:$0xf]
    %v2843 = vld [vmem:[%s2820 + $0x58] sm:$0xf]
    %v2844 = vld [vmem:[%s2820 + $0x5c] sm:$0xf]
    %v2845 = vld [vmem:[%s2820 + $0x60] sm:$0xf]
    %v2846 = vld [vmem:[%s2820 + $0x64] sm:$0xf]
    %v2847 = vld [vmem:[%s2820 + $0x68] sm:$0xf]
    %v2848 = vld [vmem:[%s2820 + $0x6c] sm:$0xf]
    %v2849 = vld [vmem:[%s2820 + $0x70] sm:$0xf]
    %v2850 = vld [vmem:[%s2820 + $0x74] sm:$0xf]
    %v2851 = vld [vmem:[%s2820 + $0x78] sm:$0xf]
    %v2852 = vld [vmem:[%s2820 + $0x7c] sm:$0xf]
    %v2853 = vpack.c.bf16 %v2744, %v2743
    %v2854 = vpack.c.bf16 %v2746, %v2745
    %v2856 = vlaneseq
    %v2857 = vshrl.u32 %v2856, 7
    %v2858 = vsub.s32 0, %v2857
    %v2859 = vrot.slane %v2781, %v2858
    %v2860 = vlaneseq
    %v2861 = vshrl.u32 %v2860, 7
    %v2862 = vsub.s32 1, %v2861
    %v2863 = vrot.slane %v2781, %v2862
    %v2864 = vlaneseq
    %v2865 = vshrl.u32 %v2864, 7
    %v2866 = vsub.s32 2, %v2865
    %v2867 = vrot.slane %v2781, %v2866
    %v2903 = vunpack.c.l.b16 %v2748
    %v2904 = vunpack.c.h.b16 %v2748
    %v2905 = vunpack.c.l.b16 %v2749
    %v2906 = vunpack.c.l.b16 %v2750
    %v2907 = vunpack.c.h.b16 %v2750
    %v2908 = vunpack.c.l.b16 %v2751
    %v2909 = vunpack.c.l.b16 %v2752
    %v2910 = vunpack.c.h.b16 %v2752
    %v2911 = vunpack.c.l.b16 %v2753
    %v2912 = vunpack.c.l.b16 %v2754
    %v2913 = vunpack.c.h.b16 %v2754
    %v2914 = vunpack.c.l.b16 %v2755
    %v2915 = vunpack.c.l.b16 %v2756
    %v2916 = vunpack.c.h.b16 %v2756
    %v2917 = vunpack.c.l.b16 %v2757
    %v2918 = vunpack.c.l.b16 %v2758
    %v2919 = vunpack.c.h.b16 %v2758
    %v2920 = vunpack.c.l.b16 %v2759
    %v2921 = vunpack.c.l.b16 %v2760
    %v2922 = vunpack.c.h.b16 %v2760
    %v2923 = vunpack.c.l.b16 %v2761
    %v2924 = vunpack.c.l.b16 %v2762
    %v2925 = vunpack.c.h.b16 %v2762
    %v2926 = vunpack.c.l.b16 %v2763
    %v2927 = vunpack.c.l.b16 %v2764
    %v2928 = vunpack.c.h.b16 %v2764
    %v2929 = vunpack.c.l.b16 %v2765
    %v2930 = vunpack.c.l.b16 %v2766
    %v2931 = vunpack.c.h.b16 %v2766
    %v2932 = vunpack.c.l.b16 %v2767
    %v2933 = vunpack.c.l.b16 %v2768
    %v2934 = vunpack.c.h.b16 %v2768
    %v2935 = vunpack.c.l.b16 %v2769
    %v2936 = vunpack.c.l.b16 %v2770
    %v2937 = vunpack.c.h.b16 %v2770
    %v2938 = vunpack.c.l.b16 %v2771
    %v2939 = vunpack.c.l.b16 %v2772
    %v2940 = vunpack.c.h.b16 %v2772
    %v2941 = vunpack.c.l.b16 %v2773
    %v2942 = vunpack.c.l.b16 %v2774
    %v2943 = vunpack.c.h.b16 %v2774
    %v2944 = vunpack.c.l.b16 %v2775
    %v2945 = vunpack.c.l.b16 %v2776
    %v2946 = vunpack.c.h.b16 %v2776
    %v2947 = vunpack.c.l.b16 %v2777
    %v2948 = vunpack.c.l.b16 %v2778
    %v2949 = vunpack.c.h.b16 %v2778
    %v2950 = vunpack.c.l.b16 %v2779
    %v2951 = vpack.c.b16 %v2906, %v2903
    %v2952 = vpack.c.b16 %v2907, %v2904
    %v2953 = vpack.c.b16 %v2908, %v2905
    %v2954 = vpack.c.b16 %v2912, %v2909
    %v2955 = vpack.c.b16 %v2913, %v2910
    %v2956 = vpack.c.b16 %v2914, %v2911
    %v2957 = vpack.c.b16 %v2918, %v2915
    %v2958 = vpack.c.b16 %v2919, %v2916
    %v2959 = vpack.c.b16 %v2920, %v2917
    %v2960 = vpack.c.b16 %v2924, %v2921
    %v2961 = vpack.c.b16 %v2925, %v2922
    %v2962 = vpack.c.b16 %v2926, %v2923
    %v2963 = vpack.c.b16 %v2930, %v2927
    %v2964 = vpack.c.b16 %v2931, %v2928
    %v2965 = vpack.c.b16 %v2932, %v2929
    %v2966 = vpack.c.b16 %v2936, %v2933
    %v2967 = vpack.c.b16 %v2937, %v2934
    %v2968 = vpack.c.b16 %v2938, %v2935
    %v2969 = vpack.c.b16 %v2942, %v2939
    %v2970 = vpack.c.b16 %v2943, %v2940
    %v2971 = vpack.c.b16 %v2944, %v2941
    %v2972 = vpack.c.b16 %v2948, %v2945
    %v2973 = vpack.c.b16 %v2949, %v2946
    %v2974 = vpack.c.b16 %v2950, %v2947
    %2999 = vmatprep.subr.bf16.mxu0 %v2952
    %3000 = vmatpush1.bf16.msra.mxu0 %v2951
    %3001 = vmatprep.subr.bf16.mxu0 %v2955
    %3002 = vmatpush1.bf16.msra.mxu0 %v2954
    %3003 = vmatprep.subr.bf16.mxu0 %v2958
    %3004 = vmatpush1.bf16.msra.mxu0 %v2957
    %3005 = vmatprep.subr.bf16.mxu0 %v2961
    %3006 = vmatpush1.bf16.msra.mxu0 %v2960
    %3007 = vmatprep.subr.bf16.mxu0 %v2964
    %3008 = vmatpush1.bf16.msra.mxu0 %v2963
    %3009 = vmatprep.subr.bf16.mxu0 %v2967
    %3010 = vmatpush1.bf16.msra.mxu0 %v2966
    %3011 = vmatprep.subr.bf16.mxu0 %v2970
    %3012 = vmatpush1.bf16.msra.mxu0 %v2969
    %3013 = vmatprep.subr.bf16.mxu0 %v2973
    %3014 = vmatpush1.bf16.msra.mxu0 %v2972
    %3015 = vmatprep.subr.bf16.mxu0 0
    %3016 = vmatpush1.bf16.msra.mxu0 0
    %3017 = vmatprep.subr.bf16.mxu0 0
    %3018 = vmatpush1.bf16.msra.mxu0 0
    %3019 = vmatprep.subr.bf16.mxu0 0
    %3020 = vmatpush1.bf16.msra.mxu0 0
    %3021 = vmatprep.subr.bf16.mxu0 0
    %3022 = vmatpush1.bf16.msra.mxu0 0
    %3023 = vmatprep.subr.bf16.mxu0 0
    %3024 = vmatpush1.bf16.msra.mxu0 0
    %3025 = vmatprep.subr.bf16.mxu0 0
    %3026 = vmatpush1.bf16.msra.mxu0 0
    %3027 = vmatprep.subr.bf16.mxu0 0
    %3028 = vmatpush1.bf16.msra.mxu0 0
    %3029 = vmatprep.subr.bf16.mxu0 0
    %3030 = vmatpush1.bf16.msra.mxu0 0
    %3031 = vmatprep.mubr.bf16.mxu0 0
    %3032 = vmatmul.mubr.bf16.gmra.mrb[0].mxu0 %v2853
    %v3033 = vpop.f32.mrb[0].mxu0
    %v3034 = vadd.f32 %v2859, %v3033
    %v3035 = vpop.f32.mrb[0].mxu0
    %v3036 = vadd.f32 %v2863, %v3035
    %v3037 = vpop.f32.mrb[0].mxu0
    %v3038 = vadd.f32 %v2859, %v3037
    %v3039 = vpop.f32.mrb[0].mxu0
    %v3040 = vadd.f32 %v2863, %v3039
    %3041 = vmatprep.mubr.bf16.mxu0 0
    %3042 = vmatmul.mubr.bf16.gmra.mrb[0].mxu0 %v2854
    %v3043 = vpop.f32.mrb[0].mxu0
    %v3044 = vadd.f32 %v2859, %v3043
    %v3045 = vpop.f32.mrb[0].mxu0
    %v3046 = vadd.f32 %v2863, %v3045
    %v3047 = vpop.f32.mrb[0].mxu0
    %v3048 = vadd.f32 %v2859, %v3047
    %v3049 = vpop.f32.mrb[0].mxu0
    %v3050 = vadd.f32 %v2863, %v3049
    %3051 = vdwg.mxu0
    %3052 = vmatprep.subr.bf16.mxu0 0
    %3053 = vmatpush1.bf16.msra.mxu0 %v2953
    %3054 = vmatprep.subr.bf16.mxu0 0
    %3055 = vmatpush1.bf16.msra.mxu0 %v2956
    %3056 = vmatprep.subr.bf16.mxu0 0
    %3057 = vmatpush1.bf16.msra.mxu0 %v2959
    %3058 = vmatprep.subr.bf16.mxu0 0
    %3059 = vmatpush1.bf16.msra.mxu0 %v2962
    %3060 = vmatprep.subr.bf16.mxu0 0
    %3061 = vmatpush1.bf16.msra.mxu0 %v2965
    %3062 = vmatprep.subr.bf16.mxu0 0
    %3063 = vmatpush1.bf16.msra.mxu0 %v2968
    %3064 = vmatprep.subr.bf16.mxu0 0
    %3065 = vmatpush1.bf16.msra.mxu0 %v2971
    %3066 = vmatprep.subr.bf16.mxu0 0
    %3067 = vmatpush1.bf16.msra.mxu0 %v2974
    %3068 = vmatprep.subr.bf16.mxu0 0
    %3069 = vmatpush1.bf16.msra.mxu0 0
    %3070 = vmatprep.subr.bf16.mxu0 0
    %3071 = vmatpush1.bf16.msra.mxu0 0
    %3072 = vmatprep.subr.bf16.mxu0 0
    %3073 = vmatpush1.bf16.msra.mxu0 0
    %3074 = vmatprep.subr.bf16.mxu0 0
    %3075 = vmatpush1.bf16.msra.mxu0 0
    %3076 = vmatprep.subr.bf16.mxu0 0
    %3077 = vmatpush1.bf16.msra.mxu0 0
    %3078 = vmatprep.subr.bf16.mxu0 0
    %3079 = vmatpush1.bf16.msra.mxu0 0
    %3080 = vmatprep.subr.bf16.mxu0 0
    %3081 = vmatpush1.bf16.msra.mxu0 0
    %3082 = vmatprep.subr.bf16.mxu0 0
    %3083 = vmatpush1.bf16.msra.mxu0 0
    %3084 = vmatprep.mubr.bf16.mxu0 0
    %3085 = vmatmul.mubr.bf16.gmra.mrb[0].mxu0 %v2853
    %v3086 = vpop.f32.mrb[0].mxu0
    %v3087 = vadd.f32 %v2867, %v3086
    %v3088 = vpop.f32.mrb[0].mxu0
    %v3089 = vpop.f32.mrb[0].mxu0
    %v3090 = vadd.f32 %v2867, %v3089
    %v3091 = vpop.f32.mrb[0].mxu0
    %3092 = vmatprep.mubr.bf16.mxu0 0
    %3093 = vmatmul.mubr.bf16.gmra.mrb[0].mxu0 %v2854
    %v3094 = vpop.f32.mrb[0].mxu0
    %v3095 = vadd.f32 %v2867, %v3094
    %v3096 = vpop.f32.mrb[0].mxu0
    %v3097 = vpop.f32.mrb[0].mxu0
    %v3098 = vadd.f32 %v2867, %v3097
    %v3099 = vpop.f32.mrb[0].mxu0
    %3100 = vdwg.mxu0
    %3105 = vrot.lane.b32.xlu0 %v3034, 96
    %v3106 = vpop.permute.xlu0 %3105
    %3107 = vrot.lane.b32.xlu0 %v3038, 96
    %v3108 = vpop.permute.xlu0 %3107
    %3109 = vrot.lane.b32.xlu0 %v3044, 96
    %v3110 = vpop.permute.xlu0 %3109
    %3111 = vrot.lane.b32.xlu0 %v3048, 96
    %v3112 = vpop.permute.xlu0 %3111
    %3113 = vrot.lane.b32.xlu0 %v3034, 64
    %v3114 = vpop.permute.xlu0 %3113
    %3115 = vrot.lane.b32.xlu0 %v3038, 64
    %v3116 = vpop.permute.xlu0 %3115
    %3117 = vrot.lane.b32.xlu0 %v3044, 64
    %v3118 = vpop.permute.xlu0 %3117
    %3119 = vrot.lane.b32.xlu0 %v3048, 64
    %v3120 = vpop.permute.xlu0 %3119
    %3121 = vrot.lane.b32.xlu0 %v3034, 32
    %v3122 = vpop.permute.xlu0 %3121
    %3123 = vrot.lane.b32.xlu0 %v3038, 32
    %v3124 = vpop.permute.xlu0 %3123
    %3125 = vrot.lane.b32.xlu0 %v3044, 32
    %v3126 = vpop.permute.xlu0 %3125
    %3127 = vrot.lane.b32.xlu0 %v3048, 32
    %v3128 = vpop.permute.xlu0 %3127
    %3133 = vrot.lane.b32.xlu0 %v3036, 96
    %v3134 = vpop.permute.xlu0 %3133
    %3135 = vrot.lane.b32.xlu0 %v3040, 96
    %v3136 = vpop.permute.xlu0 %3135
    %3137 = vrot.lane.b32.xlu0 %v3046, 96
    %v3138 = vpop.permute.xlu0 %3137
    %3139 = vrot.lane.b32.xlu0 %v3050, 96
    %v3140 = vpop.permute.xlu0 %3139
    %3141 = vrot.lane.b32.xlu0 %v3036, 64
    %v3142 = vpop.permute.xlu0 %3141
    %3143 = vrot.lane.b32.xlu0 %v3040, 64
    %v3144 = vpop.permute.xlu0 %3143
    %3145 = vrot.lane.b32.xlu0 %v3046, 64
    %v3146 = vpop.permute.xlu0 %3145
    %3147 = vrot.lane.b32.xlu0 %v3050, 64
    %v3148 = vpop.permute.xlu0 %3147
    %3149 = vrot.lane.b32.xlu0 %v3036, 32
    %v3150 = vpop.permute.xlu0 %3149
    %3151 = vrot.lane.b32.xlu0 %v3040, 32
    %v3152 = vpop.permute.xlu0 %3151
    %3153 = vrot.lane.b32.xlu0 %v3046, 32
    %v3154 = vpop.permute.xlu0 %3153
    %3155 = vrot.lane.b32.xlu0 %v3050, 32
    %v3156 = vpop.permute.xlu0 %3155
    %3161 = vrot.lane.b32.xlu0 %v3087, 96
    %v3162 = vpop.permute.xlu0 %3161
    %3163 = vrot.lane.b32.xlu0 %v3090, 96
    %v3164 = vpop.permute.xlu0 %3163
    %3165 = vrot.lane.b32.xlu0 %v3095, 96
    %v3166 = vpop.permute.xlu0 %3165
    %3167 = vrot.lane.b32.xlu0 %v3098, 96
    %v3168 = vpop.permute.xlu0 %3167
    %3173 = vrot.lane.b32.xlu0 %v3087, 64
    %v3174 = vpop.permute.xlu0 %3173
    %3175 = vrot.lane.b32.xlu0 %v3090, 64
    %v3176 = vpop.permute.xlu0 %3175
    %3177 = vrot.lane.b32.xlu0 %v3095, 64
    %v3178 = vpop.permute.xlu0 %3177
    %3179 = vrot.lane.b32.xlu0 %v3098, 64
    %v3180 = vpop.permute.xlu0 %3179
    %3185 = vrot.lane.b32.xlu0 %v3087, 32
    %v3186 = vpop.permute.xlu0 %3185
    %3187 = vrot.lane.b32.xlu0 %v3090, 32
    %v3188 = vpop.permute.xlu0 %3187
    %3189 = vrot.lane.b32.xlu0 %v3095, 32
    %v3190 = vpop.permute.xlu0 %3189
    %3191 = vrot.lane.b32.xlu0 %v3098, 32
    %v3192 = vpop.permute.xlu0 %3191
    %v3197 = vsel %vm549, %v3034, 0
    %v3199 = vsel %vm549, %v3038, 0
    %v3201 = vsel %vm549, %v3036, 0
    %v3203 = vsel %vm549, %v3040, 0
    %3205 = vmatprep.subr.mxu0 0.0
    %3206 = vmatpush1.xpose.msra.mxu0 %v3201
    %3207 = vmatprep.subr.mxu0 0.0
    %3208 = vmatpush1.xpose.msra.mxu0 %v3203
    %3209 = vmatprep.subr.mxu0 0.0
    %3210 = vmatpush1.xpose.msra.mxu0 0.0
    %3211 = vmatprep.subr.mxu0 0.0
    %3212 = vmatpush1.xpose.msra.mxu0 0.0
    %3213 = vmatprep.subr.mxu0 0.0
    %3214 = vmatpush1.xpose.msra.mxu0 0.0
    %3215 = vmatprep.subr.mxu0 0.0
    %3216 = vmatpush1.xpose.msra.mxu0 0.0
    %3217 = vmatprep.subr.mxu0 0.0
    %3218 = vmatpush1.xpose.msra.mxu0 0.0
    %3219 = vmatprep.subr.mxu0 0.0
    %3220 = vmatpush1.xpose.msra.mxu0 0.0
    %3221 = vmatprep.subr.mxu0 0.0
    %3222 = vmatpush1.xpose.msra.mxu0 0.0
    %3223 = vmatprep.subr.mxu0 0.0
    %3224 = vmatpush1.xpose.msra.mxu0 0.0
    %3225 = vmatprep.subr.mxu0 0.0
    %3226 = vmatpush1.xpose.msra.mxu0 0.0
    %3227 = vmatprep.subr.mxu0 0.0
    %3228 = vmatpush1.xpose.msra.mxu0 0.0
    %3229 = vmatprep.subr.mxu0 0.0
    %3230 = vmatpush1.xpose.msra.mxu0 0.0
    %3231 = vmatprep.subr.mxu0 0.0
    %3232 = vmatpush1.xpose.msra.mxu0 0.0
    %3233 = vmatprep.subr.mxu0 0.0
    %3234 = vmatpush1.xpose.msra.mxu0 0.0
    %3235 = vmatprep.subr.mxu0 0.0
    %3236 = vmatpush1.xpose.msra.mxu0 0.0
    %3237 = vmatprep.subr.mxu0 0.0
    %3238 = vmatpush1.xpose.msra.mxu0 0.0
    %3239 = vmatprep.subr.mxu0 0.0
    %3240 = vmatpush1.xpose.msra.mxu0 0.0
    %3241 = vmatprep.subr.mxu0 0.0
    %3242 = vmatpush1.xpose.msra.mxu0 0.0
    %3243 = vmatprep.subr.mxu0 0.0
    %3244 = vmatpush1.xpose.msra.mxu0 0.0
    %3245 = vmatprep.subr.mxu0 0.0
    %3246 = vmatpush1.xpose.msra.mxu0 0.0
    %3247 = vmatprep.subr.mxu0 0.0
    %3248 = vmatpush1.xpose.msra.mxu0 0.0
    %3249 = vmatprep.subr.mxu0 0.0
    %3250 = vmatpush1.xpose.msra.mxu0 0.0
    %3251 = vmatprep.subr.mxu0 0.0
    %3252 = vmatpush1.xpose.msra.mxu0 0.0
    %3253 = vmatprep.subr.mxu0 0.0
    %3254 = vmatpush1.xpose.msra.mxu0 0.0
    %3255 = vmatprep.subr.mxu0 0.0
    %3256 = vmatpush1.xpose.msra.mxu0 0.0
    %3257 = vmatprep.subr.mxu0 0.0
    %3258 = vmatpush1.xpose.msra.mxu0 0.0
    %3259 = vmatprep.subr.mxu0 0.0
    %3260 = vmatpush1.xpose.msra.mxu0 0.0
    %3261 = vmatprep.subr.mxu0 0.0
    %3262 = vmatpush1.xpose.msra.mxu0 0.0
    %3263 = vmatprep.subr.mxu0 0.0
    %3264 = vmatpush1.xpose.msra.mxu0 0.0
    %3265 = vmatprep.subr.mxu0 0.0
    %3266 = vmatpush1.xpose.msra.mxu0 0.0
    %3267 = vmatprep.subr.mxu0 0.0
    %3268 = vmatpush1.xpose.msra.mxu0 0.0
    %3269 = vmatprep.mubr.f32.mxu0 0.0
    %3270 = vmatmul.mubr.f32.gmra.mrb[0].mxu0 %v3197
    %v3271 = vpop.f32.mrb[0].mxu0
    %v3272 = vadd.f32 0.0, %v3271
    %v3273 = vpop.f32.mrb[0].mxu0
    %3274 = vmatprep.mubr.f32.mxu0 0.0
    %3275 = vmatmul.mubr.f32.gmra.mrb[0].mxu0 %v3199
    %v3276 = vpop.f32.mrb[0].mxu0
    %v3277 = vadd.f32 0.0, %v3276
    %v3278 = vpop.f32.mrb[0].mxu0
    %3279 = vdwg.mxu0
    %v3280 = vsel %vm549, %v3044, 0
    %v3282 = vsel %vm549, %v3048, 0
    %v3284 = vsel %vm549, %v3046, 0
    %v3286 = vsel %vm549, %v3050, 0
    %3288 = vmatprep.subr.mxu0 0.0
    %3289 = vmatpush1.xpose.msra.mxu0 %v3284
    %3290 = vmatprep.subr.mxu0 0.0
    %3291 = vmatpush1.xpose.msra.mxu0 %v3286
    %3292 = vmatprep.subr.mxu0 0.0
    %3293 = vmatpush1.xpose.msra.mxu0 0.0
    %3294 = vmatprep.subr.mxu0 0.0
    %3295 = vmatpush1.xpose.msra.mxu0 0.0
    %3296 = vmatprep.subr.mxu0 0.0
    %3297 = vmatpush1.xpose.msra.mxu0 0.0
    %3298 = vmatprep.subr.mxu0 0.0
    %3299 = vmatpush1.xpose.msra.mxu0 0.0
    %3300 = vmatprep.subr.mxu0 0.0
    %3301 = vmatpush1.xpose.msra.mxu0 0.0
    %3302 = vmatprep.subr.mxu0 0.0
    %3303 = vmatpush1.xpose.msra.mxu0 0.0
    %3304 = vmatprep.subr.mxu0 0.0
    %3305 = vmatpush1.xpose.msra.mxu0 0.0
    %3306 = vmatprep.subr.mxu0 0.0
    %3307 = vmatpush1.xpose.msra.mxu0 0.0
    %3308 = vmatprep.subr.mxu0 0.0
    %3309 = vmatpush1.xpose.msra.mxu0 0.0
    %3310 = vmatprep.subr.mxu0 0.0
    %3311 = vmatpush1.xpose.msra.mxu0 0.0
    %3312 = vmatprep.subr.mxu0 0.0
    %3313 = vmatpush1.xpose.msra.mxu0 0.0
    %3314 = vmatprep.subr.mxu0 0.0
    %3315 = vmatpush1.xpose.msra.mxu0 0.0
    %3316 = vmatprep.subr.mxu0 0.0
    %3317 = vmatpush1.xpose.msra.mxu0 0.0
    %3318 = vmatprep.subr.mxu0 0.0
    %3319 = vmatpush1.xpose.msra.mxu0 0.0
    %3320 = vmatprep.subr.mxu0 0.0
    %3321 = vmatpush1.xpose.msra.mxu0 0.0
    %3322 = vmatprep.subr.mxu0 0.0
    %3323 = vmatpush1.xpose.msra.mxu0 0.0
    %3324 = vmatprep.subr.mxu0 0.0
    %3325 = vmatpush1.xpose.msra.mxu0 0.0
    %3326 = vmatprep.subr.mxu0 0.0
    %3327 = vmatpush1.xpose.msra.mxu0 0.0
    %3328 = vmatprep.subr.mxu0 0.0
    %3329 = vmatpush1.xpose.msra.mxu0 0.0
    %3330 = vmatprep.subr.mxu0 0.0
    %3331 = vmatpush1.xpose.msra.mxu0 0.0
    %3332 = vmatprep.subr.mxu0 0.0
    %3333 = vmatpush1.xpose.msra.mxu0 0.0
    %3334 = vmatprep.subr.mxu0 0.0
    %3335 = vmatpush1.xpose.msra.mxu0 0.0
    %3336 = vmatprep.subr.mxu0 0.0
    %3337 = vmatpush1.xpose.msra.mxu0 0.0
    %3338 = vmatprep.subr.mxu0 0.0
    %3339 = vmatpush1.xpose.msra.mxu0 0.0
    %3340 = vmatprep.subr.mxu0 0.0
    %3341 = vmatpush1.xpose.msra.mxu0 0.0
    %3342 = vmatprep.subr.mxu0 0.0
    %3343 = vmatpush1.xpose.msra.mxu0 0.0
    %3344 = vmatprep.subr.mxu0 0.0
    %3345 = vmatpush1.xpose.msra.mxu0 0.0
    %3346 = vmatprep.subr.mxu0 0.0
    %3347 = vmatpush1.xpose.msra.mxu0 0.0
    %3348 = vmatprep.subr.mxu0 0.0
    %3349 = vmatpush1.xpose.msra.mxu0 0.0
    %3350 = vmatprep.subr.mxu0 0.0
    %3351 = vmatpush1.xpose.msra.mxu0 0.0
    %3352 = vmatprep.mubr.f32.mxu0 0.0
    %3353 = vmatmul.mubr.f32.gmra.mrb[0].mxu0 %v3280
    %v3354 = vpop.f32.mrb[0].mxu0
    %v3355 = vadd.f32 0.0, %v3354
    %v3356 = vpop.f32.mrb[0].mxu0
    %3357 = vmatprep.mubr.f32.mxu0 0.0
    %3358 = vmatmul.mubr.f32.gmra.mrb[0].mxu0 %v3282
    %v3359 = vpop.f32.mrb[0].mxu0
    %v3360 = vadd.f32 0.0, %v3359
    %v3361 = vpop.f32.mrb[0].mxu0
    %3362 = vdwg.mxu0
    %v3363 = vsel %vm549, %v3106, 0
    %v3365 = vsel %vm549, %v3108, 0
    %v3367 = vsel %vm549, %v3134, 0
    %v3369 = vsel %vm549, %v3136, 0
    %3371 = vmatprep.subr.mxu0 0.0
    %3372 = vmatpush1.xpose.msra.mxu0 %v3367
    %3373 = vmatprep.subr.mxu0 0.0
    %3374 = vmatpush1.xpose.msra.mxu0 %v3369
    %3375 = vmatprep.subr.mxu0 0.0
    %3376 = vmatpush1.xpose.msra.mxu0 0.0
    %3377 = vmatprep.subr.mxu0 0.0
    %3378 = vmatpush1.xpose.msra.mxu0 0.0
    %3379 = vmatprep.subr.mxu0 0.0
    %3380 = vmatpush1.xpose.msra.mxu0 0.0
    %3381 = vmatprep.subr.mxu0 0.0
    %3382 = vmatpush1.xpose.msra.mxu0 0.0
    %3383 = vmatprep.subr.mxu0 0.0
    %3384 = vmatpush1.xpose.msra.mxu0 0.0
    %3385 = vmatprep.subr.mxu0 0.0
    %3386 = vmatpush1.xpose.msra.mxu0 0.0
    %3387 = vmatprep.subr.mxu0 0.0
    %3388 = vmatpush1.xpose.msra.mxu0 0.0
    %3389 = vmatprep.subr.mxu0 0.0
    %3390 = vmatpush1.xpose.msra.mxu0 0.0
    %3391 = vmatprep.subr.mxu0 0.0
    %3392 = vmatpush1.xpose.msra.mxu0 0.0
    %3393 = vmatprep.subr.mxu0 0.0
    %3394 = vmatpush1.xpose.msra.mxu0 0.0
    %3395 = vmatprep.subr.mxu0 0.0
    %3396 = vmatpush1.xpose.msra.mxu0 0.0
    %3397 = vmatprep.subr.mxu0 0.0
    %3398 = vmatpush1.xpose.msra.mxu0 0.0
    %3399 = vmatprep.subr.mxu0 0.0
    %3400 = vmatpush1.xpose.msra.mxu0 0.0
    %3401 = vmatprep.subr.mxu0 0.0
    %3402 = vmatpush1.xpose.msra.mxu0 0.0
    %3403 = vmatprep.subr.mxu0 0.0
    %3404 = vmatpush1.xpose.msra.mxu0 0.0
    %3405 = vmatprep.subr.mxu0 0.0
    %3406 = vmatpush1.xpose.msra.mxu0 0.0
    %3407 = vmatprep.subr.mxu0 0.0
    %3408 = vmatpush1.xpose.msra.mxu0 0.0
    %3409 = vmatprep.subr.mxu0 0.0
    %3410 = vmatpush1.xpose.msra.mxu0 0.0
    %3411 = vmatprep.subr.mxu0 0.0
    %3412 = vmatpush1.xpose.msra.mxu0 0.0
    %3413 = vmatprep.subr.mxu0 0.0
    %3414 = vmatpush1.xpose.msra.mxu0 0.0
    %3415 = vmatprep.subr.mxu0 0.0
    %3416 = vmatpush1.xpose.msra.mxu0 0.0
    %3417 = vmatprep.subr.mxu0 0.0
    %3418 = vmatpush1.xpose.msra.mxu0 0.0
    %3419 = vmatprep.subr.mxu0 0.0
    %3420 = vmatpush1.xpose.msra.mxu0 0.0
    %3421 = vmatprep.subr.mxu0 0.0
    %3422 = vmatpush1.xpose.msra.mxu0 0.0
    %3423 = vmatprep.subr.mxu0 0.0
    %3424 = vmatpush1.xpose.msra.mxu0 0.0
    %3425 = vmatprep.subr.mxu0 0.0
    %3426 = vmatpush1.xpose.msra.mxu0 0.0
    %3427 = vmatprep.subr.mxu0 0.0
    %3428 = vmatpush1.xpose.msra.mxu0 0.0
    %3429 = vmatprep.subr.mxu0 0.0
    %3430 = vmatpush1.xpose.msra.mxu0 0.0
    %3431 = vmatprep.subr.mxu0 0.0
    %3432 = vmatpush1.xpose.msra.mxu0 0.0
    %3433 = vmatprep.subr.mxu0 0.0
    %3434 = vmatpush1.xpose.msra.mxu0 0.0
    %3435 = vmatprep.mubr.f32.mxu0 0.0
    %3436 = vmatmul.mubr.f32.gmra.mrb[0].mxu0 %v3363
    %v3437 = vpop.f32.mrb[0].mxu0
    %v3438 = vadd.f32 0.0, %v3437
    %v3439 = vpop.f32.mrb[0].mxu0
    %3440 = vmatprep.mubr.f32.mxu0 0.0
    %3441 = vmatmul.mubr.f32.gmra.mrb[0].mxu0 %v3365
    %v3442 = vpop.f32.mrb[0].mxu0
    %v3443 = vadd.f32 0.0, %v3442
    %v3444 = vpop.f32.mrb[0].mxu0
    %3445 = vdwg.mxu0
    %v3446 = vsel %vm549, %v3110, 0
    %v3448 = vsel %vm549, %v3112, 0
    %v3450 = vsel %vm549, %v3138, 0
    %v3452 = vsel %vm549, %v3140, 0
    %3454 = vmatprep.subr.mxu0 0.0
    %3455 = vmatpush1.xpose.msra.mxu0 %v3450
    %3456 = vmatprep.subr.mxu0 0.0
    %3457 = vmatpush1.xpose.msra.mxu0 %v3452
    %3458 = vmatprep.subr.mxu0 0.0
    %3459 = vmatpush1.xpose.msra.mxu0 0.0
    %3460 = vmatprep.subr.mxu0 0.0
    %3461 = vmatpush1.xpose.msra.mxu0 0.0
    %3462 = vmatprep.subr.mxu0 0.0
    %3463 = vmatpush1.xpose.msra.mxu0 0.0
    %3464 = vmatprep.subr.mxu0 0.0
    %3465 = vmatpush1.xpose.msra.mxu0 0.0
    %3466 = vmatprep.subr.mxu0 0.0
    %3467 = vmatpush1.xpose.msra.mxu0 0.0
    %3468 = vmatprep.subr.mxu0 0.0
    %3469 = vmatpush1.xpose.msra.mxu0 0.0
    %3470 = vmatprep.subr.mxu0 0.0
    %3471 = vmatpush1.xpose.msra.mxu0 0.0
    %3472 = vmatprep.subr.mxu0 0.0
    %3473 = vmatpush1.xpose.msra.mxu0 0.0
    %3474 = vmatprep.subr.mxu0 0.0
    %3475 = vmatpush1.xpose.msra.mxu0 0.0
    %3476 = vmatprep.subr.mxu0 0.0
    %3477 = vmatpush1.xpose.msra.mxu0 0.0
    %3478 = vmatprep.subr.mxu0 0.0
    %3479 = vmatpush1.xpose.msra.mxu0 0.0
    %3480 = vmatprep.subr.mxu0 0.0
    %3481 = vmatpush1.xpose.msra.mxu0 0.0
    %3482 = vmatprep.subr.mxu0 0.0
    %3483 = vmatpush1.xpose.msra.mxu0 0.0
    %3484 = vmatprep.subr.mxu0 0.0
    %3485 = vmatpush1.xpose.msra.mxu0 0.0
    %3486 = vmatprep.subr.mxu0 0.0
    %3487 = vmatpush1.xpose.msra.mxu0 0.0
    %3488 = vmatprep.subr.mxu0 0.0
    %3489 = vmatpush1.xpose.msra.mxu0 0.0
    %3490 = vmatprep.subr.mxu0 0.0
    %3491 = vmatpush1.xpose.msra.mxu0 0.0
    %3492 = vmatprep.subr.mxu0 0.0
    %3493 = vmatpush1.xpose.msra.mxu0 0.0
    %3494 = vmatprep.subr.mxu0 0.0
    %3495 = vmatpush1.xpose.msra.mxu0 0.0
    %3496 = vmatprep.subr.mxu0 0.0
    %3497 = vmatpush1.xpose.msra.mxu0 0.0
    %3498 = vmatprep.subr.mxu0 0.0
    %3499 = vmatpush1.xpose.msra.mxu0 0.0
    %3500 = vmatprep.subr.mxu0 0.0
    %3501 = vmatpush1.xpose.msra.mxu0 0.0
    %3502 = vmatprep.subr.mxu0 0.0
    %3503 = vmatpush1.xpose.msra.mxu0 0.0
    %3504 = vmatprep.subr.mxu0 0.0
    %3505 = vmatpush1.xpose.msra.mxu0 0.0
    %3506 = vmatprep.subr.mxu0 0.0
    %3507 = vmatpush1.xpose.msra.mxu0 0.0
    %3508 = vmatprep.subr.mxu0 0.0
    %3509 = vmatpush1.xpose.msra.mxu0 0.0
    %3510 = vmatprep.subr.mxu0 0.0
    %3511 = vmatpush1.xpose.msra.mxu0 0.0
    %3512 = vmatprep.subr.mxu0 0.0
    %3513 = vmatpush1.xpose.msra.mxu0 0.0
    %3514 = vmatprep.subr.mxu0 0.0
    %3515 = vmatpush1.xpose.msra.mxu0 0.0
    %3516 = vmatprep.subr.mxu0 0.0
    %3517 = vmatpush1.xpose.msra.mxu0 0.0
    %3518 = vmatprep.mubr.f32.mxu0 0.0
    %3519 = vmatmul.mubr.f32.gmra.mrb[0].mxu0 %v3446
    %v3520 = vpop.f32.mrb[0].mxu0
    %v3521 = vadd.f32 0.0, %v3520
    %v3522 = vpop.f32.mrb[0].mxu0
    %3523 = vmatprep.mubr.f32.mxu0 0.0
    %3524 = vmatmul.mubr.f32.gmra.mrb[0].mxu0 %v3448
    %v3525 = vpop.f32.mrb[0].mxu0
    %v3526 = vadd.f32 0.0, %v3525
    %v3527 = vpop.f32.mrb[0].mxu0
    %3528 = vdwg.mxu0
    %v3529 = vsel %vm549, %v3114, 0
    %v3531 = vsel %vm549, %v3116, 0
    %v3533 = vsel %vm549, %v3142, 0
    %v3535 = vsel %vm549, %v3144, 0
    %3537 = vmatprep.subr.mxu0 0.0
    %3538 = vmatpush1.xpose.msra.mxu0 %v3533
    %3539 = vmatprep.subr.mxu0 0.0
    %3540 = vmatpush1.xpose.msra.mxu0 %v3535
    %3541 = vmatprep.subr.mxu0 0.0
    %3542 = vmatpush1.xpose.msra.mxu0 0.0
    %3543 = vmatprep.subr.mxu0 0.0
    %3544 = vmatpush1.xpose.msra.mxu0 0.0
    %3545 = vmatprep.subr.mxu0 0.0
    %3546 = vmatpush1.xpose.msra.mxu0 0.0
    %3547 = vmatprep.subr.mxu0 0.0
    %3548 = vmatpush1.xpose.msra.mxu0 0.0
    %3549 = vmatprep.subr.mxu0 0.0
    %3550 = vmatpush1.xpose.msra.mxu0 0.0
    %3551 = vmatprep.subr.mxu0 0.0
    %3552 = vmatpush1.xpose.msra.mxu0 0.0
    %3553 = vmatprep.subr.mxu0 0.0
    %3554 = vmatpush1.xpose.msra.mxu0 0.0
    %3555 = vmatprep.subr.mxu0 0.0
    %3556 = vmatpush1.xpose.msra.mxu0 0.0
    %3557 = vmatprep.subr.mxu0 0.0
    %3558 = vmatpush1.xpose.msra.mxu0 0.0
    %3559 = vmatprep.subr.mxu0 0.0
    %3560 = vmatpush1.xpose.msra.mxu0 0.0
    %3561 = vmatprep.subr.mxu0 0.0
    %3562 = vmatpush1.xpose.msra.mxu0 0.0
    %3563 = vmatprep.subr.mxu0 0.0
    %3564 = vmatpush1.xpose.msra.mxu0 0.0
    %3565 = vmatprep.subr.mxu0 0.0
    %3566 = vmatpush1.xpose.msra.mxu0 0.0
    %3567 = vmatprep.subr.mxu0 0.0
    %3568 = vmatpush1.xpose.msra.mxu0 0.0
    %3569 = vmatprep.subr.mxu0 0.0
    %3570 = vmatpush1.xpose.msra.mxu0 0.0
    %3571 = vmatprep.subr.mxu0 0.0
    %3572 = vmatpush1.xpose.msra.mxu0 0.0
    %3573 = vmatprep.subr.mxu0 0.0
    %3574 = vmatpush1.xpose.msra.mxu0 0.0
    %3575 = vmatprep.subr.mxu0 0.0
    %3576 = vmatpush1.xpose.msra.mxu0 0.0
    %3577 = vmatprep.subr.mxu0 0.0
    %3578 = vmatpush1.xpose.msra.mxu0 0.0
    %3579 = vmatprep.subr.mxu0 0.0
    %3580 = vmatpush1.xpose.msra.mxu0 0.0
    %3581 = vmatprep.subr.mxu0 0.0
    %3582 = vmatpush1.xpose.msra.mxu0 0.0
    %3583 = vmatprep.subr.mxu0 0.0
    %3584 = vmatpush1.xpose.msra.mxu0 0.0
    %3585 = vmatprep.subr.mxu0 0.0
    %3586 = vmatpush1.xpose.msra.mxu0 0.0
    %3587 = vmatprep.subr.mxu0 0.0
    %3588 = vmatpush1.xpose.msra.mxu0 0.0
    %3589 = vmatprep.subr.mxu0 0.0
    %3590 = vmatpush1.xpose.msra.mxu0 0.0
    %3591 = vmatprep.subr.mxu0 0.0
    %3592 = vmatpush1.xpose.msra.mxu0 0.0
    %3593 = vmatprep.subr.mxu0 0.0
    %3594 = vmatpush1.xpose.msra.mxu0 0.0
    %3595 = vmatprep.subr.mxu0 0.0
    %3596 = vmatpush1.xpose.msra.mxu0 0.0
    %3597 = vmatprep.subr.mxu0 0.0
    %3598 = vmatpush1.xpose.msra.mxu0 0.0
    %3599 = vmatprep.subr.mxu0 0.0
    %3600 = vmatpush1.xpose.msra.mxu0 0.0
    %3601 = vmatprep.mubr.f32.mxu0 0.0
    %3602 = vmatmul.mubr.f32.gmra.mrb[0].mxu0 %v3529
    %v3603 = vpop.f32.mrb[0].mxu0
    %v3604 = vadd.f32 0.0, %v3603
    %v3605 = vpop.f32.mrb[0].mxu0
    %3606 = vmatprep.mubr.f32.mxu0 0.0
    %3607 = vmatmul.mubr.f32.gmra.mrb[0].mxu0 %v3531
    %v3608 = vpop.f32.mrb[0].mxu0
    %v3609 = vadd.f32 0.0, %v3608
    %v3610 = vpop.f32.mrb[0].mxu0
    %3611 = vdwg.mxu0
    %v3612 = vsel %vm549, %v3118, 0
    %v3614 = vsel %vm549, %v3120, 0
    %v3616 = vsel %vm549, %v3146, 0
    %v3618 = vsel %vm549, %v3148, 0
    %3620 = vmatprep.subr.mxu0 0.0
    %3621 = vmatpush1.xpose.msra.mxu0 %v3616
    %3622 = vmatprep.subr.mxu0 0.0
    %3623 = vmatpush1.xpose.msra.mxu0 %v3618
    %3624 = vmatprep.subr.mxu0 0.0
    %3625 = vmatpush1.xpose.msra.mxu0 0.0
    %3626 = vmatprep.subr.mxu0 0.0
    %3627 = vmatpush1.xpose.msra.mxu0 0.0
    %3628 = vmatprep.subr.mxu0 0.0
    %3629 = vmatpush1.xpose.msra.mxu0 0.0
    %3630 = vmatprep.subr.mxu0 0.0
    %3631 = vmatpush1.xpose.msra.mxu0 0.0
    %3632 = vmatprep.subr.mxu0 0.0
    %3633 = vmatpush1.xpose.msra.mxu0 0.0
    %3634 = vmatprep.subr.mxu0 0.0
    %3635 = vmatpush1.xpose.msra.mxu0 0.0
    %3636 = vmatprep.subr.mxu0 0.0
    %3637 = vmatpush1.xpose.msra.mxu0 0.0
    %3638 = vmatprep.subr.mxu0 0.0
    %3639 = vmatpush1.xpose.msra.mxu0 0.0
    %3640 = vmatprep.subr.mxu0 0.0
    %3641 = vmatpush1.xpose.msra.mxu0 0.0
    %3642 = vmatprep.subr.mxu0 0.0
    %3643 = vmatpush1.xpose.msra.mxu0 0.0
    %3644 = vmatprep.subr.mxu0 0.0
    %3645 = vmatpush1.xpose.msra.mxu0 0.0
    %3646 = vmatprep.subr.mxu0 0.0
    %3647 = vmatpush1.xpose.msra.mxu0 0.0
    %3648 = vmatprep.subr.mxu0 0.0
    %3649 = vmatpush1.xpose.msra.mxu0 0.0
    %3650 = vmatprep.subr.mxu0 0.0
    %3651 = vmatpush1.xpose.msra.mxu0 0.0
    %3652 = vmatprep.subr.mxu0 0.0
    %3653 = vmatpush1.xpose.msra.mxu0 0.0
    %3654 = vmatprep.subr.mxu0 0.0
    %3655 = vmatpush1.xpose.msra.mxu0 0.0
    %3656 = vmatprep.subr.mxu0 0.0
    %3657 = vmatpush1.xpose.msra.mxu0 0.0
    %3658 = vmatprep.subr.mxu0 0.0
    %3659 = vmatpush1.xpose.msra.mxu0 0.0
    %3660 = vmatprep.subr.mxu0 0.0
    %3661 = vmatpush1.xpose.msra.mxu0 0.0
    %3662 = vmatprep.subr.mxu0 0.0
    %3663 = vmatpush1.xpose.msra.mxu0 0.0
    %3664 = vmatprep.subr.mxu0 0.0
    %3665 = vmatpush1.xpose.msra.mxu0 0.0
    %3666 = vmatprep.subr.mxu0 0.0
    %3667 = vmatpush1.xpose.msra.mxu0 0.0
    %3668 = vmatprep.subr.mxu0 0.0
    %3669 = vmatpush1.xpose.msra.mxu0 0.0
    %3670 = vmatprep.subr.mxu0 0.0
    %3671 = vmatpush1.xpose.msra.mxu0 0.0
    %3672 = vmatprep.subr.mxu0 0.0
    %3673 = vmatpush1.xpose.msra.mxu0 0.0
    %3674 = vmatprep.subr.mxu0 0.0
    %3675 = vmatpush1.xpose.msra.mxu0 0.0
    %3676 = vmatprep.subr.mxu0 0.0
    %3677 = vmatpush1.xpose.msra.mxu0 0.0
    %3678 = vmatprep.subr.mxu0 0.0
    %3679 = vmatpush1.xpose.msra.mxu0 0.0
    %3680 = vmatprep.subr.mxu0 0.0
    %3681 = vmatpush1.xpose.msra.mxu0 0.0
    %3682 = vmatprep.subr.mxu0 0.0
    %3683 = vmatpush1.xpose.msra.mxu0 0.0
    %3684 = vmatprep.mubr.f32.mxu0 0.0
    %3685 = vmatmul.mubr.f32.gmra.mrb[0].mxu0 %v3612
    %v3686 = vpop.f32.mrb[0].mxu0
    %v3687 = vadd.f32 0.0, %v3686
    %v3688 = vpop.f32.mrb[0].mxu0
    %3689 = vmatprep.mubr.f32.mxu0 0.0
    %3690 = vmatmul.mubr.f32.gmra.mrb[0].mxu0 %v3614
    %v3691 = vpop.f32.mrb[0].mxu0
    %v3692 = vadd.f32 0.0, %v3691
    %v3693 = vpop.f32.mrb[0].mxu0
    %3694 = vdwg.mxu0
    %v3695 = vsel %vm549, %v3122, 0
    %v3697 = vsel %vm549, %v3124, 0
    %v3699 = vsel %vm549, %v3150, 0
    %v3701 = vsel %vm549, %v3152, 0
    %3703 = vmatprep.subr.mxu0 0.0
    %3704 = vmatpush1.xpose.msra.mxu0 %v3699
    %3705 = vmatprep.subr.mxu0 0.0
    %3706 = vmatpush1.xpose.msra.mxu0 %v3701
    %3707 = vmatprep.subr.mxu0 0.0
    %3708 = vmatpush1.xpose.msra.mxu0 0.0
    %3709 = vmatprep.subr.mxu0 0.0
    %3710 = vmatpush1.xpose.msra.mxu0 0.0
    %3711 = vmatprep.subr.mxu0 0.0
    %3712 = vmatpush1.xpose.msra.mxu0 0.0
    %3713 = vmatprep.subr.mxu0 0.0
    %3714 = vmatpush1.xpose.msra.mxu0 0.0
    %3715 = vmatprep.subr.mxu0 0.0
    %3716 = vmatpush1.xpose.msra.mxu0 0.0
    %3717 = vmatprep.subr.mxu0 0.0
    %3718 = vmatpush1.xpose.msra.mxu0 0.0
    %3719 = vmatprep.subr.mxu0 0.0
    %3720 = vmatpush1.xpose.msra.mxu0 0.0
    %3721 = vmatprep.subr.mxu0 0.0
    %3722 = vmatpush1.xpose.msra.mxu0 0.0
    %3723 = vmatprep.subr.mxu0 0.0
    %3724 = vmatpush1.xpose.msra.mxu0 0.0
    %3725 = vmatprep.subr.mxu0 0.0
    %3726 = vmatpush1.xpose.msra.mxu0 0.0
    %3727 = vmatprep.subr.mxu0 0.0
    %3728 = vmatpush1.xpose.msra.mxu0 0.0
    %3729 = vmatprep.subr.mxu0 0.0
    %3730 = vmatpush1.xpose.msra.mxu0 0.0
    %3731 = vmatprep.subr.mxu0 0.0
    %3732 = vmatpush1.xpose.msra.mxu0 0.0
    %3733 = vmatprep.subr.mxu0 0.0
    %3734 = vmatpush1.xpose.msra.mxu0 0.0
    %3735 = vmatprep.subr.mxu0 0.0
    %3736 = vmatpush1.xpose.msra.mxu0 0.0
    %3737 = vmatprep.subr.mxu0 0.0
    %3738 = vmatpush1.xpose.msra.mxu0 0.0
    %3739 = vmatprep.subr.mxu0 0.0
    %3740 = vmatpush1.xpose.msra.mxu0 0.0
    %3741 = vmatprep.subr.mxu0 0.0
    %3742 = vmatpush1.xpose.msra.mxu0 0.0
    %3743 = vmatprep.subr.mxu0 0.0
    %3744 = vmatpush1.xpose.msra.mxu0 0.0
    %3745 = vmatprep.subr.mxu0 0.0
    %3746 = vmatpush1.xpose.msra.mxu0 0.0
    %3747 = vmatprep.subr.mxu0 0.0
    %3748 = vmatpush1.xpose.msra.mxu0 0.0
    %3749 = vmatprep.subr.mxu0 0.0
    %3750 = vmatpush1.xpose.msra.mxu0 0.0
    %3751 = vmatprep.subr.mxu0 0.0
    %3752 = vmatpush1.xpose.msra.mxu0 0.0
    %3753 = vmatprep.subr.mxu0 0.0
    %3754 = vmatpush1.xpose.msra.mxu0 0.0
    %3755 = vmatprep.subr.mxu0 0.0
    %3756 = vmatpush1.xpose.msra.mxu0 0.0
    %3757 = vmatprep.subr.mxu0 0.0
    %3758 = vmatpush1.xpose.msra.mxu0 0.0
    %3759 = vmatprep.subr.mxu0 0.0
    %3760 = vmatpush1.xpose.msra.mxu0 0.0
    %3761 = vmatprep.subr.mxu0 0.0
    %3762 = vmatpush1.xpose.msra.mxu0 0.0
    %3763 = vmatprep.subr.mxu0 0.0
    %3764 = vmatpush1.xpose.msra.mxu0 0.0
    %3765 = vmatprep.subr.mxu0 0.0
    %3766 = vmatpush1.xpose.msra.mxu0 0.0
    %3767 = vmatprep.mubr.f32.mxu0 0.0
    %3768 = vmatmul.mubr.f32.gmra.mrb[0].mxu0 %v3695
    %v3769 = vpop.f32.mrb[0].mxu0
    %v3770 = vadd.f32 0.0, %v3769
    %v3771 = vpop.f32.mrb[0].mxu0
    %3772 = vmatprep.mubr.f32.mxu0 0.0
    %3773 = vmatmul.mubr.f32.gmra.mrb[0].mxu0 %v3697
    %v3774 = vpop.f32.mrb[0].mxu0
    %v3775 = vadd.f32 0.0, %v3774
    %v3776 = vpop.f32.mrb[0].mxu0
    %3777 = vdwg.mxu0
    %v3778 = vsel %vm549, %v3126, 0
    %v3780 = vsel %vm549, %v3128, 0
    %v3782 = vsel %vm549, %v3154, 0
    %v3784 = vsel %vm549, %v3156, 0
    %3786 = vmatprep.subr.mxu0 0.0
    %3787 = vmatpush1.xpose.msra.mxu0 %v3782
    %3788 = vmatprep.subr.mxu0 0.0
    %3789 = vmatpush1.xpose.msra.mxu0 %v3784
    %3790 = vmatprep.subr.mxu0 0.0
    %3791 = vmatpush1.xpose.msra.mxu0 0.0
    %3792 = vmatprep.subr.mxu0 0.0
    %3793 = vmatpush1.xpose.msra.mxu0 0.0
    %3794 = vmatprep.subr.mxu0 0.0
    %3795 = vmatpush1.xpose.msra.mxu0 0.0
    %3796 = vmatprep.subr.mxu0 0.0
    %3797 = vmatpush1.xpose.msra.mxu0 0.0
    %3798 = vmatprep.subr.mxu0 0.0
    %3799 = vmatpush1.xpose.msra.mxu0 0.0
    %3800 = vmatprep.subr.mxu0 0.0
    %3801 = vmatpush1.xpose.msra.mxu0 0.0
    %3802 = vmatprep.subr.mxu0 0.0
    %3803 = vmatpush1.xpose.msra.mxu0 0.0
    %3804 = vmatprep.subr.mxu0 0.0
    %3805 = vmatpush1.xpose.msra.mxu0 0.0
    %3806 = vmatprep.subr.mxu0 0.0
    %3807 = vmatpush1.xpose.msra.mxu0 0.0
    %3808 = vmatprep.subr.mxu0 0.0
    %3809 = vmatpush1.xpose.msra.mxu0 0.0
    %3810 = vmatprep.subr.mxu0 0.0
    %3811 = vmatpush1.xpose.msra.mxu0 0.0
    %3812 = vmatprep.subr.mxu0 0.0
    %3813 = vmatpush1.xpose.msra.mxu0 0.0
    %3814 = vmatprep.subr.mxu0 0.0
    %3815 = vmatpush1.xpose.msra.mxu0 0.0
    %3816 = vmatprep.subr.mxu0 0.0
    %3817 = vmatpush1.xpose.msra.mxu0 0.0
    %3818 = vmatprep.subr.mxu0 0.0
    %3819 = vmatpush1.xpose.msra.mxu0 0.0
    %3820 = vmatprep.subr.mxu0 0.0
    %3821 = vmatpush1.xpose.msra.mxu0 0.0
    %3822 = vmatprep.subr.mxu0 0.0
    %3823 = vmatpush1.xpose.msra.mxu0 0.0
    %3824 = vmatprep.subr.mxu0 0.0
    %3825 = vmatpush1.xpose.msra.mxu0 0.0
    %3826 = vmatprep.subr.mxu0 0.0
    %3827 = vmatpush1.xpose.msra.mxu0 0.0
    %3828 = vmatprep.subr.mxu0 0.0
    %3829 = vmatpush1.xpose.msra.mxu0 0.0
    %3830 = vmatprep.subr.mxu0 0.0
    %3831 = vmatpush1.xpose.msra.mxu0 0.0
    %3832 = vmatprep.subr.mxu0 0.0
    %3833 = vmatpush1.xpose.msra.mxu0 0.0
    %3834 = vmatprep.subr.mxu0 0.0
    %3835 = vmatpush1.xpose.msra.mxu0 0.0
    %3836 = vmatprep.subr.mxu0 0.0
    %3837 = vmatpush1.xpose.msra.mxu0 0.0
    %3838 = vmatprep.subr.mxu0 0.0
    %3839 = vmatpush1.xpose.msra.mxu0 0.0
    %3840 = vmatprep.subr.mxu0 0.0
    %3841 = vmatpush1.xpose.msra.mxu0 0.0
    %3842 = vmatprep.subr.mxu0 0.0
    %3843 = vmatpush1.xpose.msra.mxu0 0.0
    %3844 = vmatprep.subr.mxu0 0.0
    %3845 = vmatpush1.xpose.msra.mxu0 0.0
    %3846 = vmatprep.subr.mxu0 0.0
    %3847 = vmatpush1.xpose.msra.mxu0 0.0
    %3848 = vmatprep.subr.mxu0 0.0
    %3849 = vmatpush1.xpose.msra.mxu0 0.0
    %3850 = vmatprep.mubr.f32.mxu0 0.0
    %3851 = vmatmul.mubr.f32.gmra.mrb[0].mxu0 %v3778
    %v3852 = vpop.f32.mrb[0].mxu0
    %v3853 = vadd.f32 0.0, %v3852
    %v3854 = vpop.f32.mrb[0].mxu0
    %3855 = vmatprep.mubr.f32.mxu0 0.0
    %3856 = vmatmul.mubr.f32.gmra.mrb[0].mxu0 %v3780
    %v3857 = vpop.f32.mrb[0].mxu0
    %v3858 = vadd.f32 0.0, %v3857
    %v3859 = vpop.f32.mrb[0].mxu0
    %3860 = vdwg.mxu0
    %v3861 = vmul.f32 %v3272, 0.17677669
    %v3862 = vmul.f32 %v3277, 0.17677669
    %v3863 = vmul.f32 %v3355, 0.17677669
    %v3864 = vmul.f32 %v3360, 0.17677669
    %v3865 = vmul.f32 %v3438, 0.17677669
    %v3866 = vmul.f32 %v3443, 0.17677669
    %v3867 = vmul.f32 %v3521, 0.17677669
    %v3868 = vmul.f32 %v3526, 0.17677669
    %v3869 = vmul.f32 %v3604, 0.17677669
    %v3870 = vmul.f32 %v3609, 0.17677669
    %v3871 = vmul.f32 %v3687, 0.17677669
    %v3872 = vmul.f32 %v3692, 0.17677669
    %v3873 = vmul.f32 %v3770, 0.17677669
    %v3874 = vmul.f32 %v3775, 0.17677669
    %v3875 = vmul.f32 %v3853, 0.17677669
    %v3876 = vmul.f32 %v3858, 0.17677669
    %v3877 = vadd.f32 %v3861, %v1235
    %v3878 = vadd.f32 %v3862, %v1235
    %v3879 = vadd.f32 %v3863, %v1239
    %v3880 = vadd.f32 %v3864, %v1239
    %v3881 = vadd.f32 %v3865, %v1235
    %v3882 = vadd.f32 %v3866, %v1235
    %v3883 = vadd.f32 %v3867, %v1239
    %v3884 = vadd.f32 %v3868, %v1239
    %v3885 = vadd.f32 %v3869, %v1235
    %v3886 = vadd.f32 %v3870, %v1235
    %v3887 = vadd.f32 %v3871, %v1239
    %v3888 = vadd.f32 %v3872, %v1239
    %v3889 = vadd.f32 %v3873, %v1235
    %v3890 = vadd.f32 %v3874, %v1235
    %v3891 = vadd.f32 %v3875, %v1239
    %v3892 = vadd.f32 %v3876, %v1239
    %v3893 = vsel %vm1258, %v3877, -inf
    %3894 = vmax.xlane.f32.xlu0 %v3893
    %v3895 = vpop.xlane.xlu0 %3894
    %v3896 = vsel %vm1258, %v3878, -inf
    %3897 = vmax.xlane.f32.xlu0 %v3896
    %v3898 = vpop.xlane.xlu0 %3897
    %v3899 = vsel %vm1258, %v3879, -inf
    %3900 = vmax.xlane.f32.xlu0 %v3899
    %v3901 = vpop.xlane.xlu0 %3900
    %v3902 = vsel %vm1258, %v3880, -inf
    %3903 = vmax.xlane.f32.xlu0 %v3902
    %v3904 = vpop.xlane.xlu0 %3903
    %v3905 = vsel %vm1258, %v3881, -inf
    %3906 = vmax.xlane.f32.xlu0 %v3905
    %v3907 = vpop.xlane.xlu0 %3906
    %v3908 = vsel %vm1258, %v3882, -inf
    %3909 = vmax.xlane.f32.xlu0 %v3908
    %v3910 = vpop.xlane.xlu0 %3909
    %v3911 = vsel %vm1258, %v3883, -inf
    %3912 = vmax.xlane.f32.xlu0 %v3911
    %v3913 = vpop.xlane.xlu0 %3912
    %v3914 = vsel %vm1258, %v3884, -inf
    %3915 = vmax.xlane.f32.xlu0 %v3914
    %v3916 = vpop.xlane.xlu0 %3915
    %v3917 = vsel %vm1258, %v3885, -inf
    %3918 = vmax.xlane.f32.xlu0 %v3917
    %v3919 = vpop.xlane.xlu0 %3918
    %v3920 = vsel %vm1258, %v3886, -inf
    %3921 = vmax.xlane.f32.xlu0 %v3920
    %v3922 = vpop.xlane.xlu0 %3921
    %v3923 = vsel %vm1258, %v3887, -inf
    %3924 = vmax.xlane.f32.xlu0 %v3923
    %v3925 = vpop.xlane.xlu0 %3924
    %v3926 = vsel %vm1258, %v3888, -inf
    %3927 = vmax.xlane.f32.xlu0 %v3926
    %v3928 = vpop.xlane.xlu0 %3927
    %v3929 = vsel %vm1258, %v3889, -inf
    %3930 = vmax.xlane.f32.xlu0 %v3929
    %v3931 = vpop.xlane.xlu0 %3930
    %v3932 = vsel %vm1258, %v3890, -inf
    %3933 = vmax.xlane.f32.xlu0 %v3932
    %v3934 = vpop.xlane.xlu0 %3933
    %v3935 = vsel %vm1258, %v3891, -inf
    %3936 = vmax.xlane.f32.xlu0 %v3935
    %v3937 = vpop.xlane.xlu0 %3936
    %v3938 = vsel %vm1258, %v3892, -inf
    %3939 = vmax.xlane.f32.xlu0 %v3938
    %v3940 = vpop.xlane.xlu0 %3939
    %v3941 = vsub.f32 %v3877, %v3895
    %v3942 = vsub.f32 %v3878, %v3898
    %v3943 = vsub.f32 %v3879, %v3901
    %v3944 = vsub.f32 %v3880, %v3904
    %v3945 = vsub.f32 %v3881, %v3907
    %v3946 = vsub.f32 %v3882, %v3910
    %v3947 = vsub.f32 %v3883, %v3913
    %v3948 = vsub.f32 %v3884, %v3916
    %v3949 = vsub.f32 %v3885, %v3919
    %v3950 = vsub.f32 %v3886, %v3922
    %v3951 = vsub.f32 %v3887, %v3925
    %v3952 = vsub.f32 %v3888, %v3928
    %v3953 = vsub.f32 %v3889, %v3931
    %v3954 = vsub.f32 %v3890, %v3934
    %v3955 = vsub.f32 %v3891, %v3937
    %v3956 = vsub.f32 %v3892, %v3940
    %v3957 = vmul.f32 %v3941, 1.442695
    %v3958 = vpow.pop %v3957
    %v3959 = vmul.f32 %v3942, 1.442695
    %v3960 = vpow.pop %v3959
    %v3961 = vmul.f32 %v3943, 1.442695
    %v3962 = vpow.pop %v3961
    %v3963 = vmul.f32 %v3944, 1.442695
    %v3964 = vpow.pop %v3963
    %v3965 = vmul.f32 %v3945, 1.442695
    %v3966 = vpow.pop %v3965
    %v3967 = vmul.f32 %v3946, 1.442695
    %v3968 = vpow.pop %v3967
    %v3969 = vmul.f32 %v3947, 1.442695
    %v3970 = vpow.pop %v3969
    %v3971 = vmul.f32 %v3948, 1.442695
    %v3972 = vpow.pop %v3971
    %v3973 = vmul.f32 %v3949, 1.442695
    %v3974 = vpow.pop %v3973
    %v3975 = vmul.f32 %v3950, 1.442695
    %v3976 = vpow.pop %v3975
    %v3977 = vmul.f32 %v3951, 1.442695
    %v3978 = vpow.pop %v3977
    %v3979 = vmul.f32 %v3952, 1.442695
    %v3980 = vpow.pop %v3979
    %v3981 = vmul.f32 %v3953, 1.442695
    %v3982 = vpow.pop %v3981
    %v3983 = vmul.f32 %v3954, 1.442695
    %v3984 = vpow.pop %v3983
    %v3985 = vmul.f32 %v3955, 1.442695
    %v3986 = vpow.pop %v3985
    %v3987 = vmul.f32 %v3956, 1.442695
    %v3988 = vpow.pop %v3987
    %v3989 = vsel %vm1258, %v3958, 0.0
    %3990 = vadd.xlane.f32.xlu0 %v3989
    %v3991 = vpop.xlane.xlu0 %3990
    %v3992 = vsel %vm1258, %v3960, 0.0
    %3993 = vadd.xlane.f32.xlu0 %v3992
    %v3994 = vpop.xlane.xlu0 %3993
    %v3995 = vsel %vm1258, %v3962, 0.0
    %3996 = vadd.xlane.f32.xlu0 %v3995
    %v3997 = vpop.xlane.xlu0 %3996
    %v3998 = vsel %vm1258, %v3964, 0.0
    %3999 = vadd.xlane.f32.xlu0 %v3998
    %v4000 = vpop.xlane.xlu0 %3999
    %v4001 = vsel %vm1258, %v3966, 0.0
    %4002 = vadd.xlane.f32.xlu0 %v4001
    %v4003 = vpop.xlane.xlu0 %4002
    %v4004 = vsel %vm1258, %v3968, 0.0
    %4005 = vadd.xlane.f32.xlu0 %v4004
    %v4006 = vpop.xlane.xlu0 %4005
    %v4007 = vsel %vm1258, %v3970, 0.0
    %4008 = vadd.xlane.f32.xlu0 %v4007
    %v4009 = vpop.xlane.xlu0 %4008
    %v4010 = vsel %vm1258, %v3972, 0.0
    %4011 = vadd.xlane.f32.xlu0 %v4010
    %v4012 = vpop.xlane.xlu0 %4011
    %v4013 = vsel %vm1258, %v3974, 0.0
    %4014 = vadd.xlane.f32.xlu0 %v4013
    %v4015 = vpop.xlane.xlu0 %4014
    %v4016 = vsel %vm1258, %v3976, 0.0
    %4017 = vadd.xlane.f32.xlu0 %v4016
    %v4018 = vpop.xlane.xlu0 %4017
    %v4019 = vsel %vm1258, %v3978, 0.0
    %4020 = vadd.xlane.f32.xlu0 %v4019
    %v4021 = vpop.xlane.xlu0 %4020
    %v4022 = vsel %vm1258, %v3980, 0.0
    %4023 = vadd.xlane.f32.xlu0 %v4022
    %v4024 = vpop.xlane.xlu0 %4023
    %v4025 = vsel %vm1258, %v3982, 0.0
    %4026 = vadd.xlane.f32.xlu0 %v4025
    %v4027 = vpop.xlane.xlu0 %4026
    %v4028 = vsel %vm1258, %v3984, 0.0
    %4029 = vadd.xlane.f32.xlu0 %v4028
    %v4030 = vpop.xlane.xlu0 %4029
    %v4031 = vsel %vm1258, %v3986, 0.0
    %4032 = vadd.xlane.f32.xlu0 %v4031
    %v4033 = vpop.xlane.xlu0 %4032
    %v4034 = vsel %vm1258, %v3988, 0.0
    %4035 = vadd.xlane.f32.xlu0 %v4034
    %v4036 = vpop.xlane.xlu0 %4035
    %v4037 = vrcp.pop %v3991
    %v4038 = vmul.f32 %v3958, %v4037
    %v4039 = vrcp.pop %v3994
    %v4040 = vmul.f32 %v3960, %v4039
    %v4041 = vrcp.pop %v3997
    %v4042 = vmul.f32 %v3962, %v4041
    %v4043 = vrcp.pop %v4000
    %v4044 = vmul.f32 %v3964, %v4043
    %v4045 = vrcp.pop %v4003
    %v4046 = vmul.f32 %v3966, %v4045
    %v4047 = vrcp.pop %v4006
    %v4048 = vmul.f32 %v3968, %v4047
    %v4049 = vrcp.pop %v4009
    %v4050 = vmul.f32 %v3970, %v4049
    %v4051 = vrcp.pop %v4012
    %v4052 = vmul.f32 %v3972, %v4051
    %v4053 = vrcp.pop %v4015
    %v4054 = vmul.f32 %v3974, %v4053
    %v4055 = vrcp.pop %v4018
    %v4056 = vmul.f32 %v3976, %v4055
    %v4057 = vrcp.pop %v4021
    %v4058 = vmul.f32 %v3978, %v4057
    %v4059 = vrcp.pop %v4024
    %v4060 = vmul.f32 %v3980, %v4059
    %v4061 = vrcp.pop %v4027
    %v4062 = vmul.f32 %v3982, %v4061
    %v4063 = vrcp.pop %v4030
    %v4064 = vmul.f32 %v3984, %v4063
    %v4065 = vrcp.pop %v4033
    %v4066 = vmul.f32 %v3986, %v4065
    %v4067 = vrcp.pop %v4036
    %v4068 = vmul.f32 %v3988, %v4067
    %v4070 = vsel %vm1258, %v4038, 0
    %v4073 = vsel %vm1258, %v4040, 0
    %4075 = vmatprep.subr.mxu0 0.0
    %4076 = vmatpush1.msra.mxu0 %v3087
    %4077 = vmatprep.subr.mxu0 0.0
    %4078 = vmatpush1.msra.mxu0 %v3090
    %4079 = vmatprep.subr.mxu0 0.0
    %4080 = vmatpush1.msra.mxu0 0.0
    %4081 = vmatprep.subr.mxu0 0.0
    %4082 = vmatpush1.msra.mxu0 0.0
    %4083 = vmatprep.subr.mxu0 0.0
    %4084 = vmatpush1.msra.mxu0 0.0
    %4085 = vmatprep.subr.mxu0 0.0
    %4086 = vmatpush1.msra.mxu0 0.0
    %4087 = vmatprep.subr.mxu0 0.0
    %4088 = vmatpush1.msra.mxu0 0.0
    %4089 = vmatprep.subr.mxu0 0.0
    %4090 = vmatpush1.msra.mxu0 0.0
    %4091 = vmatprep.subr.mxu0 0.0
    %4092 = vmatpush1.msra.mxu0 0.0
    %4093 = vmatprep.subr.mxu0 0.0
    %4094 = vmatpush1.msra.mxu0 0.0
    %4095 = vmatprep.subr.mxu0 0.0
    %4096 = vmatpush1.msra.mxu0 0.0
    %4097 = vmatprep.subr.mxu0 0.0
    %4098 = vmatpush1.msra.mxu0 0.0
    %4099 = vmatprep.subr.mxu0 0.0
    %4100 = vmatpush1.msra.mxu0 0.0
    %4101 = vmatprep.subr.mxu0 0.0
    %4102 = vmatpush1.msra.mxu0 0.0
    %4103 = vmatprep.subr.mxu0 0.0
    %4104 = vmatpush1.msra.mxu0 0.0
    %4105 = vmatprep.subr.mxu0 0.0
    %4106 = vmatpush1.msra.mxu0 0.0
    %4107 = vmatprep.subr.mxu0 0.0
    %4108 = vmatpush1.msra.mxu0 0.0
    %4109 = vmatprep.subr.mxu0 0.0
    %4110 = vmatpush1.msra.mxu0 0.0
    %4111 = vmatprep.subr.mxu0 0.0
    %4112 = vmatpush1.msra.mxu0 0.0
    %4113 = vmatprep.subr.mxu0 0.0
    %4114 = vmatpush1.msra.mxu0 0.0
    %4115 = vmatprep.subr.mxu0 0.0
    %4116 = vmatpush1.msra.mxu0 0.0
    %4117 = vmatprep.subr.mxu0 0.0
    %4118 = vmatpush1.msra.mxu0 0.0
    %4119 = vmatprep.subr.mxu0 0.0
    %4120 = vmatpush1.msra.mxu0 0.0
    %4121 = vmatprep.subr.mxu0 0.0
    %4122 = vmatpush1.msra.mxu0 0.0
    %4123 = vmatprep.subr.mxu0 0.0
    %4124 = vmatpush1.msra.mxu0 0.0
    %4125 = vmatprep.subr.mxu0 0.0
    %4126 = vmatpush1.msra.mxu0 0.0
    %4127 = vmatprep.subr.mxu0 0.0
    %4128 = vmatpush1.msra.mxu0 0.0
    %4129 = vmatprep.subr.mxu0 0.0
    %4130 = vmatpush1.msra.mxu0 0.0
    %4131 = vmatprep.subr.mxu0 0.0
    %4132 = vmatpush1.msra.mxu0 0.0
    %4133 = vmatprep.subr.mxu0 0.0
    %4134 = vmatpush1.msra.mxu0 0.0
    %4135 = vmatprep.subr.mxu0 0.0
    %4136 = vmatpush1.msra.mxu0 0.0
    %4137 = vmatprep.subr.mxu0 0.0
    %4138 = vmatpush1.msra.mxu0 0.0
    %4139 = vmatprep.mubr.f32.mxu0 0.0
    %4140 = vmatmul.mubr.f32.gmra.mrb[0].mxu0 %v4070
    %v4141 = vpop.f32.mrb[0].mxu0
    %v4142 = vadd.f32 0.0, %v4141
    %v4143 = vpop.f32.mrb[0].mxu0
    %4144 = vmatprep.mubr.f32.mxu0 0.0
    %4145 = vmatmul.mubr.f32.gmra.mrb[0].mxu0 %v4073
    %v4146 = vpop.f32.mrb[0].mxu0
    %v4147 = vadd.f32 0.0, %v4146
    %v4148 = vpop.f32.mrb[0].mxu0
    %4149 = vdwg.mxu0
    %v4151 = vsel %vm1258, %v4042, 0
    %v4154 = vsel %vm1258, %v4044, 0
    %4156 = vmatprep.subr.mxu0 0.0
    %4157 = vmatpush1.msra.mxu0 %v3095
    %4158 = vmatprep.subr.mxu0 0.0
    %4159 = vmatpush1.msra.mxu0 %v3098
    %4160 = vmatprep.subr.mxu0 0.0
    %4161 = vmatpush1.msra.mxu0 0.0
    %4162 = vmatprep.subr.mxu0 0.0
    %4163 = vmatpush1.msra.mxu0 0.0
    %4164 = vmatprep.subr.mxu0 0.0
    %4165 = vmatpush1.msra.mxu0 0.0
    %4166 = vmatprep.subr.mxu0 0.0
    %4167 = vmatpush1.msra.mxu0 0.0
    %4168 = vmatprep.subr.mxu0 0.0
    %4169 = vmatpush1.msra.mxu0 0.0
    %4170 = vmatprep.subr.mxu0 0.0
    %4171 = vmatpush1.msra.mxu0 0.0
    %4172 = vmatprep.subr.mxu0 0.0
    %4173 = vmatpush1.msra.mxu0 0.0
    %4174 = vmatprep.subr.mxu0 0.0
    %4175 = vmatpush1.msra.mxu0 0.0
    %4176 = vmatprep.subr.mxu0 0.0
    %4177 = vmatpush1.msra.mxu0 0.0
    %4178 = vmatprep.subr.mxu0 0.0
    %4179 = vmatpush1.msra.mxu0 0.0
    %4180 = vmatprep.subr.mxu0 0.0
    %4181 = vmatpush1.msra.mxu0 0.0
    %4182 = vmatprep.subr.mxu0 0.0
    %4183 = vmatpush1.msra.mxu0 0.0
    %4184 = vmatprep.subr.mxu0 0.0
    %4185 = vmatpush1.msra.mxu0 0.0
    %4186 = vmatprep.subr.mxu0 0.0
    %4187 = vmatpush1.msra.mxu0 0.0
    %4188 = vmatprep.subr.mxu0 0.0
    %4189 = vmatpush1.msra.mxu0 0.0
    %4190 = vmatprep.subr.mxu0 0.0
    %4191 = vmatpush1.msra.mxu0 0.0
    %4192 = vmatprep.subr.mxu0 0.0
    %4193 = vmatpush1.msra.mxu0 0.0
    %4194 = vmatprep.subr.mxu0 0.0
    %4195 = vmatpush1.msra.mxu0 0.0
    %4196 = vmatprep.subr.mxu0 0.0
    %4197 = vmatpush1.msra.mxu0 0.0
    %4198 = vmatprep.subr.mxu0 0.0
    %4199 = vmatpush1.msra.mxu0 0.0
    %4200 = vmatprep.subr.mxu0 0.0
    %4201 = vmatpush1.msra.mxu0 0.0
    %4202 = vmatprep.subr.mxu0 0.0
    %4203 = vmatpush1.msra.mxu0 0.0
    %4204 = vmatprep.subr.mxu0 0.0
    %4205 = vmatpush1.msra.mxu0 0.0
    %4206 = vmatprep.subr.mxu0 0.0
    %4207 = vmatpush1.msra.mxu0 0.0
    %4208 = vmatprep.subr.mxu0 0.0
    %4209 = vmatpush1.msra.mxu0 0.0
    %4210 = vmatprep.subr.mxu0 0.0
    %4211 = vmatpush1.msra.mxu0 0.0
    %4212 = vmatprep.subr.mxu0 0.0
    %4213 = vmatpush1.msra.mxu0 0.0
    %4214 = vmatprep.subr.mxu0 0.0
    %4215 = vmatpush1.msra.mxu0 0.0
    %4216 = vmatprep.subr.mxu0 0.0
    %4217 = vmatpush1.msra.mxu0 0.0
    %4218 = vmatprep.subr.mxu0 0.0
    %4219 = vmatpush1.msra.mxu0 0.0
    %4220 = vmatprep.mubr.f32.mxu0 0.0
    %4221 = vmatmul.mubr.f32.gmra.mrb[0].mxu0 %v4151
    %v4222 = vpop.f32.mrb[0].mxu0
    %v4223 = vadd.f32 0.0, %v4222
    %v4224 = vpop.f32.mrb[0].mxu0
    %4225 = vmatprep.mubr.f32.mxu0 0.0
    %4226 = vmatmul.mubr.f32.gmra.mrb[0].mxu0 %v4154
    %v4227 = vpop.f32.mrb[0].mxu0
    %v4228 = vadd.f32 0.0, %v4227
    %v4229 = vpop.f32.mrb[0].mxu0
    %4230 = vdwg.mxu0
    %v4232 = vsel %vm1258, %v4046, 0
    %v4235 = vsel %vm1258, %v4048, 0
    %4237 = vmatprep.subr.mxu0 0.0
    %4238 = vmatpush1.msra.mxu0 %v3162
    %4239 = vmatprep.subr.mxu0 0.0
    %4240 = vmatpush1.msra.mxu0 %v3164
    %4241 = vmatprep.subr.mxu0 0.0
    %4242 = vmatpush1.msra.mxu0 0.0
    %4243 = vmatprep.subr.mxu0 0.0
    %4244 = vmatpush1.msra.mxu0 0.0
    %4245 = vmatprep.subr.mxu0 0.0
    %4246 = vmatpush1.msra.mxu0 0.0
    %4247 = vmatprep.subr.mxu0 0.0
    %4248 = vmatpush1.msra.mxu0 0.0
    %4249 = vmatprep.subr.mxu0 0.0
    %4250 = vmatpush1.msra.mxu0 0.0
    %4251 = vmatprep.subr.mxu0 0.0
    %4252 = vmatpush1.msra.mxu0 0.0
    %4253 = vmatprep.subr.mxu0 0.0
    %4254 = vmatpush1.msra.mxu0 0.0
    %4255 = vmatprep.subr.mxu0 0.0
    %4256 = vmatpush1.msra.mxu0 0.0
    %4257 = vmatprep.subr.mxu0 0.0
    %4258 = vmatpush1.msra.mxu0 0.0
    %4259 = vmatprep.subr.mxu0 0.0
    %4260 = vmatpush1.msra.mxu0 0.0
    %4261 = vmatprep.subr.mxu0 0.0
    %4262 = vmatpush1.msra.mxu0 0.0
    %4263 = vmatprep.subr.mxu0 0.0
    %4264 = vmatpush1.msra.mxu0 0.0
    %4265 = vmatprep.subr.mxu0 0.0
    %4266 = vmatpush1.msra.mxu0 0.0
    %4267 = vmatprep.subr.mxu0 0.0
    %4268 = vmatpush1.msra.mxu0 0.0
    %4269 = vmatprep.subr.mxu0 0.0
    %4270 = vmatpush1.msra.mxu0 0.0
    %4271 = vmatprep.subr.mxu0 0.0
    %4272 = vmatpush1.msra.mxu0 0.0
    %4273 = vmatprep.subr.mxu0 0.0
    %4274 = vmatpush1.msra.mxu0 0.0
    %4275 = vmatprep.subr.mxu0 0.0
    %4276 = vmatpush1.msra.mxu0 0.0
    %4277 = vmatprep.subr.mxu0 0.0
    %4278 = vmatpush1.msra.mxu0 0.0
    %4279 = vmatprep.subr.mxu0 0.0
    %4280 = vmatpush1.msra.mxu0 0.0
    %4281 = vmatprep.subr.mxu0 0.0
    %4282 = vmatpush1.msra.mxu0 0.0
    %4283 = vmatprep.subr.mxu0 0.0
    %4284 = vmatpush1.msra.mxu0 0.0
    %4285 = vmatprep.subr.mxu0 0.0
    %4286 = vmatpush1.msra.mxu0 0.0
    %4287 = vmatprep.subr.mxu0 0.0
    %4288 = vmatpush1.msra.mxu0 0.0
    %4289 = vmatprep.subr.mxu0 0.0
    %4290 = vmatpush1.msra.mxu0 0.0
    %4291 = vmatprep.subr.mxu0 0.0
    %4292 = vmatpush1.msra.mxu0 0.0
    %4293 = vmatprep.subr.mxu0 0.0
    %4294 = vmatpush1.msra.mxu0 0.0
    %4295 = vmatprep.subr.mxu0 0.0
    %4296 = vmatpush1.msra.mxu0 0.0
    %4297 = vmatprep.subr.mxu0 0.0
    %4298 = vmatpush1.msra.mxu0 0.0
    %4299 = vmatprep.subr.mxu0 0.0
    %4300 = vmatpush1.msra.mxu0 0.0
    %4301 = vmatprep.mubr.f32.mxu0 0.0
    %4302 = vmatmul.mubr.f32.gmra.mrb[0].mxu0 %v4232
    %v4303 = vpop.f32.mrb[0].mxu0
    %v4304 = vadd.f32 0.0, %v4303
    %v4305 = vpop.f32.mrb[0].mxu0
    %4306 = vmatprep.mubr.f32.mxu0 0.0
    %4307 = vmatmul.mubr.f32.gmra.mrb[0].mxu0 %v4235
    %v4308 = vpop.f32.mrb[0].mxu0
    %v4309 = vadd.f32 0.0, %v4308
    %v4310 = vpop.f32.mrb[0].mxu0
    %4311 = vdwg.mxu0
    %v4313 = vsel %vm1258, %v4050, 0
    %v4316 = vsel %vm1258, %v4052, 0
    %4318 = vmatprep.subr.mxu0 0.0
    %4319 = vmatpush1.msra.mxu0 %v3166
    %4320 = vmatprep.subr.mxu0 0.0
    %4321 = vmatpush1.msra.mxu0 %v3168
    %4322 = vmatprep.subr.mxu0 0.0
    %4323 = vmatpush1.msra.mxu0 0.0
    %4324 = vmatprep.subr.mxu0 0.0
    %4325 = vmatpush1.msra.mxu0 0.0
    %4326 = vmatprep.subr.mxu0 0.0
    %4327 = vmatpush1.msra.mxu0 0.0
    %4328 = vmatprep.subr.mxu0 0.0
    %4329 = vmatpush1.msra.mxu0 0.0
    %4330 = vmatprep.subr.mxu0 0.0
    %4331 = vmatpush1.msra.mxu0 0.0
    %4332 = vmatprep.subr.mxu0 0.0
    %4333 = vmatpush1.msra.mxu0 0.0
    %4334 = vmatprep.subr.mxu0 0.0
    %4335 = vmatpush1.msra.mxu0 0.0
    %4336 = vmatprep.subr.mxu0 0.0
    %4337 = vmatpush1.msra.mxu0 0.0
    %4338 = vmatprep.subr.mxu0 0.0
    %4339 = vmatpush1.msra.mxu0 0.0
    %4340 = vmatprep.subr.mxu0 0.0
    %4341 = vmatpush1.msra.mxu0 0.0
    %4342 = vmatprep.subr.mxu0 0.0
    %4343 = vmatpush1.msra.mxu0 0.0
    %4344 = vmatprep.subr.mxu0 0.0
    %4345 = vmatpush1.msra.mxu0 0.0
    %4346 = vmatprep.subr.mxu0 0.0
    %4347 = vmatpush1.msra.mxu0 0.0
    %4348 = vmatprep.subr.mxu0 0.0
    %4349 = vmatpush1.msra.mxu0 0.0
    %4350 = vmatprep.subr.mxu0 0.0
    %4351 = vmatpush1.msra.mxu0 0.0
    %4352 = vmatprep.subr.mxu0 0.0
    %4353 = vmatpush1.msra.mxu0 0.0
    %4354 = vmatprep.subr.mxu0 0.0
    %4355 = vmatpush1.msra.mxu0 0.0
    %4356 = vmatprep.subr.mxu0 0.0
    %4357 = vmatpush1.msra.mxu0 0.0
    %4358 = vmatprep.subr.mxu0 0.0
    %4359 = vmatpush1.msra.mxu0 0.0
    %4360 = vmatprep.subr.mxu0 0.0
    %4361 = vmatpush1.msra.mxu0 0.0
    %4362 = vmatprep.subr.mxu0 0.0
    %4363 = vmatpush1.msra.mxu0 0.0
    %4364 = vmatprep.subr.mxu0 0.0
    %4365 = vmatpush1.msra.mxu0 0.0
    %4366 = vmatprep.subr.mxu0 0.0
    %4367 = vmatpush1.msra.mxu0 0.0
    %4368 = vmatprep.subr.mxu0 0.0
    %4369 = vmatpush1.msra.mxu0 0.0
    %4370 = vmatprep.subr.mxu0 0.0
    %4371 = vmatpush1.msra.mxu0 0.0
    %4372 = vmatprep.subr.mxu0 0.0
    %4373 = vmatpush1.msra.mxu0 0.0
    %4374 = vmatprep.subr.mxu0 0.0
    %4375 = vmatpush1.msra.mxu0 0.0
    %4376 = vmatprep.subr.mxu0 0.0
    %4377 = vmatpush1.msra.mxu0 0.0
    %4378 = vmatprep.subr.mxu0 0.0
    %4379 = vmatpush1.msra.mxu0 0.0
    %4380 = vmatprep.subr.mxu0 0.0
    %4381 = vmatpush1.msra.mxu0 0.0
    %4382 = vmatprep.mubr.f32.mxu0 0.0
    %4383 = vmatmul.mubr.f32.gmra.mrb[0].mxu0 %v4313
    %v4384 = vpop.f32.mrb[0].mxu0
    %v4385 = vadd.f32 0.0, %v4384
    %v4386 = vpop.f32.mrb[0].mxu0
    %4387 = vmatprep.mubr.f32.mxu0 0.0
    %4388 = vmatmul.mubr.f32.gmra.mrb[0].mxu0 %v4316
    %v4389 = vpop.f32.mrb[0].mxu0
    %v4390 = vadd.f32 0.0, %v4389
    %v4391 = vpop.f32.mrb[0].mxu0
    %4392 = vdwg.mxu0
    %v4394 = vsel %vm1258, %v4054, 0
    %v4397 = vsel %vm1258, %v4056, 0
    %4399 = vmatprep.subr.mxu0 0.0
    %4400 = vmatpush1.msra.mxu0 %v3174
    %4401 = vmatprep.subr.mxu0 0.0
    %4402 = vmatpush1.msra.mxu0 %v3176
    %4403 = vmatprep.subr.mxu0 0.0
    %4404 = vmatpush1.msra.mxu0 0.0
    %4405 = vmatprep.subr.mxu0 0.0
    %4406 = vmatpush1.msra.mxu0 0.0
    %4407 = vmatprep.subr.mxu0 0.0
    %4408 = vmatpush1.msra.mxu0 0.0
    %4409 = vmatprep.subr.mxu0 0.0
    %4410 = vmatpush1.msra.mxu0 0.0
    %4411 = vmatprep.subr.mxu0 0.0
    %4412 = vmatpush1.msra.mxu0 0.0
    %4413 = vmatprep.subr.mxu0 0.0
    %4414 = vmatpush1.msra.mxu0 0.0
    %4415 = vmatprep.subr.mxu0 0.0
    %4416 = vmatpush1.msra.mxu0 0.0
    %4417 = vmatprep.subr.mxu0 0.0
    %4418 = vmatpush1.msra.mxu0 0.0
    %4419 = vmatprep.subr.mxu0 0.0
    %4420 = vmatpush1.msra.mxu0 0.0
    %4421 = vmatprep.subr.mxu0 0.0
    %4422 = vmatpush1.msra.mxu0 0.0
    %4423 = vmatprep.subr.mxu0 0.0
    %4424 = vmatpush1.msra.mxu0 0.0
    %4425 = vmatprep.subr.mxu0 0.0
    %4426 = vmatpush1.msra.mxu0 0.0
    %4427 = vmatprep.subr.mxu0 0.0
    %4428 = vmatpush1.msra.mxu0 0.0
    %4429 = vmatprep.subr.mxu0 0.0
    %4430 = vmatpush1.msra.mxu0 0.0
    %4431 = vmatprep.subr.mxu0 0.0
    %4432 = vmatpush1.msra.mxu0 0.0
    %4433 = vmatprep.subr.mxu0 0.0
    %4434 = vmatpush1.msra.mxu0 0.0
    %4435 = vmatprep.subr.mxu0 0.0
    %4436 = vmatpush1.msra.mxu0 0.0
    %4437 = vmatprep.subr.mxu0 0.0
    %4438 = vmatpush1.msra.mxu0 0.0
    %4439 = vmatprep.subr.mxu0 0.0
    %4440 = vmatpush1.msra.mxu0 0.0
    %4441 = vmatprep.subr.mxu0 0.0
    %4442 = vmatpush1.msra.mxu0 0.0
    %4443 = vmatprep.subr.mxu0 0.0
    %4444 = vmatpush1.msra.mxu0 0.0
    %4445 = vmatprep.subr.mxu0 0.0
    %4446 = vmatpush1.msra.mxu0 0.0
    %4447 = vmatprep.subr.mxu0 0.0
    %4448 = vmatpush1.msra.mxu0 0.0
    %4449 = vmatprep.subr.mxu0 0.0
    %4450 = vmatpush1.msra.mxu0 0.0
    %4451 = vmatprep.subr.mxu0 0.0
    %4452 = vmatpush1.msra.mxu0 0.0
    %4453 = vmatprep.subr.mxu0 0.0
    %4454 = vmatpush1.msra.mxu0 0.0
    %4455 = vmatprep.subr.mxu0 0.0
    %4456 = vmatpush1.msra.mxu0 0.0
    %4457 = vmatprep.subr.mxu0 0.0
    %4458 = vmatpush1.msra.mxu0 0.0
    %4459 = vmatprep.subr.mxu0 0.0
    %4460 = vmatpush1.msra.mxu0 0.0
    %4461 = vmatprep.subr.mxu0 0.0
    %4462 = vmatpush1.msra.mxu0 0.0
    %4463 = vmatprep.mubr.f32.mxu0 0.0
    %4464 = vmatmul.mubr.f32.gmra.mrb[0].mxu0 %v4394
    %v4465 = vpop.f32.mrb[0].mxu0
    %v4466 = vadd.f32 0.0, %v4465
    %v4467 = vpop.f32.mrb[0].mxu0
    %4468 = vmatprep.mubr.f32.mxu0 0.0
    %4469 = vmatmul.mubr.f32.gmra.mrb[0].mxu0 %v4397
    %v4470 = vpop.f32.mrb[0].mxu0
    %v4471 = vadd.f32 0.0, %v4470
    %v4472 = vpop.f32.mrb[0].mxu0
    %4473 = vdwg.mxu0
    %v4475 = vsel %vm1258, %v4058, 0
    %v4478 = vsel %vm1258, %v4060, 0
    %4480 = vmatprep.subr.mxu0 0.0
    %4481 = vmatpush1.msra.mxu0 %v3178
    %4482 = vmatprep.subr.mxu0 0.0
    %4483 = vmatpush1.msra.mxu0 %v3180
    %4484 = vmatprep.subr.mxu0 0.0
    %4485 = vmatpush1.msra.mxu0 0.0
    %4486 = vmatprep.subr.mxu0 0.0
    %4487 = vmatpush1.msra.mxu0 0.0
    %4488 = vmatprep.subr.mxu0 0.0
    %4489 = vmatpush1.msra.mxu0 0.0
    %4490 = vmatprep.subr.mxu0 0.0
    %4491 = vmatpush1.msra.mxu0 0.0
    %4492 = vmatprep.subr.mxu0 0.0
    %4493 = vmatpush1.msra.mxu0 0.0
    %4494 = vmatprep.subr.mxu0 0.0
    %4495 = vmatpush1.msra.mxu0 0.0
    %4496 = vmatprep.subr.mxu0 0.0
    %4497 = vmatpush1.msra.mxu0 0.0
    %4498 = vmatprep.subr.mxu0 0.0
    %4499 = vmatpush1.msra.mxu0 0.0
    %4500 = vmatprep.subr.mxu0 0.0
    %4501 = vmatpush1.msra.mxu0 0.0
    %4502 = vmatprep.subr.mxu0 0.0
    %4503 = vmatpush1.msra.mxu0 0.0
    %4504 = vmatprep.subr.mxu0 0.0
    %4505 = vmatpush1.msra.mxu0 0.0
    %4506 = vmatprep.subr.mxu0 0.0
    %4507 = vmatpush1.msra.mxu0 0.0
    %4508 = vmatprep.subr.mxu0 0.0
    %4509 = vmatpush1.msra.mxu0 0.0
    %4510 = vmatprep.subr.mxu0 0.0
    %4511 = vmatpush1.msra.mxu0 0.0
    %4512 = vmatprep.subr.mxu0 0.0
    %4513 = vmatpush1.msra.mxu0 0.0
    %4514 = vmatprep.subr.mxu0 0.0
    %4515 = vmatpush1.msra.mxu0 0.0
    %4516 = vmatprep.subr.mxu0 0.0
    %4517 = vmatpush1.msra.mxu0 0.0
    %4518 = vmatprep.subr.mxu0 0.0
    %4519 = vmatpush1.msra.mxu0 0.0
    %4520 = vmatprep.subr.mxu0 0.0
    %4521 = vmatpush1.msra.mxu0 0.0
    %4522 = vmatprep.subr.mxu0 0.0
    %4523 = vmatpush1.msra.mxu0 0.0
    %4524 = vmatprep.subr.mxu0 0.0
    %4525 = vmatpush1.msra.mxu0 0.0
    %4526 = vmatprep.subr.mxu0 0.0
    %4527 = vmatpush1.msra.mxu0 0.0
    %4528 = vmatprep.subr.mxu0 0.0
    %4529 = vmatpush1.msra.mxu0 0.0
    %4530 = vmatprep.subr.mxu0 0.0
    %4531 = vmatpush1.msra.mxu0 0.0
    %4532 = vmatprep.subr.mxu0 0.0
    %4533 = vmatpush1.msra.mxu0 0.0
    %4534 = vmatprep.subr.mxu0 0.0
    %4535 = vmatpush1.msra.mxu0 0.0
    %4536 = vmatprep.subr.mxu0 0.0
    %4537 = vmatpush1.msra.mxu0 0.0
    %4538 = vmatprep.subr.mxu0 0.0
    %4539 = vmatpush1.msra.mxu0 0.0
    %4540 = vmatprep.subr.mxu0 0.0
    %4541 = vmatpush1.msra.mxu0 0.0
    %4542 = vmatprep.subr.mxu0 0.0
    %4543 = vmatpush1.msra.mxu0 0.0
    %4544 = vmatprep.mubr.f32.mxu0 0.0
    %4545 = vmatmul.mubr.f32.gmra.mrb[0].mxu0 %v4475
    %v4546 = vpop.f32.mrb[0].mxu0
    %v4547 = vadd.f32 0.0, %v4546
    %v4548 = vpop.f32.mrb[0].mxu0
    %4549 = vmatprep.mubr.f32.mxu0 0.0
    %4550 = vmatmul.mubr.f32.gmra.mrb[0].mxu0 %v4478
    %v4551 = vpop.f32.mrb[0].mxu0
    %v4552 = vadd.f32 0.0, %v4551
    %v4553 = vpop.f32.mrb[0].mxu0
    %4554 = vdwg.mxu0
    %v4556 = vsel %vm1258, %v4062, 0
    %v4559 = vsel %vm1258, %v4064, 0
    %4561 = vmatprep.subr.mxu0 0.0
    %4562 = vmatpush1.msra.mxu0 %v3186
    %4563 = vmatprep.subr.mxu0 0.0
    %4564 = vmatpush1.msra.mxu0 %v3188
    %4565 = vmatprep.subr.mxu0 0.0
    %4566 = vmatpush1.msra.mxu0 0.0
    %4567 = vmatprep.subr.mxu0 0.0
    %4568 = vmatpush1.msra.mxu0 0.0
    %4569 = vmatprep.subr.mxu0 0.0
    %4570 = vmatpush1.msra.mxu0 0.0
    %4571 = vmatprep.subr.mxu0 0.0
    %4572 = vmatpush1.msra.mxu0 0.0
    %4573 = vmatprep.subr.mxu0 0.0
    %4574 = vmatpush1.msra.mxu0 0.0
    %4575 = vmatprep.subr.mxu0 0.0
    %4576 = vmatpush1.msra.mxu0 0.0
    %4577 = vmatprep.subr.mxu0 0.0
    %4578 = vmatpush1.msra.mxu0 0.0
    %4579 = vmatprep.subr.mxu0 0.0
    %4580 = vmatpush1.msra.mxu0 0.0
    %4581 = vmatprep.subr.mxu0 0.0
    %4582 = vmatpush1.msra.mxu0 0.0
    %4583 = vmatprep.subr.mxu0 0.0
    %4584 = vmatpush1.msra.mxu0 0.0
    %4585 = vmatprep.subr.mxu0 0.0
    %4586 = vmatpush1.msra.mxu0 0.0
    %4587 = vmatprep.subr.mxu0 0.0
    %4588 = vmatpush1.msra.mxu0 0.0
    %4589 = vmatprep.subr.mxu0 0.0
    %4590 = vmatpush1.msra.mxu0 0.0
    %4591 = vmatprep.subr.mxu0 0.0
    %4592 = vmatpush1.msra.mxu0 0.0
    %4593 = vmatprep.subr.mxu0 0.0
    %4594 = vmatpush1.msra.mxu0 0.0
    %4595 = vmatprep.subr.mxu0 0.0
    %4596 = vmatpush1.msra.mxu0 0.0
    %4597 = vmatprep.subr.mxu0 0.0
    %4598 = vmatpush1.msra.mxu0 0.0
    %4599 = vmatprep.subr.mxu0 0.0
    %4600 = vmatpush1.msra.mxu0 0.0
    %4601 = vmatprep.subr.mxu0 0.0
    %4602 = vmatpush1.msra.mxu0 0.0
    %4603 = vmatprep.subr.mxu0 0.0
    %4604 = vmatpush1.msra.mxu0 0.0
    %4605 = vmatprep.subr.mxu0 0.0
    %4606 = vmatpush1.msra.mxu0 0.0
    %4607 = vmatprep.subr.mxu0 0.0
    %4608 = vmatpush1.msra.mxu0 0.0
    %4609 = vmatprep.subr.mxu0 0.0
    %4610 = vmatpush1.msra.mxu0 0.0
    %4611 = vmatprep.subr.mxu0 0.0
    %4612 = vmatpush1.msra.mxu0 0.0
    %4613 = vmatprep.subr.mxu0 0.0
    %4614 = vmatpush1.msra.mxu0 0.0
    %4615 = vmatprep.subr.mxu0 0.0
    %4616 = vmatpush1.msra.mxu0 0.0
    %4617 = vmatprep.subr.mxu0 0.0
    %4618 = vmatpush1.msra.mxu0 0.0
    %4619 = vmatprep.subr.mxu0 0.0
    %4620 = vmatpush1.msra.mxu0 0.0
    %4621 = vmatprep.subr.mxu0 0.0
    %4622 = vmatpush1.msra.mxu0 0.0
    %4623 = vmatprep.subr.mxu0 0.0
    %4624 = vmatpush1.msra.mxu0 0.0
    %4625 = vmatprep.mubr.f32.mxu0 0.0
    %4626 = vmatmul.mubr.f32.gmra.mrb[0].mxu0 %v4556
    %v4627 = vpop.f32.mrb[0].mxu0
    %v4628 = vadd.f32 0.0, %v4627
    %v4629 = vpop.f32.mrb[0].mxu0
    %4630 = vmatprep.mubr.f32.mxu0 0.0
    %4631 = vmatmul.mubr.f32.gmra.mrb[0].mxu0 %v4559
    %v4632 = vpop.f32.mrb[0].mxu0
    %v4633 = vadd.f32 0.0, %v4632
    %v4634 = vpop.f32.mrb[0].mxu0
    %4635 = vdwg.mxu0
    %v4637 = vsel %vm1258, %v4066, 0
    %v4640 = vsel %vm1258, %v4068, 0
    %4642 = vmatprep.subr.mxu0 0.0
    %4643 = vmatpush1.msra.mxu0 %v3190
    %4644 = vmatprep.subr.mxu0 0.0
    %4645 = vmatpush1.msra.mxu0 %v3192
    %4646 = vmatprep.subr.mxu0 0.0
    %4647 = vmatpush1.msra.mxu0 0.0
    %4648 = vmatprep.subr.mxu0 0.0
    %4649 = vmatpush1.msra.mxu0 0.0
    %4650 = vmatprep.subr.mxu0 0.0
    %4651 = vmatpush1.msra.mxu0 0.0
    %4652 = vmatprep.subr.mxu0 0.0
    %4653 = vmatpush1.msra.mxu0 0.0
    %4654 = vmatprep.subr.mxu0 0.0
    %4655 = vmatpush1.msra.mxu0 0.0
    %4656 = vmatprep.subr.mxu0 0.0
    %4657 = vmatpush1.msra.mxu0 0.0
    %4658 = vmatprep.subr.mxu0 0.0
    %4659 = vmatpush1.msra.mxu0 0.0
    %4660 = vmatprep.subr.mxu0 0.0
    %4661 = vmatpush1.msra.mxu0 0.0
    %4662 = vmatprep.subr.mxu0 0.0
    %4663 = vmatpush1.msra.mxu0 0.0
    %4664 = vmatprep.subr.mxu0 0.0
    %4665 = vmatpush1.msra.mxu0 0.0
    %4666 = vmatprep.subr.mxu0 0.0
    %4667 = vmatpush1.msra.mxu0 0.0
    %4668 = vmatprep.subr.mxu0 0.0
    %4669 = vmatpush1.msra.mxu0 0.0
    %4670 = vmatprep.subr.mxu0 0.0
    %4671 = vmatpush1.msra.mxu0 0.0
    %4672 = vmatprep.subr.mxu0 0.0
    %4673 = vmatpush1.msra.mxu0 0.0
    %4674 = vmatprep.subr.mxu0 0.0
    %4675 = vmatpush1.msra.mxu0 0.0
    %4676 = vmatprep.subr.mxu0 0.0
    %4677 = vmatpush1.msra.mxu0 0.0
    %4678 = vmatprep.subr.mxu0 0.0
    %4679 = vmatpush1.msra.mxu0 0.0
    %4680 = vmatprep.subr.mxu0 0.0
    %4681 = vmatpush1.msra.mxu0 0.0
    %4682 = vmatprep.subr.mxu0 0.0
    %4683 = vmatpush1.msra.mxu0 0.0
    %4684 = vmatprep.subr.mxu0 0.0
    %4685 = vmatpush1.msra.mxu0 0.0
    %4686 = vmatprep.subr.mxu0 0.0
    %4687 = vmatpush1.msra.mxu0 0.0
    %4688 = vmatprep.subr.mxu0 0.0
    %4689 = vmatpush1.msra.mxu0 0.0
    %4690 = vmatprep.subr.mxu0 0.0
    %4691 = vmatpush1.msra.mxu0 0.0
    %4692 = vmatprep.subr.mxu0 0.0
    %4693 = vmatpush1.msra.mxu0 0.0
    %4694 = vmatprep.subr.mxu0 0.0
    %4695 = vmatpush1.msra.mxu0 0.0
    %4696 = vmatprep.subr.mxu0 0.0
    %4697 = vmatpush1.msra.mxu0 0.0
    %4698 = vmatprep.subr.mxu0 0.0
    %4699 = vmatpush1.msra.mxu0 0.0
    %4700 = vmatprep.subr.mxu0 0.0
    %4701 = vmatpush1.msra.mxu0 0.0
    %4702 = vmatprep.subr.mxu0 0.0
    %4703 = vmatpush1.msra.mxu0 0.0
    %4704 = vmatprep.subr.mxu0 0.0
    %4705 = vmatpush1.msra.mxu0 0.0
    %4706 = vmatprep.mubr.f32.mxu0 0.0
    %4707 = vmatmul.mubr.f32.gmra.mrb[0].mxu0 %v4637
    %v4708 = vpop.f32.mrb[0].mxu0
    %v4709 = vadd.f32 0.0, %v4708
    %v4710 = vpop.f32.mrb[0].mxu0
    %4711 = vmatprep.mubr.f32.mxu0 0.0
    %4712 = vmatmul.mubr.f32.gmra.mrb[0].mxu0 %v4640
    %v4713 = vpop.f32.mrb[0].mxu0
    %v4714 = vadd.f32 0.0, %v4713
    %v4715 = vpop.f32.mrb[0].mxu0
    %4716 = vdwg.mxu0
    %4721 = vrot.lane.b32.xlu0 %v4304, 32
    %v4722 = vpop.permute.xlu0 %4721
    %4723 = vrot.lane.b32.xlu0 %v4309, 32
    %v4724 = vpop.permute.xlu0 %4723
    %4725 = vrot.lane.b32.xlu0 %v4385, 32
    %v4726 = vpop.permute.xlu0 %4725
    %4727 = vrot.lane.b32.xlu0 %v4390, 32
    %v4728 = vpop.permute.xlu0 %4727
    %4737 = vrot.lane.b32.xlu0 %v4466, 64
    %v4738 = vpop.permute.xlu0 %4737
    %4739 = vrot.lane.b32.xlu0 %v4471, 64
    %v4740 = vpop.permute.xlu0 %4739
    %4741 = vrot.lane.b32.xlu0 %v4547, 64
    %v4742 = vpop.permute.xlu0 %4741
    %4743 = vrot.lane.b32.xlu0 %v4552, 64
    %v4744 = vpop.permute.xlu0 %4743
    %4753 = vrot.lane.b32.xlu0 %v4628, 96
    %v4754 = vpop.permute.xlu0 %4753
    %4755 = vrot.lane.b32.xlu0 %v4633, 96
    %v4756 = vpop.permute.xlu0 %4755
    %4757 = vrot.lane.b32.xlu0 %v4709, 96
    %v4758 = vpop.permute.xlu0 %4757
    %4759 = vrot.lane.b32.xlu0 %v4714, 96
    %v4760 = vpop.permute.xlu0 %4759
    %v4765 = vsel %vm549, %v4142, %v4722
    %v4766 = vsel %vm549, %v4147, %v4724
    %v4767 = vsel %vm549, %v4223, %v4726
    %v4768 = vsel %vm549, %v4228, %v4728
    %v4769 = vsel %vm2135, %v4765, %v4738
    %v4770 = vsel %vm2135, %v4766, %v4740
    %v4771 = vsel %vm2135, %v4767, %v4742
    %v4772 = vsel %vm2135, %v4768, %v4744
    %v4773 = vsel %vm2140, %v4769, %v4754
    %v4774 = vsel %vm2140, %v4770, %v4756
    %v4775 = vsel %vm2140, %v4771, %v4758
    %v4776 = vsel %vm2140, %v4772, %v4760
    %v4777 = vpack.c.bf16 %v4774, %v4773
    %v4778 = vpack.c.bf16 %v4776, %v4775
    %v4779 = vlaneseq
    %v4780 = vshrl.u32 %v4779, 7
    %v4781 = vsub.s32 0, %v4780
    %v4782 = vrot.slane %v2800, %v4781
    %v4799 = vunpack.c.l.b16 %v2783
    %v4800 = vunpack.c.l.b16 %v2784
    %v4801 = vunpack.c.l.b16 %v2785
    %v4802 = vunpack.c.l.b16 %v2786
    %v4803 = vunpack.c.l.b16 %v2787
    %v4804 = vunpack.c.l.b16 %v2788
    %v4805 = vunpack.c.l.b16 %v2789
    %v4806 = vunpack.c.l.b16 %v2790
    %v4807 = vunpack.c.l.b16 %v2791
    %v4808 = vunpack.c.l.b16 %v2792
    %v4809 = vunpack.c.l.b16 %v2793
    %v4810 = vunpack.c.l.b16 %v2794
    %v4811 = vunpack.c.l.b16 %v2795
    %v4812 = vunpack.c.l.b16 %v2796
    %v4813 = vunpack.c.l.b16 %v2797
    %v4814 = vunpack.c.l.b16 %v2798
    %v4815 = vpack.c.b16 %v4800, %v4799
    %v4816 = vpack.c.b16 %v4802, %v4801
    %v4817 = vpack.c.b16 %v4804, %v4803
    %v4818 = vpack.c.b16 %v4806, %v4805
    %v4819 = vpack.c.b16 %v4808, %v4807
    %v4820 = vpack.c.b16 %v4810, %v4809
    %v4821 = vpack.c.b16 %v4812, %v4811
    %v4822 = vpack.c.b16 %v4814, %v4813
    %4831 = vmatprep.subr.bf16.mxu0 0
    %4832 = vmatpush1.bf16.msra.mxu0 %v4815
    %4833 = vmatprep.subr.bf16.mxu0 0
    %4834 = vmatpush1.bf16.msra.mxu0 %v4816
    %4835 = vmatprep.subr.bf16.mxu0 0
    %4836 = vmatpush1.bf16.msra.mxu0 %v4817
    %4837 = vmatprep.subr.bf16.mxu0 0
    %4838 = vmatpush1.bf16.msra.mxu0 %v4818
    %4839 = vmatprep.subr.bf16.mxu0 0
    %4840 = vmatpush1.bf16.msra.mxu0 %v4819
    %4841 = vmatprep.subr.bf16.mxu0 0
    %4842 = vmatpush1.bf16.msra.mxu0 %v4820
    %4843 = vmatprep.subr.bf16.mxu0 0
    %4844 = vmatpush1.bf16.msra.mxu0 %v4821
    %4845 = vmatprep.subr.bf16.mxu0 0
    %4846 = vmatpush1.bf16.msra.mxu0 %v4822
    %4847 = vmatprep.subr.bf16.mxu0 0
    %4848 = vmatpush1.bf16.msra.mxu0 0
    %4849 = vmatprep.subr.bf16.mxu0 0
    %4850 = vmatpush1.bf16.msra.mxu0 0
    %4851 = vmatprep.subr.bf16.mxu0 0
    %4852 = vmatpush1.bf16.msra.mxu0 0
    %4853 = vmatprep.subr.bf16.mxu0 0
    %4854 = vmatpush1.bf16.msra.mxu0 0
    %4855 = vmatprep.subr.bf16.mxu0 0
    %4856 = vmatpush1.bf16.msra.mxu0 0
    %4857 = vmatprep.subr.bf16.mxu0 0
    %4858 = vmatpush1.bf16.msra.mxu0 0
    %4859 = vmatprep.subr.bf16.mxu0 0
    %4860 = vmatpush1.bf16.msra.mxu0 0
    %4861 = vmatprep.subr.bf16.mxu0 0
    %4862 = vmatpush1.bf16.msra.mxu0 0
    %4863 = vmatprep.mubr.bf16.mxu0 0
    %4864 = vmatmul.mubr.bf16.gmra.mrb[0].mxu0 %v4777
    %v4865 = vpop.f32.mrb[0].mxu0
    %v4866 = vadd.f32 %v4782, %v4865
    %v4867 = vpop.f32.mrb[0].mxu0
    %v4868 = vpop.f32.mrb[0].mxu0
    %v4869 = vadd.f32 %v4782, %v4868
    %v4870 = vpop.f32.mrb[0].mxu0
    %4871 = vmatprep.mubr.bf16.mxu0 0
    %4872 = vmatmul.mubr.bf16.gmra.mrb[0].mxu0 %v4778
    %v4873 = vpop.f32.mrb[0].mxu0
    %v4874 = vadd.f32 %v4782, %v4873
    %v4875 = vpop.f32.mrb[0].mxu0
    %v4876 = vpop.f32.mrb[0].mxu0
    %v4877 = vadd.f32 %v4782, %v4876
    %v4878 = vpop.f32.mrb[0].mxu0
    %4879 = vdwg.mxu0
    %v4880 = vadd.f32 %v2743, %v4866
    %v4881 = vadd.f32 %v2744, %v4869
    %v4882 = vadd.f32 %v2745, %v4874
    %v4883 = vadd.f32 %v2746, %v4877
    %4884 = vadd.xlane.f32.xlu0 %v4880
    %v4885 = vpop.xlane.xlu0 %4884
    %4886 = vadd.xlane.f32.xlu0 %v4881
    %v4887 = vpop.xlane.xlu0 %4886
    %4888 = vadd.xlane.f32.xlu0 %v4882
    %v4889 = vpop.xlane.xlu0 %4888
    %4890 = vadd.xlane.f32.xlu0 %v4883
    %v4891 = vpop.xlane.xlu0 %4890
    %v4892 = vmul.f32 %v4885, %v51
    %v4893 = vmul.f32 %v4887, %v51
    %v4894 = vmul.f32 %v4889, %v51
    %v4895 = vmul.f32 %v4891, %v51
    %v4896 = vsub.f32 %v4880, %v4892
    %v4897 = vsub.f32 %v4881, %v4893
    %v4898 = vsub.f32 %v4882, %v4894
    %v4899 = vsub.f32 %v4883, %v4895
    %v4900 = vmul.f32 %v4896, %v4896
    %v4901 = vmul.f32 %v4897, %v4897
    %v4902 = vmul.f32 %v4898, %v4898
    %v4903 = vmul.f32 %v4899, %v4899
    %4904 = vadd.xlane.f32.xlu0 %v4900
    %v4905 = vpop.xlane.xlu0 %4904
    %4906 = vadd.xlane.f32.xlu0 %v4901
    %v4907 = vpop.xlane.xlu0 %4906
    %4908 = vadd.xlane.f32.xlu0 %v4902
    %v4909 = vpop.xlane.xlu0 %4908
    %4910 = vadd.xlane.f32.xlu0 %v4903
    %v4911 = vpop.xlane.xlu0 %4910
    %v4912 = vmul.f32 %v4905, %v51
    %v4913 = vmul.f32 %v4907, %v51
    %v4914 = vmul.f32 %v4909, %v51
    %v4915 = vmul.f32 %v4911, %v51
    %v4916 = vadd.f32 %v4912, 1e-12
    %v4917 = vadd.f32 %v4913, 1e-12
    %v4918 = vadd.f32 %v4914, 1e-12
    %v4919 = vadd.f32 %v4915, 1e-12
    %v4920 = vrsqrt.pop %v4916
    %v4921 = vrsqrt.pop %v4917
    %v4922 = vrsqrt.pop %v4918
    %v4923 = vrsqrt.pop %v4919
    %v4924 = vmul.f32 %v4896, %v4920
    %v4925 = vmul.f32 %v4897, %v4921
    %v4926 = vmul.f32 %v4898, %v4922
    %v4927 = vmul.f32 %v4899, %v4923
    %v4928 = vlaneseq
    %v4929 = vshrl.u32 %v4928, 7
    %v4930 = vsub.s32 1, %v4929
    %v4931 = vrot.slane %v2800, %v4930
    %v4932 = vmul.f32 %v4924, %v4931
    %v4933 = vmul.f32 %v4925, %v4931
    %v4934 = vmul.f32 %v4926, %v4931
    %v4935 = vmul.f32 %v4927, %v4931
    %v4936 = vlaneseq
    %v4937 = vshrl.u32 %v4936, 7
    %v4938 = vsub.s32 2, %v4937
    %v4939 = vrot.slane %v2800, %v4938
    %v4940 = vadd.f32 %v4932, %v4939
    %v4941 = vadd.f32 %v4933, %v4939
    %v4942 = vadd.f32 %v4934, %v4939
    %v4943 = vadd.f32 %v4935, %v4939
    %v4944 = vpack.c.bf16 %v4941, %v4940
    %v4945 = vpack.c.bf16 %v4943, %v4942
    %v4947 = vlaneseq
    %v4948 = vshrl.u32 %v4947, 7
    %v4949 = vsub.s32 0, %v4948
    %v4950 = vrot.slane %v2819, %v4949
    %v4951 = vlaneseq
    %v4952 = vshrl.u32 %v4951, 7
    %v4953 = vsub.s32 1, %v4952
    %v4954 = vrot.slane %v2819, %v4953
    %v4973 = vunpack.c.l.b16 %v2802
    %v4974 = vunpack.c.h.b16 %v2802
    %v4975 = vunpack.c.l.b16 %v2803
    %v4976 = vunpack.c.h.b16 %v2803
    %v4977 = vunpack.c.l.b16 %v2804
    %v4978 = vunpack.c.h.b16 %v2804
    %v4979 = vunpack.c.l.b16 %v2805
    %v4980 = vunpack.c.h.b16 %v2805
    %v4981 = vunpack.c.l.b16 %v2806
    %v4982 = vunpack.c.h.b16 %v2806
    %v4983 = vunpack.c.l.b16 %v2807
    %v4984 = vunpack.c.h.b16 %v2807
    %v4985 = vunpack.c.l.b16 %v2808
    %v4986 = vunpack.c.h.b16 %v2808
    %v4987 = vunpack.c.l.b16 %v2809
    %v4988 = vunpack.c.h.b16 %v2809
    %v4989 = vunpack.c.l.b16 %v2810
    %v4990 = vunpack.c.h.b16 %v2810
    %v4991 = vunpack.c.l.b16 %v2811
    %v4992 = vunpack.c.h.b16 %v2811
    %v4993 = vunpack.c.l.b16 %v2812
    %v4994 = vunpack.c.h.b16 %v2812
    %v4995 = vunpack.c.l.b16 %v2813
    %v4996 = vunpack.c.h.b16 %v2813
    %v4997 = vunpack.c.l.b16 %v2814
    %v4998 = vunpack.c.h.b16 %v2814
    %v4999 = vunpack.c.l.b16 %v2815
    %v5000 = vunpack.c.h.b16 %v2815
    %v5001 = vunpack.c.l.b16 %v2816
    %v5002 = vunpack.c.h.b16 %v2816
    %v5003 = vunpack.c.l.b16 %v2817
    %v5004 = vunpack.c.h.b16 %v2817
    %v5005 = vpack.c.b16 %v4975, %v4973
    %v5006 = vpack.c.b16 %v4976, %v4974
    %v5007 = vpack.c.b16 %v4979, %v4977
    %v5008 = vpack.c.b16 %v4980, %v4978
    %v5009 = vpack.c.b16 %v4983, %v4981
    %v5010 = vpack.c.b16 %v4984, %v4982
    %v5011 = vpack.c.b16 %v4987, %v4985
    %v5012 = vpack.c.b16 %v4988, %v4986
    %v5013 = vpack.c.b16 %v4991, %v4989
    %v5014 = vpack.c.b16 %v4992, %v4990
    %v5015 = vpack.c.b16 %v4995, %v4993
    %v5016 = vpack.c.b16 %v4996, %v4994
    %v5017 = vpack.c.b16 %v4999, %v4997
    %v5018 = vpack.c.b16 %v5000, %v4998
    %v5019 = vpack.c.b16 %v5003, %v5001
    %v5020 = vpack.c.b16 %v5004, %v5002
    %5037 = vmatprep.subr.bf16.mxu0 %v5006
    %5038 = vmatpush1.bf16.msra.mxu0 %v5005
    %5039 = vmatprep.subr.bf16.mxu0 %v5008
    %5040 = vmatpush1.bf16.msra.mxu0 %v5007
    %5041 = vmatprep.subr.bf16.mxu0 %v5010
    %5042 = vmatpush1.bf16.msra.mxu0 %v5009
    %5043 = vmatprep.subr.bf16.mxu0 %v5012
    %5044 = vmatpush1.bf16.msra.mxu0 %v5011
    %5045 = vmatprep.subr.bf16.mxu0 %v5014
    %5046 = vmatpush1.bf16.msra.mxu0 %v5013
    %5047 = vmatprep.subr.bf16.mxu0 %v5016
    %5048 = vmatpush1.bf16.msra.mxu0 %v5015
    %5049 = vmatprep.subr.bf16.mxu0 %v5018
    %5050 = vmatpush1.bf16.msra.mxu0 %v5017
    %5051 = vmatprep.subr.bf16.mxu0 %v5020
    %5052 = vmatpush1.bf16.msra.mxu0 %v5019
    %5053 = vmatprep.subr.bf16.mxu0 0
    %5054 = vmatpush1.bf16.msra.mxu0 0
    %5055 = vmatprep.subr.bf16.mxu0 0
    %5056 = vmatpush1.bf16.msra.mxu0 0
    %5057 = vmatprep.subr.bf16.mxu0 0
    %5058 = vmatpush1.bf16.msra.mxu0 0
    %5059 = vmatprep.subr.bf16.mxu0 0
    %5060 = vmatpush1.bf16.msra.mxu0 0
    %5061 = vmatprep.subr.bf16.mxu0 0
    %5062 = vmatpush1.bf16.msra.mxu0 0
    %5063 = vmatprep.subr.bf16.mxu0 0
    %5064 = vmatpush1.bf16.msra.mxu0 0
    %5065 = vmatprep.subr.bf16.mxu0 0
    %5066 = vmatpush1.bf16.msra.mxu0 0
    %5067 = vmatprep.subr.bf16.mxu0 0
    %5068 = vmatpush1.bf16.msra.mxu0 0
    %5069 = vmatprep.mubr.bf16.mxu0 0
    %5070 = vmatmul.mubr.bf16.gmra.mrb[0].mxu0 %v4944
    %v5071 = vpop.f32.mrb[0].mxu0
    %v5072 = vadd.f32 %v4950, %v5071
    %v5073 = vpop.f32.mrb[0].mxu0
    %v5074 = vadd.f32 %v4954, %v5073
    %v5075 = vpop.f32.mrb[0].mxu0
    %v5076 = vadd.f32 %v4950, %v5075
    %v5077 = vpop.f32.mrb[0].mxu0
    %v5078 = vadd.f32 %v4954, %v5077
    %5079 = vmatprep.mubr.bf16.mxu0 0
    %5080 = vmatmul.mubr.bf16.gmra.mrb[0].mxu0 %v4945
    %v5081 = vpop.f32.mrb[0].mxu0
    %v5082 = vadd.f32 %v4950, %v5081
    %v5083 = vpop.f32.mrb[0].mxu0
    %v5084 = vadd.f32 %v4954, %v5083
    %v5085 = vpop.f32.mrb[0].mxu0
    %v5086 = vadd.f32 %v4950, %v5085
    %v5087 = vpop.f32.mrb[0].mxu0
    %v5088 = vadd.f32 %v4954, %v5087
    %5089 = vdwg.mxu0
    %v5090 = vmul.f32 %v5072, %v5072
    %v5091 = vmul.f32 %v5074, %v5074
    %v5092 = vmul.f32 %v5076, %v5076
    %v5093 = vmul.f32 %v5078, %v5078
    %v5094 = vmul.f32 %v5082, %v5082
    %v5095 = vmul.f32 %v5084, %v5084
    %v5096 = vmul.f32 %v5086, %v5086
    %v5097 = vmul.f32 %v5088, %v5088
    %v5098 = vmul.f32 %v5072, %v5090
    %v5099 = vmul.f32 %v5074, %v5091
    %v5100 = vmul.f32 %v5076, %v5092
    %v5101 = vmul.f32 %v5078, %v5093
    %v5102 = vmul.f32 %v5082, %v5094
    %v5103 = vmul.f32 %v5084, %v5095
    %v5104 = vmul.f32 %v5086, %v5096
    %v5105 = vmul.f32 %v5088, %v5097
    %v5106 = vmul.f32 %v5098, 0.044715
    %v5107 = vmul.f32 %v5099, 0.044715
    %v5108 = vmul.f32 %v5100, 0.044715
    %v5109 = vmul.f32 %v5101, 0.044715
    %v5110 = vmul.f32 %v5102, 0.044715
    %v5111 = vmul.f32 %v5103, 0.044715
    %v5112 = vmul.f32 %v5104, 0.044715
    %v5113 = vmul.f32 %v5105, 0.044715
    %v5114 = vadd.f32 %v5072, %v5106
    %v5115 = vadd.f32 %v5074, %v5107
    %v5116 = vadd.f32 %v5076, %v5108
    %v5117 = vadd.f32 %v5078, %v5109
    %v5118 = vadd.f32 %v5082, %v5110
    %v5119 = vadd.f32 %v5084, %v5111
    %v5120 = vadd.f32 %v5086, %v5112
    %v5121 = vadd.f32 %v5088, %v5113
    %v5122 = vmul.f32 %v5114, 0.7978846
    %v5123 = vmul.f32 %v5115, 0.7978846
    %v5124 = vmul.f32 %v5116, 0.7978846
    %v5125 = vmul.f32 %v5117, 0.7978846
    %v5126 = vmul.f32 %v5118, 0.7978846
    %v5127 = vmul.f32 %v5119, 0.7978846
    %v5128 = vmul.f32 %v5120, 0.7978846
    %v5129 = vmul.f32 %v5121, 0.7978846
    %v5130 = vtanh.pop %v5122
    %v5131 = vtanh.pop %v5123
    %v5132 = vtanh.pop %v5124
    %v5133 = vtanh.pop %v5125
    %v5134 = vtanh.pop %v5126
    %v5135 = vtanh.pop %v5127
    %v5136 = vtanh.pop %v5128
    %v5137 = vtanh.pop %v5129
    %v5138 = vadd.f32 %v5130, 1.0
    %v5139 = vadd.f32 %v5131, 1.0
    %v5140 = vadd.f32 %v5132, 1.0
    %v5141 = vadd.f32 %v5133, 1.0
    %v5142 = vadd.f32 %v5134, 1.0
    %v5143 = vadd.f32 %v5135, 1.0
    %v5144 = vadd.f32 %v5136, 1.0
    %v5145 = vadd.f32 %v5137, 1.0
    %v5146 = vmul.f32 %v5138, 0.5
    %v5147 = vmul.f32 %v5139, 0.5
    %v5148 = vmul.f32 %v5140, 0.5
    %v5149 = vmul.f32 %v5141, 0.5
    %v5150 = vmul.f32 %v5142, 0.5
    %v5151 = vmul.f32 %v5143, 0.5
    %v5152 = vmul.f32 %v5144, 0.5
    %v5153 = vmul.f32 %v5145, 0.5
    %v5154 = vmul.f32 %v5072, %v5146
    %v5155 = vmul.f32 %v5074, %v5147
    %v5156 = vmul.f32 %v5076, %v5148
    %v5157 = vmul.f32 %v5078, %v5149
    %v5158 = vmul.f32 %v5082, %v5150
    %v5159 = vmul.f32 %v5084, %v5151
    %v5160 = vmul.f32 %v5086, %v5152
    %v5161 = vmul.f32 %v5088, %v5153
    %v5162 = vpack.c.bf16 %v5156, %v5154
    %v5163 = vpack.c.bf16 %v5157, %v5155
    %v5164 = vpack.c.bf16 %v5160, %v5158
    %v5165 = vpack.c.bf16 %v5161, %v5159
    %v5166 = vlaneseq
    %v5167 = vshrl.u32 %v5166, 7
    %v5168 = vsub.s32 3, %v5167
    %v5169 = vrot.slane %v2800, %v5168
    %v5202 = vunpack.c.l.b16 %v2821
    %v5203 = vunpack.c.l.b16 %v2822
    %v5204 = vunpack.c.l.b16 %v2823
    %v5205 = vunpack.c.l.b16 %v2824
    %v5206 = vunpack.c.l.b16 %v2825
    %v5207 = vunpack.c.l.b16 %v2826
    %v5208 = vunpack.c.l.b16 %v2827
    %v5209 = vunpack.c.l.b16 %v2828
    %v5210 = vunpack.c.l.b16 %v2829
    %v5211 = vunpack.c.l.b16 %v2830
    %v5212 = vunpack.c.l.b16 %v2831
    %v5213 = vunpack.c.l.b16 %v2832
    %v5214 = vunpack.c.l.b16 %v2833
    %v5215 = vunpack.c.l.b16 %v2834
    %v5216 = vunpack.c.l.b16 %v2835
    %v5217 = vunpack.c.l.b16 %v2836
    %v5218 = vunpack.c.l.b16 %v2837
    %v5219 = vunpack.c.l.b16 %v2838
    %v5220 = vunpack.c.l.b16 %v2839
    %v5221 = vunpack.c.l.b16 %v2840
    %v5222 = vunpack.c.l.b16 %v2841
    %v5223 = vunpack.c.l.b16 %v2842
    %v5224 = vunpack.c.l.b16 %v2843
    %v5225 = vunpack.c.l.b16 %v2844
    %v5226 = vunpack.c.l.b16 %v2845
    %v5227 = vunpack.c.l.b16 %v2846
    %v5228 = vunpack.c.l.b16 %v2847
    %v5229 = vunpack.c.l.b16 %v2848
    %v5230 = vunpack.c.l.b16 %v2849
    %v5231 = vunpack.c.l.b16 %v2850
    %v5232 = vunpack.c.l.b16 %v2851
    %v5233 = vunpack.c.l.b16 %v2852
    %v5234 = vpack.c.b16 %v5203, %v5202
    %v5235 = vpack.c.b16 %v5205, %v5204
    %v5236 = vpack.c.b16 %v5207, %v5206
    %v5237 = vpack.c.b16 %v5209, %v5208
    %v5238 = vpack.c.b16 %v5211, %v5210
    %v5239 = vpack.c.b16 %v5213, %v5212
    %v5240 = vpack.c.b16 %v5215, %v5214
    %v5241 = vpack.c.b16 %v5217, %v5216
    %v5242 = vpack.c.b16 %v5219, %v5218
    %v5243 = vpack.c.b16 %v5221, %v5220
    %v5244 = vpack.c.b16 %v5223, %v5222
    %v5245 = vpack.c.b16 %v5225, %v5224
    %v5246 = vpack.c.b16 %v5227, %v5226
    %v5247 = vpack.c.b16 %v5229, %v5228
    %v5248 = vpack.c.b16 %v5231, %v5230
    %v5249 = vpack.c.b16 %v5233, %v5232
    %5266 = vmatprep.subr.bf16.mxu0 0
    %5267 = vmatpush1.bf16.msra.mxu0 %v5234
    %5268 = vmatprep.subr.bf16.mxu0 0
    %5269 = vmatpush1.bf16.msra.mxu0 %v5235
    %5270 = vmatprep.subr.bf16.mxu0 0
    %5271 = vmatpush1.bf16.msra.mxu0 %v5236
    %5272 = vmatprep.subr.bf16.mxu0 0
    %5273 = vmatpush1.bf16.msra.mxu0 %v5237
    %5274 = vmatprep.subr.bf16.mxu0 0
    %5275 = vmatpush1.bf16.msra.mxu0 %v5238
    %5276 = vmatprep.subr.bf16.mxu0 0
    %5277 = vmatpush1.bf16.msra.mxu0 %v5239
    %5278 = vmatprep.subr.bf16.mxu0 0
    %5279 = vmatpush1.bf16.msra.mxu0 %v5240
    %5280 = vmatprep.subr.bf16.mxu0 0
    %5281 = vmatpush1.bf16.msra.mxu0 %v5241
    %5282 = vmatprep.subr.bf16.mxu0 0
    %5283 = vmatpush1.bf16.msra.mxu0 %v5242
    %5284 = vmatprep.subr.bf16.mxu0 0
    %5285 = vmatpush1.bf16.msra.mxu0 %v5243
    %5286 = vmatprep.subr.bf16.mxu0 0
    %5287 = vmatpush1.bf16.msra.mxu0 %v5244
    %5288 = vmatprep.subr.bf16.mxu0 0
    %5289 = vmatpush1.bf16.msra.mxu0 %v5245
    %5290 = vmatprep.subr.bf16.mxu0 0
    %5291 = vmatpush1.bf16.msra.mxu0 %v5246
    %5292 = vmatprep.subr.bf16.mxu0 0
    %5293 = vmatpush1.bf16.msra.mxu0 %v5247
    %5294 = vmatprep.subr.bf16.mxu0 0
    %5295 = vmatpush1.bf16.msra.mxu0 %v5248
    %5296 = vmatprep.subr.bf16.mxu0 0
    %5297 = vmatpush1.bf16.msra.mxu0 %v5249
    %5298 = vmatprep.mubr.bf16.mxu0 %v5163
    %5299 = vmatmul.mubr.bf16.gmra.mrb[0].mxu0 %v5162
    %v5300 = vpop.f32.mrb[0].mxu0
    %v5301 = vadd.f32 %v5169, %v5300
    %v5302 = vpop.f32.mrb[0].mxu0
    %v5303 = vpop.f32.mrb[0].mxu0
    %v5304 = vadd.f32 %v5169, %v5303
    %v5305 = vpop.f32.mrb[0].mxu0
    %5306 = vmatprep.mubr.bf16.mxu0 %v5165
    %5307 = vmatmul.mubr.bf16.gmra.mrb[0].mxu0 %v5164
    %v5308 = vpop.f32.mrb[0].mxu0
    %v5309 = vadd.f32 %v5169, %v5308
    %v5310 = vpop.f32.mrb[0].mxu0
    %v5311 = vpop.f32.mrb[0].mxu0
    %v5312 = vadd.f32 %v5169, %v5311
    %v5313 = vpop.f32.mrb[0].mxu0
    %5314 = vdwg.mxu0
    %v5315 = vadd.f32 %v4940, %v5301
    %v5316 = vadd.f32 %v4941, %v5304
    %v5317 = vadd.f32 %v4942, %v5309
    %v5318 = vadd.f32 %v4943, %v5312
    %5319 = vadd.xlane.f32.xlu0 %v5315
    %v5320 = vpop.xlane.xlu0 %5319
    %5321 = vadd.xlane.f32.xlu0 %v5316
    %v5322 = vpop.xlane.xlu0 %5321
    %5323 = vadd.xlane.f32.xlu0 %v5317
    %v5324 = vpop.xlane.xlu0 %5323
    %5325 = vadd.xlane.f32.xlu0 %v5318
    %v5326 = vpop.xlane.xlu0 %5325
    %v5327 = vmul.f32 %v5320, %v51
    %v5328 = vmul.f32 %v5322, %v51
    %v5329 = vmul.f32 %v5324, %v51
    %v5330 = vmul.f32 %v5326, %v51
    %v5331 = vsub.f32 %v5315, %v5327
    %v5332 = vsub.f32 %v5316, %v5328
    %v5333 = vsub.f32 %v5317, %v5329
    %v5334 = vsub.f32 %v5318, %v5330
    %v5335 = vmul.f32 %v5331, %v5331
    %v5336 = vmul.f32 %v5332, %v5332
    %v5337 = vmul.f32 %v5333, %v5333
    %v5338 = vmul.f32 %v5334, %v5334
    %5339 = vadd.xlane.f32.xlu0 %v5335
    %v5340 = vpop.xlane.xlu0 %5339
    %5341 = vadd.xlane.f32.xlu0 %v5336
    %v5342 = vpop.xlane.xlu0 %5341
    %5343 = vadd.xlane.f32.xlu0 %v5337
    %v5344 = vpop.xlane.xlu0 %5343
    %5345 = vadd.xlane.f32.xlu0 %v5338
    %v5346 = vpop.xlane.xlu0 %5345
    %v5347 = vmul.f32 %v5340, %v51
    %v5348 = vmul.f32 %v5342, %v51
    %v5349 = vmul.f32 %v5344, %v51
    %v5350 = vmul.f32 %v5346, %v51
    %v5351 = vadd.f32 %v5347, 1e-12
    %v5352 = vadd.f32 %v5348, 1e-12
    %v5353 = vadd.f32 %v5349, 1e-12
    %v5354 = vadd.f32 %v5350, 1e-12
    %v5355 = vrsqrt.pop %v5351
    %v5356 = vrsqrt.pop %v5352
    %v5357 = vrsqrt.pop %v5353
    %v5358 = vrsqrt.pop %v5354
    %v5359 = vmul.f32 %v5331, %v5355
    %v5360 = vmul.f32 %v5332, %v5356
    %v5361 = vmul.f32 %v5333, %v5357
    %v5362 = vmul.f32 %v5334, %v5358
    %v5363 = vlaneseq
    %v5364 = vshrl.u32 %v5363, 7
    %v5365 = vsub.s32 4, %v5364
    %v5366 = vrot.slane %v2800, %v5365
    %v5367 = vmul.f32 %v5359, %v5366
    %v5368 = vmul.f32 %v5360, %v5366
    %v5369 = vmul.f32 %v5361, %v5366
    %v5370 = vmul.f32 %v5362, %v5366
    %v5371 = vlaneseq
    %v5372 = vshrl.u32 %v5371, 7
    %v5373 = vsub.s32 5, %v5372
    %v5374 = vrot.slane %v2800, %v5373
    %v5375 = vadd.f32 %v5367, %v5374
    %v5376 = vadd.f32 %v5368, %v5374
    %v5377 = vadd.f32 %v5369, %v5374
    %v5378 = vadd.f32 %v5370, %v5374
    %5379 = vst [vmem:[#allocation2] sm:$0xff] %v5375
    %5380 = vst [vmem:[#allocation2 + $0x8] sm:$0xff] %v5376
    %5381 = vst [vmem:[#allocation2 + $0x10] sm:$0xff] %v5377
    %5382 = vst [vmem:[#allocation2 + $0x18] sm:$0xff] %v5378
    // Predicated region
    $region42: #{encoder_bert_forward.1} parent=1 // pred_check
      _
    $region43: #{encoder_bert_forward.1} parent=1 // pred_check_branch
      %5384 = sbr.rel (0) target = $region45
    $region44: #{encoder_bert_forward.1} parent=1 // pred_region
      %s5386 = ssub.s32 512, 512
      %5387 = vsyncadd [#allocation3], %s5386
      %s5388 = sshll.u32 [#allocation2], 4
      %s5389 = int_to_ptr.vmem [resolvable:$true] %s5388
      %5394 = dma.vmem_to_hbm [thread:$0]  %s5389, 512, %s10, [#allocation3], 128, 128, 8
    $region45: #{encoder_bert_forward.1} parent=1 // pred_fallthru
      _
    // Predicated region
    $region46: #{encoder_bert_forward.1} parent=1 // pred_check
      _
    $region47: #{encoder_bert_forward.1} parent=1 // pred_check_branch
      %5396 = sbr.rel (0) target = $region49
    $region48: #{encoder_bert_forward.1} parent=1 // pred_region
      %5397 = dma.done [#allocation3], 512
    $region49: #{encoder_bert_forward.1} parent=1 // pred_fallthru
      _
    %5398 = vsyncpa [#allocation3], 1

</llo_original>
